<compile_context>
chip_gen: v6e
topology: v6e:2x2x1
jax: 0.10.0
libtpu: 0.0.40
codegen_flags: <defaults>
</compile_context>

<pallas_src>
import functools
import math

import numpy as np

import jax
import jax.numpy as jnp
from jax.experimental import pallas as pl
from jax.experimental.pallas import tpu as pltpu


# ----------------------------- fused Pallas kernel ---------------------------

def _layer_norm(h, gamma, beta, eps=1e-5):
    mean = jnp.mean(h, axis=-1, keepdims=True)
    var = jnp.mean(jnp.square(h - mean), axis=-1, keepdims=True)
    return (h - mean) * jax.lax.rsqrt(var + eps) * gamma + beta


def value_kernel(x_ref, w1_ref, b1_ref, w2_ref, b2_ref, wfc_ref, wv_ref,
                 vec_ref, o_ref):
    mm = jnp.bfloat16
    f32 = jnp.float32

    # Value.forward (visual): ob /= 255 is folded into w1.
    x = x_ref[...].astype(mm)                                  # (TB, 1024)

    # conv2d_block_1: Conv2d(4,16,k=4,s=2)+ReLU lowered to one dense GEMM on
    # the flat NHWC input (weight built at init with the conv connectivity).
    h1 = jnp.dot(x, w1_ref[...], preferred_element_type=f32) + b1_ref[...]
    h1 = jnp.maximum(h1, 0.0)                                  # (TB, 784)

    # conv2d_block_2: Conv2d(16,32,k=3,s=1)+ReLU, same dense lowering.
    h2 = jnp.dot(h1.astype(mm), w2_ref[...],
                 preferred_element_type=f32) + b2_ref[...]
    h2 = jnp.maximum(h2, 0.0)                                  # (TB, 800)

    # Packed small params: bfc, ln1(g,b), bv, ln2(g,b), head w, head b.
    vec = vec_ref[...]                                         # (8, 64) f32
    bfc, g1, be1 = vec[0:1, :], vec[1:2, :], vec[2:3, :]
    bv, g2, be2 = vec[3:4, :], vec[4:5, :], vec[5:6, :]
    wh, bh = vec[6:7, :], vec[7:8, 0:1]

    # fc_block: Linear(800,64)+LayerNorm+ReLU (NCHW flatten folded into wfc).
    h3 = jnp.dot(h2.astype(mm), wfc_ref[...],
                 preferred_element_type=f32) + bfc             # (TB, 64)
    h3 = jnp.maximum(_layer_norm(h3, g1, be1), 0.0)

    # v_fc_stack: Linear(64,64)+LayerNorm+Tanh.
    h4 = jnp.dot(h3.astype(mm), wv_ref[...],
                 preferred_element_type=f32) + bv
    h4 = jnp.tanh(_layer_norm(h4, g2, be2))

    # v_head: Linear(64,1) as a lane reduction -> one value per sample row.
    v = jnp.sum(h4 * wh, axis=-1, keepdims=True) + bh          # (TB, 1)
    o_ref[...] = v.astype(o_ref.dtype)


# ----------------------- host-side weight lowering (init) --------------------

def _conv1_full_weight(w1_oihw, scale):
    """Conv2d(4,16,k=4,s=2) VALID on a (16,16,4) NHWC image, lowered to a dense
    (1024, 784) matrix on the flat input p=h*64+w*4+ci; output q=oh*112+ow*16+co.
    `scale` folds the ob/255 into the weight."""
    w1 = np.asarray(w1_oihw, np.float32) * scale               # (16, 4, 4, 4)
    full = np.zeros((16 * 16 * 4, 7 * 7 * 16), np.float32)
    for oh in range(7):
        for ow in range(7):
            q0 = (oh * 7 + ow) * 16
            for kh in range(4):
                for kw in range(4):
                    p0 = ((oh * 2 + kh) * 16 + (ow * 2 + kw)) * 4
                    full[p0:p0 + 4, q0:q0 + 16] = w1[:, :, kh, kw].T
    return full


def _conv2_full_weight(w2_oihw):
    """Conv2d(16,32,k=3,s=1) VALID on the (7,7,16) feature map, lowered to a
    dense (784, 800) matrix (input q1=oh1*112+ow1*16+c1, output
    q2=oh2*160+ow2*32+c2)."""
    w2 = np.asarray(w2_oihw, np.float32)                       # (32, 16, 3, 3)
    full = np.zeros((7 * 7 * 16, 5 * 5 * 32), np.float32)
    for oh in range(5):
        for ow in range(5):
            q0 = (oh * 5 + ow) * 32
            for kh in range(3):
                for kw in range(3):
                    p0 = ((oh + kh) * 7 + (ow + kw)) * 16
                    full[p0:p0 + 16, q0:q0 + 32] = w2[:, :, kh, kw].T
    return full


def prepare_params(raw, mm_dtype=jnp.bfloat16):
    """Lower raw (PyTorch-layout) parameters into the kernel's fused layout."""
    w1f = _conv1_full_weight(raw["W1"], 1.0 / 255.0)                 # (1024, 784)
    w2f = _conv2_full_weight(raw["W2"])                              # (784, 800)
    # Fold the NCHW flatten (f = c*25 + oh*5 + ow) into the FC weight:
    # wfc_full[oh*160 + ow*32 + c, o] = Wfc[o, c*25 + oh*5 + ow]
    wfcf = (np.asarray(raw["Wfc"], np.float32)
            .reshape(64, 32, 5, 5).transpose(2, 3, 1, 0).reshape(800, 64))

    vecs = np.zeros((8, 64), np.float32)
    vecs[0] = np.asarray(raw["bfc"], np.float32)
    vecs[1] = np.asarray(raw["g1"], np.float32)
    vecs[2] = np.asarray(raw["be1"], np.float32)
    vecs[3] = np.asarray(raw["bv"], np.float32)
    vecs[4] = np.asarray(raw["g2"], np.float32)
    vecs[5] = np.asarray(raw["be2"], np.float32)
    vecs[6] = np.asarray(raw["Wh"], np.float32).reshape(64)
    vecs[7, 0] = float(np.asarray(raw["bh"], np.float32).reshape(-1)[0])

    return dict(
        w1=jnp.asarray(w1f, mm_dtype),
        b1=jnp.asarray(np.tile(np.asarray(raw["b1"], np.float32), 49)
                       .reshape(1, 784)),
        w2=jnp.asarray(w2f, mm_dtype),
        b2=jnp.asarray(np.tile(np.asarray(raw["b2"], np.float32), 25)
                       .reshape(1, 800)),
        wfc=jnp.asarray(wfcf, mm_dtype),
        wv=jnp.asarray(np.asarray(raw["Wv"], np.float32).T, mm_dtype),  # x @ W.T
        vecs=jnp.asarray(vecs),
    )


# ------------------------------ forward wrapper -------------------------------

def _pick_block(n):
    """~cdiv(n, 8) samples per grid step (>=8-step grid for v7x core split),
    rounded to a sublane multiple and capped at 256 for MXU M-fill / VMEM."""
    tb = -(-n // 8)
    tb = ((tb + 7) // 8) * 8
    return max(8, min(256, tb))


def value_forward(x_nhwc, params):
    n = x_nhwc.shape[0]
    xf = x_nhwc.reshape(n, -1)                       # (N, 1024), free reshape

    tb = _pick_block(n)
    n_pad = -(-n // tb) * tb
    if n_pad != n:
        xf = jnp.pad(xf, ((0, n_pad - n), (0, 0)))

    weight_args = (params["w1"], params["b1"], params["w2"], params["b2"],
                   params["wfc"], params["wv"], params["vecs"])

    def rep(a):  # whole-array, grid-invariant block (weights resident in VMEM)
        return pl.BlockSpec(a.shape, lambda i: (0,) * a.ndim)

    in_specs = ([pl.BlockSpec((tb, 1024), lambda i: (i, 0))]
                + [rep(a) for a in weight_args])
    out_specs = pl.BlockSpec((tb, 1), lambda i: (i, 0))

    flops = 2 * n_pad * (1024 * 784 + 784 * 800 + 800 * 64 + 64 * 64 + 64)
    bytes_accessed = (int(xf.size) * 4 + n_pad * 4
                      + sum(int(a.size) * a.dtype.itemsize for a in weight_args))
    cost = pl.CostEstimate(flops=flops, transcendentals=70 * n_pad,
                           bytes_accessed=bytes_accessed)

    out = pl.pallas_call(
        value_kernel,
        out_shape=jax.ShapeDtypeStruct((n_pad, 1), jnp.float32),
        grid=(n_pad // tb,),
        in_specs=in_specs,
        out_specs=out_specs,
        compiler_params=pltpu.CompilerParams(
            dimension_semantics=("parallel",),
            vmem_limit_bytes=32 * 1024 * 1024),
        cost_estimate=cost,
    )(xf, *weight_args)
    return out[:n]


# ----------------------------- pure-JAX reference -----------------------------

def reference_forward(x_nhwc, raw):
    x = x_nhwc / 255.0

    def conv(z, w, b, stride):
        y = jax.lax.conv_general_dilated(
            z, w, window_strides=(stride, stride), padding="VALID",
            dimension_numbers=("NHWC", "OIHW", "NHWC"))
        return jax.nn.relu(y + b)

    def ln(z, g, b):
        m = jnp.mean(z, -1, keepdims=True)
        v = jnp.mean((z - m) ** 2, -1, keepdims=True)
        return (z - m) * jax.lax.rsqrt(v + 1e-5) * g + b

    h = conv(x, raw["W1"], raw["b1"], 2)                            # (N,7,7,16)
    h = conv(h, raw["W2"], raw["b2"], 1)                            # (N,5,5,32)
    flat = jnp.transpose(h, (0, 3, 1, 2)).reshape(x.shape[0], -1)   # NCHW flatten
    h3 = jax.nn.relu(ln(flat @ raw["Wfc"].T + raw["bfc"], raw["g1"], raw["be1"]))
    h4 = jnp.tanh(ln(h3 @ raw["Wv"].T + raw["bv"], raw["g2"], raw["be2"]))
    return h4 @ raw["Wh"].T + raw["bh"]


# ------------------------- deterministic init ---------------------------------

def orthogonal_(key, shape, gain):
    """torch.nn.init.orthogonal_ on a (rows, cols) matrix."""
    rows, cols = shape
    a = jax.random.normal(key, (max(rows, cols), min(rows, cols)), jnp.float32)
    q, r = jnp.linalg.qr(a)
    q = q * jnp.sign(jnp.diag(r))
    if rows < cols:
        q = q.T
    return gain * q[:rows, :cols]


if __name__ == "__main__":
    # observation_space.shape = (in_width, in_height, in_chan) = (16, 16, 4)
    in_h, in_w, in_c = 16, 16, 4
    gain = math.sqrt(2.0)

    key = jax.random.PRNGKey(0)
    k_x, k_w1, k_w2, k_wfc, k_wv, k_wh = jax.random.split(key, 6)

    raw = dict(
        W1=orthogonal_(k_w1, (16, in_c * 4 * 4), gain).reshape(16, in_c, 4, 4),
        b1=jnp.zeros((16,), jnp.float32),
        W2=orthogonal_(k_w2, (32, 16 * 3 * 3), gain).reshape(32, 16, 3, 3),
        b2=jnp.zeros((32,), jnp.float32),
        Wfc=orthogonal_(k_wfc, (64, 32 * 5 * 5), gain),            # Linear(800, 64)
        bfc=jnp.zeros((64,), jnp.float32),
        g1=jnp.ones((64,), jnp.float32), be1=jnp.zeros((64,), jnp.float32),
        Wv=orthogonal_(k_wv, (64, 64), 5.0 / 3.0),                 # v_fc Linear(64, 64)
        bv=jnp.zeros((64,), jnp.float32),
        g2=jnp.ones((64,), jnp.float32), be2=jnp.zeros((64,), jnp.float32),
        Wh=orthogonal_(k_wh, (1, 64), 0.01),                       # v_head Linear(64, 1)
        bh=jnp.zeros((1,), jnp.float32),
    )
    params = prepare_params(raw)

    fwd = jax.jit(functools.partial(value_forward, params=params))

    # Small primary check (batch=2): visual observations in [0, 255).
    batch = 2
    x = jax.random.uniform(k_x, (batch, in_h, in_w, in_c), jnp.float32, 0.0, 255.0)
    out = jax.block_until_ready(fwd(x))
    assert out.shape == (batch, 1), out.shape
    assert out.dtype == jnp.float32
    assert bool(jnp.all(jnp.isfinite(out)))
    ref = reference_forward(x, raw)
    np.testing.assert_allclose(np.asarray(out), np.asarray(ref), atol=2e-2, rtol=0.0)

    # Second check exercising batch padding + multi-step grid (N=37 -> TB=8, 5 steps).
    x2 = jax.random.uniform(jax.random.PRNGKey(1), (37, in_h, in_w, in_c),
                            jnp.float32, 0.0, 255.0)
    out2 = jax.block_until_ready(fwd(x2))
    assert out2.shape == (37, 1), out2.shape
    ref2 = reference_forward(x2, raw)
    np.testing.assert_allclose(np.asarray(out2), np.asarray(ref2), atol=2e-2, rtol=0.0)

    print("KERNEL_OK")
</pallas_src>

<mosaic_0001>
module attributes {stable_mosaic.version = 11 : i64} {
  func.func @value_kernel(%arg0: i32, %arg1: memref<8x1024xf32, #tpu.memory_space<vmem>>, %arg2: memref<1024x784xbf16, #tpu.memory_space<vmem>>, %arg3: memref<1x784xf32, #tpu.memory_space<vmem>>, %arg4: memref<784x800xbf16, #tpu.memory_space<vmem>>, %arg5: memref<1x800xf32, #tpu.memory_space<vmem>>, %arg6: memref<800x64xbf16, #tpu.memory_space<vmem>>, %arg7: memref<64x64xbf16, #tpu.memory_space<vmem>>, %arg8: memref<8x64xf32, #tpu.memory_space<vmem>>, %arg9: memref<8x1xf32, #tpu.memory_space<vmem>>) attributes {dimension_semantics = [#tpu.dimension_semantics<parallel>], iteration_bounds = array<i64: 1>, scalar_prefetch = 0 : i64, scratch_operands = 0 : i64, tpu.core_type = #tpu.core_type<tc>, window_params = [{transform_indices = @transform_0, window_bounds = array<i64: 8, 1024>}, {pipeline_mode = #tpu.pipeline_mode<synchronous>, transform_indices = @transform_1, window_bounds = array<i64: 1024, 784>}, {pipeline_mode = #tpu.pipeline_mode<synchronous>, transform_indices = @transform_2, window_bounds = array<i64: 1, 784>}, {pipeline_mode = #tpu.pipeline_mode<synchronous>, transform_indices = @transform_3, window_bounds = array<i64: 784, 800>}, {pipeline_mode = #tpu.pipeline_mode<synchronous>, transform_indices = @transform_4, window_bounds = array<i64: 1, 800>}, {pipeline_mode = #tpu.pipeline_mode<synchronous>, transform_indices = @transform_5, window_bounds = array<i64: 800, 64>}, {pipeline_mode = #tpu.pipeline_mode<synchronous>, transform_indices = @transform_6, window_bounds = array<i64: 64, 64>}, {pipeline_mode = #tpu.pipeline_mode<synchronous>, transform_indices = @transform_7, window_bounds = array<i64: 8, 64>}, {transform_indices = @transform_8, window_bounds = array<i64: 8, 1>}]} {
    %c0 = arith.constant 0 : index
    %c0_0 = arith.constant 0 : index
    %0 = vector.load %arg1[%c0, %c0_0] : memref<8x1024xf32, #tpu.memory_space<vmem>>, vector<8x1024xf32>
    %1 = arith.truncf %0 : vector<8x1024xf32> to vector<8x1024xbf16>
    %c0_1 = arith.constant 0 : index
    %c0_2 = arith.constant 0 : index
    %2 = vector.load %arg2[%c0_1, %c0_2] : memref<1024x784xbf16, #tpu.memory_space<vmem>>, vector<1024x784xbf16>
    %cst = arith.constant dense<0.000000e+00> : vector<8x784xf32>
    %3 = tpu.matmul %1, %2, %cst {dimension_numbers = #tpu.dot_dimension_numbers<[1], [0], [0], [1], [0, 0, 1, 1], [], []>} : vector<8x1024xbf16>, vector<1024x784xbf16>, vector<8x784xf32> -> vector<8x784xf32>
    %c0_3 = arith.constant 0 : index
    %c0_4 = arith.constant 0 : index
    %4 = vector.load %arg3[%c0_3, %c0_4] : memref<1x784xf32, #tpu.memory_space<vmem>>, vector<1x784xf32>
    %5 = vector.broadcast %4 : vector<1x784xf32> to vector<8x784xf32>
    %6 = arith.addf %3, %5 : vector<8x784xf32>
    %cst_5 = arith.constant 0.000000e+00 : f32
    %7 = vector.broadcast %cst_5 : f32 to vector<8x784xf32>
    %8 = arith.maximumf %6, %7 : vector<8x784xf32>
    %9 = arith.truncf %8 : vector<8x784xf32> to vector<8x784xbf16>
    %c0_6 = arith.constant 0 : index
    %c0_7 = arith.constant 0 : index
    %10 = vector.load %arg4[%c0_6, %c0_7] : memref<784x800xbf16, #tpu.memory_space<vmem>>, vector<784x800xbf16>
    %cst_8 = arith.constant dense<0.000000e+00> : vector<8x800xf32>
    %11 = tpu.matmul %9, %10, %cst_8 {dimension_numbers = #tpu.dot_dimension_numbers<[1], [0], [0], [1], [0, 0, 1, 1], [], []>} : vector<8x784xbf16>, vector<784x800xbf16>, vector<8x800xf32> -> vector<8x800xf32>
    %c0_9 = arith.constant 0 : index
    %c0_10 = arith.constant 0 : index
    %12 = vector.load %arg5[%c0_9, %c0_10] : memref<1x800xf32, #tpu.memory_space<vmem>>, vector<1x800xf32>
    %13 = vector.broadcast %12 : vector<1x800xf32> to vector<8x800xf32>
    %14 = arith.addf %11, %13 : vector<8x800xf32>
    %cst_11 = arith.constant 0.000000e+00 : f32
    %15 = vector.broadcast %cst_11 : f32 to vector<8x800xf32>
    %16 = arith.maximumf %14, %15 : vector<8x800xf32>
    %c0_12 = arith.constant 0 : index
    %c0_13 = arith.constant 0 : index
    %17 = vector.load %arg8[%c0_12, %c0_13] : memref<8x64xf32, #tpu.memory_space<vmem>>, vector<8x64xf32>
    %18 = vector.extract_strided_slice %17 {offsets = [0, 0], sizes = [1, 64], strides = [1, 1]} : vector<8x64xf32> to vector<1x64xf32>
    %19 = vector.extract_strided_slice %17 {offsets = [1, 0], sizes = [1, 64], strides = [1, 1]} : vector<8x64xf32> to vector<1x64xf32>
    %20 = vector.extract_strided_slice %17 {offsets = [2, 0], sizes = [1, 64], strides = [1, 1]} : vector<8x64xf32> to vector<1x64xf32>
    %21 = vector.extract_strided_slice %17 {offsets = [3, 0], sizes = [1, 64], strides = [1, 1]} : vector<8x64xf32> to vector<1x64xf32>
    %22 = vector.extract_strided_slice %17 {offsets = [4, 0], sizes = [1, 64], strides = [1, 1]} : vector<8x64xf32> to vector<1x64xf32>
    %23 = vector.extract_strided_slice %17 {offsets = [5, 0], sizes = [1, 64], strides = [1, 1]} : vector<8x64xf32> to vector<1x64xf32>
    %24 = vector.extract_strided_slice %17 {offsets = [6, 0], sizes = [1, 64], strides = [1, 1]} : vector<8x64xf32> to vector<1x64xf32>
    %25 = vector.extract_strided_slice %17 {offsets = [7, 0], sizes = [1, 1], strides = [1, 1]} : vector<8x64xf32> to vector<1x1xf32>
    %26 = arith.truncf %16 : vector<8x800xf32> to vector<8x800xbf16>
    %c0_14 = arith.constant 0 : index
    %c0_15 = arith.constant 0 : index
    %27 = vector.load %arg6[%c0_14, %c0_15] : memref<800x64xbf16, #tpu.memory_space<vmem>>, vector<800x64xbf16>
    %cst_16 = arith.constant dense<0.000000e+00> : vector<8x64xf32>
    %28 = tpu.matmul %26, %27, %cst_16 {dimension_numbers = #tpu.dot_dimension_numbers<[1], [0], [0], [1], [0, 0, 1, 1], [], []>} : vector<8x800xbf16>, vector<800x64xbf16>, vector<8x64xf32> -> vector<8x64xf32>
    %29 = vector.broadcast %18 : vector<1x64xf32> to vector<8x64xf32>
    %30 = arith.addf %28, %29 : vector<8x64xf32>
    %cst_17 = arith.constant dense<0.000000e+00> : vector<8xf32>
    %31 = vector.multi_reduction <add>, %30, %cst_17 [1] : vector<8x64xf32> to vector<8xf32>
    %32 = vector.shape_cast %31 : vector<8xf32> to vector<8x1xf32>
    %cst_18 = arith.constant 6.400000e+01 : f32
    %33 = vector.broadcast %cst_18 : f32 to vector<8x1xf32>
    %34 = arith.divf %32, %33 : vector<8x1xf32>
    %35 = vector.broadcast %34 : vector<8x1xf32> to vector<8x64xf32>
    %36 = arith.subf %30, %35 : vector<8x64xf32>
    %37 = arith.mulf %36, %36 : vector<8x64xf32>
    %cst_19 = arith.constant dense<0.000000e+00> : vector<8xf32>
    %38 = vector.multi_reduction <add>, %37, %cst_19 [1] : vector<8x64xf32> to vector<8xf32>
    %39 = vector.shape_cast %38 : vector<8xf32> to vector<8x1xf32>
    %cst_20 = arith.constant 6.400000e+01 : f32
    %40 = vector.broadcast %cst_20 : f32 to vector<8x1xf32>
    %41 = arith.divf %39, %40 : vector<8x1xf32>
    %42 = vector.broadcast %34 : vector<8x1xf32> to vector<8x64xf32>
    %43 = arith.subf %30, %42 : vector<8x64xf32>
    %cst_21 = arith.constant 9.99999974E-6 : f32
    %44 = vector.broadcast %cst_21 : f32 to vector<8x1xf32>
    %45 = arith.addf %41, %44 : vector<8x1xf32>
    %46 = math.rsqrt %45 : vector<8x1xf32>
    %47 = vector.broadcast %46 : vector<8x1xf32> to vector<8x64xf32>
    %48 = arith.mulf %43, %47 : vector<8x64xf32>
    %49 = vector.broadcast %19 : vector<1x64xf32> to vector<8x64xf32>
    %50 = arith.mulf %48, %49 : vector<8x64xf32>
    %51 = vector.broadcast %20 : vector<1x64xf32> to vector<8x64xf32>
    %52 = arith.addf %50, %51 : vector<8x64xf32>
    %cst_22 = arith.constant 0.000000e+00 : f32
    %53 = vector.broadcast %cst_22 : f32 to vector<8x64xf32>
    %54 = arith.maximumf %52, %53 : vector<8x64xf32>
    %55 = arith.truncf %54 : vector<8x64xf32> to vector<8x64xbf16>
    %c0_23 = arith.constant 0 : index
    %c0_24 = arith.constant 0 : index
    %56 = vector.load %arg7[%c0_23, %c0_24] : memref<64x64xbf16, #tpu.memory_space<vmem>>, vector<64x64xbf16>
    %cst_25 = arith.constant dense<0.000000e+00> : vector<8x64xf32>
    %57 = tpu.matmul %55, %56, %cst_25 {dimension_numbers = #tpu.dot_dimension_numbers<[1], [0], [0], [1], [0, 0, 1, 1], [], []>} : vector<8x64xbf16>, vector<64x64xbf16>, vector<8x64xf32> -> vector<8x64xf32>
    %58 = vector.broadcast %21 : vector<1x64xf32> to vector<8x64xf32>
    %59 = arith.addf %57, %58 : vector<8x64xf32>
    %cst_26 = arith.constant dense<0.000000e+00> : vector<8xf32>
    %60 = vector.multi_reduction <add>, %59, %cst_26 [1] : vector<8x64xf32> to vector<8xf32>
    %61 = vector.shape_cast %60 : vector<8xf32> to vector<8x1xf32>
    %cst_27 = arith.constant 6.400000e+01 : f32
    %62 = vector.broadcast %cst_27 : f32 to vector<8x1xf32>
    %63 = arith.divf %61, %62 : vector<8x1xf32>
    %64 = vector.broadcast %63 : vector<8x1xf32> to vector<8x64xf32>
    %65 = arith.subf %59, %64 : vector<8x64xf32>
    %66 = arith.mulf %65, %65 : vector<8x64xf32>
    %cst_28 = arith.constant dense<0.000000e+00> : vector<8xf32>
    %67 = vector.multi_reduction <add>, %66, %cst_28 [1] : vector<8x64xf32> to vector<8xf32>
    %68 = vector.shape_cast %67 : vector<8xf32> to vector<8x1xf32>
    %cst_29 = arith.constant 6.400000e+01 : f32
    %69 = vector.broadcast %cst_29 : f32 to vector<8x1xf32>
    %70 = arith.divf %68, %69 : vector<8x1xf32>
    %71 = vector.broadcast %63 : vector<8x1xf32> to vector<8x64xf32>
    %72 = arith.subf %59, %71 : vector<8x64xf32>
    %cst_30 = arith.constant 9.99999974E-6 : f32
    %73 = vector.broadcast %cst_30 : f32 to vector<8x1xf32>
    %74 = arith.addf %70, %73 : vector<8x1xf32>
    %75 = math.rsqrt %74 : vector<8x1xf32>
    %76 = vector.broadcast %75 : vector<8x1xf32> to vector<8x64xf32>
    %77 = arith.mulf %72, %76 : vector<8x64xf32>
    %78 = vector.broadcast %22 : vector<1x64xf32> to vector<8x64xf32>
    %79 = arith.mulf %77, %78 : vector<8x64xf32>
    %80 = vector.broadcast %23 : vector<1x64xf32> to vector<8x64xf32>
    %81 = arith.addf %79, %80 : vector<8x64xf32>
    %82 = math.tanh %81 : vector<8x64xf32>
    %83 = vector.broadcast %24 : vector<1x64xf32> to vector<8x64xf32>
    %84 = arith.mulf %82, %83 : vector<8x64xf32>
    %cst_31 = arith.constant dense<0.000000e+00> : vector<8xf32>
    %85 = vector.multi_reduction <add>, %84, %cst_31 [1] : vector<8x64xf32> to vector<8xf32>
    %86 = vector.shape_cast %85 : vector<8xf32> to vector<8x1xf32>
    %87 = vector.broadcast %25 : vector<1x1xf32> to vector<8x1xf32>
    %88 = arith.addf %86, %87 : vector<8x1xf32>
    %c0_32 = arith.constant 0 : index
    %c0_33 = arith.constant 0 : index
    %89 = vector.load %arg9[%c0_32, %c0_33] : memref<8x1xf32, #tpu.memory_space<vmem>>, vector<8x1xf32>
    tpu.vector_store %arg9[%c0_32, %c0_33], %88 {strides = array<i32>} : memref<8x1xf32, #tpu.memory_space<vmem>>, vector<8x1xf32>,
    return
  }
  func.func @transform_0(%arg0: i32) -> (i32, i32) {
    %c0_i32 = arith.constant 0 : i32
    %c0_i32_0 = arith.constant 0 : i32
    return %arg0, %c0_i32 : i32, i32
  }
  func.func @transform_1(%arg0: i32) -> (i32, i32) {
    %c0_i32 = arith.constant 0 : i32
    %c0_i32_0 = arith.constant 0 : i32
    %c0_i32_1 = arith.constant 0 : i32
    return %c0_i32, %c0_i32_0 : i32, i32
  }
  func.func @transform_2(%arg0: i32) -> (i32, i32) {
    %c0_i32 = arith.constant 0 : i32
    %c0_i32_0 = arith.constant 0 : i32
    %c0_i32_1 = arith.constant 0 : i32
    return %c0_i32, %c0_i32_0 : i32, i32
  }
  func.func @transform_3(%arg0: i32) -> (i32, i32) {
    %c0_i32 = arith.constant 0 : i32
    %c0_i32_0 = arith.constant 0 : i32
    %c0_i32_1 = arith.constant 0 : i32
    return %c0_i32, %c0_i32_0 : i32, i32
  }
  func.func @transform_4(%arg0: i32) -> (i32, i32) {
    %c0_i32 = arith.constant 0 : i32
    %c0_i32_0 = arith.constant 0 : i32
    %c0_i32_1 = arith.constant 0 : i32
    return %c0_i32, %c0_i32_0 : i32, i32
  }
  func.func @transform_5(%arg0: i32) -> (i32, i32) {
    %c0_i32 = arith.constant 0 : i32
    %c0_i32_0 = arith.constant 0 : i32
    %c0_i32_1 = arith.constant 0 : i32
    return %c0_i32, %c0_i32_0 : i32, i32
  }
  func.func @transform_6(%arg0: i32) -> (i32, i32) {
    %c0_i32 = arith.constant 0 : i32
    %c0_i32_0 = arith.constant 0 : i32
    %c0_i32_1 = arith.constant 0 : i32
    return %c0_i32, %c0_i32_0 : i32, i32
  }
  func.func @transform_7(%arg0: i32) -> (i32, i32) {
    %c0_i32 = arith.constant 0 : i32
    %c0_i32_0 = arith.constant 0 : i32
    %c0_i32_1 = arith.constant 0 : i32
    return %c0_i32, %c0_i32_0 : i32, i32
  }
  func.func @transform_8(%arg0: i32) -> (i32, i32) {
    %c0_i32 = arith.constant 0 : i32
    %c0_i32_0 = arith.constant 0 : i32
    return %arg0, %c0_i32 : i32, i32
  }
}

</mosaic_0001>

<llo_original>
// kernel: value_forward.1
$region0: #{value_forward.1}
  #allocation0 [shape = 'u32[]', space=smem, size = 0x4, offset = 0x4, fixed_abs, tag = 'smem constant byte address 0x4 - core index']
  #allocation1 [shape = 'u32[144,128]{1,0:T(1,128)}', space=vmem, size = 0x12000, scoped, tag = 'internal scratch']
  %s0 = inlined_call_operand.vmem [shape: f32[8,1024], index: 0, kind: input, shape index: {}]
  %s1 = inlined_call_operand.hbm [shape: bf16[1024,784], index: 1, kind: input, shape index: {}]
  %s2 = inlined_call_operand.vmem [shape: f32[1,784], index: 2, kind: input, shape index: {}]
  %s3 = inlined_call_operand.hbm [shape: bf16[784,800], index: 3, kind: input, shape index: {}]
  %s4 = inlined_call_operand.vmem [shape: f32[1,800], index: 4, kind: input, shape index: {}]
  %s5 = inlined_call_operand.hbm [shape: bf16[800,64], index: 5, kind: input, shape index: {}]
  %s6 = inlined_call_operand.hbm [shape: bf16[64,64], index: 6, kind: input, shape index: {}]
  %s7 = inlined_call_operand.hbm [shape: f32[8,64], index: 7, kind: input, shape index: {}]
  %s8 = inlined_call_operand.vmem [shape: f32[8,1], index: 8, kind: output, shape index: {}]
  %s9 = sld [smem:[#allocation0]]
  $region62: #{value_forward.1} parent=0
    _
  %s11 = ssub.s32 1, %s9
  %s12 = scalar_select 0, %s11, %s9
  $region1: #{value_forward.1} parent=0
    #allocation2 [shape = 'u8[1835008]{0}', space=vmem, size = 0x1c0000, scoped, tag = 'input window, operand 1, single buffered']
    #allocation3 [shape = 's32[1]{0}', space=sflag, size = 0x4, scoped, tag = 'scoped memory for value_forward.1']
    #allocation4 [shape = 'u8[1404928]{0}', space=vmem, size = 0x157000, scoped, tag = 'input window, operand 3, single buffered']
    #allocation5 [shape = 's32[1]{0}', space=sflag, size = 0x4, scoped, tag = 'scoped memory for value_forward.1']
    #allocation6 [shape = 'u8[204800]{0}', space=vmem, size = 0x32000, scoped, tag = 'input window, operand 5, single buffered']
    #allocation7 [shape = 'u8[16384]{0}', space=vmem, size = 0x4000, scoped, tag = 'input window, operand 6, single buffered']
    #allocation8 [shape = 's32[1]{0}', space=sflag, size = 0x4, scoped, tag = 'scoped memory for value_forward.1']
    #allocation9 [shape = 'u8[4096]{0}', space=vmem, size = 0x1000, scoped, tag = 'input window, operand 7, single buffered']
    %13 = vsyncpa [#allocation3], 0
    %14 = vsyncpa [#allocation5], 0
    %15 = vsyncpa [#allocation8], 0
    // Predicated region
    $region2: #{value_forward.1} parent=1 // pred_check
      _
    $region3: #{value_forward.1} parent=1 // pred_check_branch
      %17 = sbr.rel (0) target = $region5
    $region4: #{value_forward.1} parent=1 // pred_region
      _
    $region5: #{value_forward.1} parent=1 // pred_fallthru
      _
    // Predicated region
    $region6: #{value_forward.1} parent=1 // pred_check
      _
    $region7: #{value_forward.1} parent=1 // pred_check_branch
      %19 = sbr.rel (0) target = $region9
    $region8: #{value_forward.1} parent=1 // pred_region
      %s21 = ssub.s32 57344, 57344
      %22 = vsyncadd [#allocation3], %s21
      %s23 = sshll.u32 [#allocation2], 4
      %s24 = int_to_ptr.vmem [resolvable:$true] %s23
      %29 = dma.hbm_to_vmem [thread:$0]  %s1, 57344, %s24, [#allocation3], 448, 448, 28
    $region9: #{value_forward.1} parent=1 // pred_fallthru
      _
    // Predicated region
    $region10: #{value_forward.1} parent=1 // pred_check
      _
    $region11: #{value_forward.1} parent=1 // pred_check_branch
      %31 = sbr.rel (0) target = $region13
    $region12: #{value_forward.1} parent=1 // pred_region
      _
    $region13: #{value_forward.1} parent=1 // pred_fallthru
      _
    // Predicated region
    $region14: #{value_forward.1} parent=1 // pred_check
      _
    $region15: #{value_forward.1} parent=1 // pred_check_branch
      %33 = sbr.rel (0) target = $region17
    $region16: #{value_forward.1} parent=1 // pred_region
      %s35 = ssub.s32 43904, 43904
      %36 = vsyncadd [#allocation5], %s35
      %s37 = sshll.u32 [#allocation4], 4
      %s38 = int_to_ptr.vmem [resolvable:$true] %s37
      %43 = dma.hbm_to_vmem [thread:$0]  %s3, 43904, %s38, [#allocation5], 448, 448, 28
    $region17: #{value_forward.1} parent=1 // pred_fallthru
      _
    // Predicated region
    $region18: #{value_forward.1} parent=1 // pred_check
      _
    $region19: #{value_forward.1} parent=1 // pred_check_branch
      %45 = sbr.rel (0) target = $region21
    $region20: #{value_forward.1} parent=1 // pred_region
      _
    $region21: #{value_forward.1} parent=1 // pred_fallthru
      _
    // Predicated region
    $region22: #{value_forward.1} parent=1 // pred_check
      _
    $region23: #{value_forward.1} parent=1 // pred_check_branch
      %47 = sbr.rel (0) target = $region25
    $region24: #{value_forward.1} parent=1 // pred_region
      %s49 = ssub.s32 6400, 6400
      %50 = vsyncadd [#allocation5], %s49
      %s51 = sshll.u32 [#allocation6], 4
      %s52 = int_to_ptr.vmem [resolvable:$true] %s51
      %57 = dma.hbm_to_vmem [thread:$0]  %s5, 6400, %s52, [#allocation5], 64, 64, 4
    $region25: #{value_forward.1} parent=1 // pred_fallthru
      _
    // Predicated region
    $region26: #{value_forward.1} parent=1 // pred_check
      _
    $region27: #{value_forward.1} parent=1 // pred_check_branch
      %59 = sbr.rel (0) target = $region29
    $region28: #{value_forward.1} parent=1 // pred_region
      %s61 = ssub.s32 512, 512
      %62 = vsyncadd [#allocation8], %s61
      %s63 = sshll.u32 [#allocation7], 4
      %s64 = int_to_ptr.vmem [resolvable:$true] %s63
      %69 = dma.hbm_to_vmem [thread:$0]  %s6, 512, %s64, [#allocation8], 64, 64, 4
    $region29: #{value_forward.1} parent=1 // pred_fallthru
      _
    // Predicated region
    $region30: #{value_forward.1} parent=1 // pred_check
      _
    $region31: #{value_forward.1} parent=1 // pred_check_branch
      %71 = sbr.rel (0) target = $region33
    $region32: #{value_forward.1} parent=1 // pred_region
      %s73 = ssub.s32 128, 128
      %74 = vsyncadd [#allocation8], %s73
      %s76 = sshll.u32 [#allocation9], 4
      %s77 = int_to_ptr.vmem [resolvable:$true] %s76
      %79 = dma.hbm_to_vmem [thread:$0]  %s7, 128, %s77, [#allocation8]
    $region33: #{value_forward.1} parent=1 // pred_fallthru
      _
    // Predicated region
    $region34: #{value_forward.1} parent=1 // pred_check
      _
    $region35: #{value_forward.1} parent=1 // pred_check_branch
      %81 = sbr.rel (0) target = $region37
    $region36: #{value_forward.1} parent=1 // pred_region
      %82 = dma.done [#allocation3], 57344
    $region37: #{value_forward.1} parent=1 // pred_fallthru
      _
    // Predicated region
    $region38: #{value_forward.1} parent=1 // pred_check
      _
    $region39: #{value_forward.1} parent=1 // pred_check_branch
      %84 = sbr.rel (0) target = $region41
    $region40: #{value_forward.1} parent=1 // pred_region
      %85 = dma.done [#allocation5], 43904
    $region41: #{value_forward.1} parent=1 // pred_fallthru
      _
    // Predicated region
    $region42: #{value_forward.1} parent=1 // pred_check
      _
    $region43: #{value_forward.1} parent=1 // pred_check_branch
      %87 = sbr.rel (0) target = $region45
    $region44: #{value_forward.1} parent=1 // pred_region
      %88 = dma.done [#allocation5], 6400
    $region45: #{value_forward.1} parent=1 // pred_fallthru
      _
    // Predicated region
    $region46: #{value_forward.1} parent=1 // pred_check
      _
    $region47: #{value_forward.1} parent=1 // pred_check_branch
      %90 = sbr.rel (0) target = $region49
    $region48: #{value_forward.1} parent=1 // pred_region
      %91 = dma.done [#allocation8], 512
    $region49: #{value_forward.1} parent=1 // pred_fallthru
      _
    // Predicated region
    $region50: #{value_forward.1} parent=1 // pred_check
      _
    $region51: #{value_forward.1} parent=1 // pred_check_branch
      %93 = sbr.rel (0) target = $region53
    $region52: #{value_forward.1} parent=1 // pred_region
      %94 = dma.done [#allocation8], 128
    $region53: #{value_forward.1} parent=1 // pred_fallthru
      _
    %v96 = vld [vmem:[%s0] sm:$0xff]
    %v97 = vld [vmem:[%s0 + $0x8] sm:$0xff]
    %v98 = vld [vmem:[%s0 + $0x10] sm:$0xff]
    %v99 = vld [vmem:[%s0 + $0x18] sm:$0xff]
    %v100 = vld [vmem:[%s0 + $0x20] sm:$0xff]
    %v101 = vld [vmem:[%s0 + $0x28] sm:$0xff]
    %v102 = vld [vmem:[%s0 + $0x30] sm:$0xff]
    %v103 = vld [vmem:[%s0 + $0x38] sm:$0xff]
    %v104 = vpack.c.bf16 %v96, %v96
    %v105 = vpack.c.bf16 %v97, %v97
    %v106 = vpack.c.bf16 %v98, %v98
    %v107 = vpack.c.bf16 %v99, %v99
    %v108 = vpack.c.bf16 %v100, %v100
    %v109 = vpack.c.bf16 %v101, %v101
    %v110 = vpack.c.bf16 %v102, %v102
    %v111 = vpack.c.bf16 %v103, %v103
    %v112 = vld [vmem:[#allocation2] sm:$0xff]
    %v113 = vld [vmem:[#allocation2 + $0x8] sm:$0xff]
    %v114 = vld [vmem:[#allocation2 + $0x10] sm:$0xff]
    %v115 = vld [vmem:[#allocation2 + $0x18] sm:$0xf]
    %v116 = vld [vmem:[#allocation2 + $0x1c] sm:$0xff]
    %v117 = vld [vmem:[#allocation2 + $0x24] sm:$0xff]
    %v118 = vld [vmem:[#allocation2 + $0x2c] sm:$0xff]
    %v119 = vld [vmem:[#allocation2 + $0x34] sm:$0xf]
    %v120 = vld [vmem:[#allocation2 + $0x38] sm:$0xff]
    %v121 = vld [vmem:[#allocation2 + $0x40] sm:$0xff]
    %v122 = vld [vmem:[#allocation2 + $0x48] sm:$0xff]
    %v123 = vld [vmem:[#allocation2 + $0x50] sm:$0xf]
    %v124 = vld [vmem:[#allocation2 + $0x54] sm:$0xff]
    %v125 = vld [vmem:[#allocation2 + $0x5c] sm:$0xff]
    %v126 = vld [vmem:[#allocation2 + $0x64] sm:$0xff]
    %v127 = vld [vmem:[#allocation2 + $0x6c] sm:$0xf]
    %v128 = vld [vmem:[#allocation2 + $0x70] sm:$0xff]
    %v129 = vld [vmem:[#allocation2 + $0x78] sm:$0xff]
    %v130 = vld [vmem:[#allocation2 + $0x80] sm:$0xff]
    %v131 = vld [vmem:[#allocation2 + $0x88] sm:$0xf]
    %v132 = vld [vmem:[#allocation2 + $0x8c] sm:$0xff]
    %v133 = vld [vmem:[#allocation2 + $0x94] sm:$0xff]
    %v134 = vld [vmem:[#allocation2 + $0x9c] sm:$0xff]
    %v135 = vld [vmem:[#allocation2 + $0xa4] sm:$0xf]
    %v136 = vld [vmem:[#allocation2 + $0xa8] sm:$0xff]
    %v137 = vld [vmem:[#allocation2 + $0xb0] sm:$0xff]
    %v138 = vld [vmem:[#allocation2 + $0xb8] sm:$0xff]
    %v139 = vld [vmem:[#allocation2 + $0xc0] sm:$0xf]
    %v140 = vld [vmem:[#allocation2 + $0xc4] sm:$0xff]
    %v141 = vld [vmem:[#allocation2 + $0xcc] sm:$0xff]
    %v142 = vld [vmem:[#allocation2 + $0xd4] sm:$0xff]
    %v143 = vld [vmem:[#allocation2 + $0xdc] sm:$0xf]
    %v144 = vld [vmem:[#allocation2 + $0xe0] sm:$0xff]
    %v145 = vld [vmem:[#allocation2 + $0xe8] sm:$0xff]
    %v146 = vld [vmem:[#allocation2 + $0xf0] sm:$0xff]
    %v147 = vld [vmem:[#allocation2 + $0xf8] sm:$0xf]
    %v148 = vld [vmem:[#allocation2 + $0xfc] sm:$0xff]
    %v149 = vld [vmem:[#allocation2 + $0x104] sm:$0xff]
    %v150 = vld [vmem:[#allocation2 + $0x10c] sm:$0xff]
    %v151 = vld [vmem:[#allocation2 + $0x114] sm:$0xf]
    %v152 = vld [vmem:[#allocation2 + $0x118] sm:$0xff]
    %v153 = vld [vmem:[#allocation2 + $0x120] sm:$0xff]
    %v154 = vld [vmem:[#allocation2 + $0x128] sm:$0xff]
    %v155 = vld [vmem:[#allocation2 + $0x130] sm:$0xf]
    %v156 = vld [vmem:[#allocation2 + $0x134] sm:$0xff]
    %v157 = vld [vmem:[#allocation2 + $0x13c] sm:$0xff]
    %v158 = vld [vmem:[#allocation2 + $0x144] sm:$0xff]
    %v159 = vld [vmem:[#allocation2 + $0x14c] sm:$0xf]
    %v160 = vld [vmem:[#allocation2 + $0x150] sm:$0xff]
    %v161 = vld [vmem:[#allocation2 + $0x158] sm:$0xff]
    %v162 = vld [vmem:[#allocation2 + $0x160] sm:$0xff]
    %v163 = vld [vmem:[#allocation2 + $0x168] sm:$0xf]
    %v164 = vld [vmem:[#allocation2 + $0x16c] sm:$0xff]
    %v165 = vld [vmem:[#allocation2 + $0x174] sm:$0xff]
    %v166 = vld [vmem:[#allocation2 + $0x17c] sm:$0xff]
    %v167 = vld [vmem:[#allocation2 + $0x184] sm:$0xf]
    %v168 = vld [vmem:[#allocation2 + $0x188] sm:$0xff]
    %v169 = vld [vmem:[#allocation2 + $0x190] sm:$0xff]
    %v170 = vld [vmem:[#allocation2 + $0x198] sm:$0xff]
    %v171 = vld [vmem:[#allocation2 + $0x1a0] sm:$0xf]
    %v172 = vld [vmem:[#allocation2 + $0x1a4] sm:$0xff]
    %v173 = vld [vmem:[#allocation2 + $0x1ac] sm:$0xff]
    %v174 = vld [vmem:[#allocation2 + $0x1b4] sm:$0xff]
    %v175 = vld [vmem:[#allocation2 + $0x1bc] sm:$0xf]
    %v176 = vld [vmem:[#allocation2 + $0x1c0] sm:$0xff]
    %v177 = vld [vmem:[#allocation2 + $0x1c8] sm:$0xff]
    %v178 = vld [vmem:[#allocation2 + $0x1d0] sm:$0xff]
    %v179 = vld [vmem:[#allocation2 + $0x1d8] sm:$0xf]
    %v180 = vld [vmem:[#allocation2 + $0x1dc] sm:$0xff]
    %v181 = vld [vmem:[#allocation2 + $0x1e4] sm:$0xff]
    %v182 = vld [vmem:[#allocation2 + $0x1ec] sm:$0xff]
    %v183 = vld [vmem:[#allocation2 + $0x1f4] sm:$0xf]
    %v184 = vld [vmem:[#allocation2 + $0x1f8] sm:$0xff]
    %v185 = vld [vmem:[#allocation2 + $0x200] sm:$0xff]
    %v186 = vld [vmem:[#allocation2 + $0x208] sm:$0xff]
    %v187 = vld [vmem:[#allocation2 + $0x210] sm:$0xf]
    %v188 = vld [vmem:[#allocation2 + $0x214] sm:$0xff]
    %v189 = vld [vmem:[#allocation2 + $0x21c] sm:$0xff]
    %v190 = vld [vmem:[#allocation2 + $0x224] sm:$0xff]
    %v191 = vld [vmem:[#allocation2 + $0x22c] sm:$0xf]
    %v192 = vld [vmem:[#allocation2 + $0x230] sm:$0xff]
    %v193 = vld [vmem:[#allocation2 + $0x238] sm:$0xff]
    %v194 = vld [vmem:[#allocation2 + $0x240] sm:$0xff]
    %v195 = vld [vmem:[#allocation2 + $0x248] sm:$0xf]
    %v196 = vld [vmem:[#allocation2 + $0x24c] sm:$0xff]
    %v197 = vld [vmem:[#allocation2 + $0x254] sm:$0xff]
    %v198 = vld [vmem:[#allocation2 + $0x25c] sm:$0xff]
    %v199 = vld [vmem:[#allocation2 + $0x264] sm:$0xf]
    %v200 = vld [vmem:[#allocation2 + $0x268] sm:$0xff]
    %v201 = vld [vmem:[#allocation2 + $0x270] sm:$0xff]
    %v202 = vld [vmem:[#allocation2 + $0x278] sm:$0xff]
    %v203 = vld [vmem:[#allocation2 + $0x280] sm:$0xf]
    %v204 = vld [vmem:[#allocation2 + $0x284] sm:$0xff]
    %v205 = vld [vmem:[#allocation2 + $0x28c] sm:$0xff]
    %v206 = vld [vmem:[#allocation2 + $0x294] sm:$0xff]
    %v207 = vld [vmem:[#allocation2 + $0x29c] sm:$0xf]
    %v208 = vld [vmem:[#allocation2 + $0x2a0] sm:$0xff]
    %v209 = vld [vmem:[#allocation2 + $0x2a8] sm:$0xff]
    %v210 = vld [vmem:[#allocation2 + $0x2b0] sm:$0xff]
    %v211 = vld [vmem:[#allocation2 + $0x2b8] sm:$0xf]
    %v212 = vld [vmem:[#allocation2 + $0x2bc] sm:$0xff]
    %v213 = vld [vmem:[#allocation2 + $0x2c4] sm:$0xff]
    %v214 = vld [vmem:[#allocation2 + $0x2cc] sm:$0xff]
    %v215 = vld [vmem:[#allocation2 + $0x2d4] sm:$0xf]
    %v216 = vld [vmem:[#allocation2 + $0x2d8] sm:$0xff]
    %v217 = vld [vmem:[#allocation2 + $0x2e0] sm:$0xff]
    %v218 = vld [vmem:[#allocation2 + $0x2e8] sm:$0xff]
    %v219 = vld [vmem:[#allocation2 + $0x2f0] sm:$0xf]
    %v220 = vld [vmem:[#allocation2 + $0x2f4] sm:$0xff]
    %v221 = vld [vmem:[#allocation2 + $0x2fc] sm:$0xff]
    %v222 = vld [vmem:[#allocation2 + $0x304] sm:$0xff]
    %v223 = vld [vmem:[#allocation2 + $0x30c] sm:$0xf]
    %v224 = vld [vmem:[#allocation2 + $0x310] sm:$0xff]
    %v225 = vld [vmem:[#allocation2 + $0x318] sm:$0xff]
    %v226 = vld [vmem:[#allocation2 + $0x320] sm:$0xff]
    %v227 = vld [vmem:[#allocation2 + $0x328] sm:$0xf]
    %v228 = vld [vmem:[#allocation2 + $0x32c] sm:$0xff]
    %v229 = vld [vmem:[#allocation2 + $0x334] sm:$0xff]
    %v230 = vld [vmem:[#allocation2 + $0x33c] sm:$0xff]
    %v231 = vld [vmem:[#allocation2 + $0x344] sm:$0xf]
    %v232 = vld [vmem:[#allocation2 + $0x348] sm:$0xff]
    %v233 = vld [vmem:[#allocation2 + $0x350] sm:$0xff]
    %v234 = vld [vmem:[#allocation2 + $0x358] sm:$0xff]
    %v235 = vld [vmem:[#allocation2 + $0x360] sm:$0xf]
    %v236 = vld [vmem:[#allocation2 + $0x364] sm:$0xff]
    %v237 = vld [vmem:[#allocation2 + $0x36c] sm:$0xff]
    %v238 = vld [vmem:[#allocation2 + $0x374] sm:$0xff]
    %v239 = vld [vmem:[#allocation2 + $0x37c] sm:$0xf]
    %v240 = vld [vmem:[#allocation2 + $0x380] sm:$0xff]
    %v241 = vld [vmem:[#allocation2 + $0x388] sm:$0xff]
    %v242 = vld [vmem:[#allocation2 + $0x390] sm:$0xff]
    %v243 = vld [vmem:[#allocation2 + $0x398] sm:$0xf]
    %v244 = vld [vmem:[#allocation2 + $0x39c] sm:$0xff]
    %v245 = vld [vmem:[#allocation2 + $0x3a4] sm:$0xff]
    %v246 = vld [vmem:[#allocation2 + $0x3ac] sm:$0xff]
    %v247 = vld [vmem:[#allocation2 + $0x3b4] sm:$0xf]
    %v248 = vld [vmem:[#allocation2 + $0x3b8] sm:$0xff]
    %v249 = vld [vmem:[#allocation2 + $0x3c0] sm:$0xff]
    %v250 = vld [vmem:[#allocation2 + $0x3c8] sm:$0xff]
    %v251 = vld [vmem:[#allocation2 + $0x3d0] sm:$0xf]
    %v252 = vld [vmem:[#allocation2 + $0x3d4] sm:$0xff]
    %v253 = vld [vmem:[#allocation2 + $0x3dc] sm:$0xff]
    %v254 = vld [vmem:[#allocation2 + $0x3e4] sm:$0xff]
    %v255 = vld [vmem:[#allocation2 + $0x3ec] sm:$0xf]
    %v256 = vld [vmem:[#allocation2 + $0x3f0] sm:$0xff]
    %v257 = vld [vmem:[#allocation2 + $0x3f8] sm:$0xff]
    %v258 = vld [vmem:[#allocation2 + $0x400] sm:$0xff]
    %v259 = vld [vmem:[#allocation2 + $0x408] sm:$0xf]
    %v260 = vld [vmem:[#allocation2 + $0x40c] sm:$0xff]
    %v261 = vld [vmem:[#allocation2 + $0x414] sm:$0xff]
    %v262 = vld [vmem:[#allocation2 + $0x41c] sm:$0xff]
    %v263 = vld [vmem:[#allocation2 + $0x424] sm:$0xf]
    %v264 = vld [vmem:[#allocation2 + $0x428] sm:$0xff]
    %v265 = vld [vmem:[#allocation2 + $0x430] sm:$0xff]
    %v266 = vld [vmem:[#allocation2 + $0x438] sm:$0xff]
    %v267 = vld [vmem:[#allocation2 + $0x440] sm:$0xf]
    %v268 = vld [vmem:[#allocation2 + $0x444] sm:$0xff]
    %v269 = vld [vmem:[#allocation2 + $0x44c] sm:$0xff]
    %v270 = vld [vmem:[#allocation2 + $0x454] sm:$0xff]
    %v271 = vld [vmem:[#allocation2 + $0x45c] sm:$0xf]
    %v272 = vld [vmem:[#allocation2 + $0x460] sm:$0xff]
    %v273 = vld [vmem:[#allocation2 + $0x468] sm:$0xff]
    %v274 = vld [vmem:[#allocation2 + $0x470] sm:$0xff]
    %v275 = vld [vmem:[#allocation2 + $0x478] sm:$0xf]
    %v276 = vld [vmem:[#allocation2 + $0x47c] sm:$0xff]
    %v277 = vld [vmem:[#allocation2 + $0x484] sm:$0xff]
    %v278 = vld [vmem:[#allocation2 + $0x48c] sm:$0xff]
    %v279 = vld [vmem:[#allocation2 + $0x494] sm:$0xf]
    %v280 = vld [vmem:[#allocation2 + $0x498] sm:$0xff]
    %v281 = vld [vmem:[#allocation2 + $0x4a0] sm:$0xff]
    %v282 = vld [vmem:[#allocation2 + $0x4a8] sm:$0xff]
    %v283 = vld [vmem:[#allocation2 + $0x4b0] sm:$0xf]
    %v284 = vld [vmem:[#allocation2 + $0x4b4] sm:$0xff]
    %v285 = vld [vmem:[#allocation2 + $0x4bc] sm:$0xff]
    %v286 = vld [vmem:[#allocation2 + $0x4c4] sm:$0xff]
    %v287 = vld [vmem:[#allocation2 + $0x4cc] sm:$0xf]
    %v288 = vld [vmem:[#allocation2 + $0x4d0] sm:$0xff]
    %v289 = vld [vmem:[#allocation2 + $0x4d8] sm:$0xff]
    %v290 = vld [vmem:[#allocation2 + $0x4e0] sm:$0xff]
    %v291 = vld [vmem:[#allocation2 + $0x4e8] sm:$0xf]
    %v292 = vld [vmem:[#allocation2 + $0x4ec] sm:$0xff]
    %v293 = vld [vmem:[#allocation2 + $0x4f4] sm:$0xff]
    %v294 = vld [vmem:[#allocation2 + $0x4fc] sm:$0xff]
    %v295 = vld [vmem:[#allocation2 + $0x504] sm:$0xf]
    %v296 = vld [vmem:[#allocation2 + $0x508] sm:$0xff]
    %v297 = vld [vmem:[#allocation2 + $0x510] sm:$0xff]
    %v298 = vld [vmem:[#allocation2 + $0x518] sm:$0xff]
    %v299 = vld [vmem:[#allocation2 + $0x520] sm:$0xf]
    %v300 = vld [vmem:[#allocation2 + $0x524] sm:$0xff]
    %v301 = vld [vmem:[#allocation2 + $0x52c] sm:$0xff]
    %v302 = vld [vmem:[#allocation2 + $0x534] sm:$0xff]
    %v303 = vld [vmem:[#allocation2 + $0x53c] sm:$0xf]
    %v304 = vld [vmem:[#allocation2 + $0x540] sm:$0xff]
    %v305 = vld [vmem:[#allocation2 + $0x548] sm:$0xff]
    %v306 = vld [vmem:[#allocation2 + $0x550] sm:$0xff]
    %v307 = vld [vmem:[#allocation2 + $0x558] sm:$0xf]
    %v308 = vld [vmem:[#allocation2 + $0x55c] sm:$0xff]
    %v309 = vld [vmem:[#allocation2 + $0x564] sm:$0xff]
    %v310 = vld [vmem:[#allocation2 + $0x56c] sm:$0xff]
    %v311 = vld [vmem:[#allocation2 + $0x574] sm:$0xf]
    %v312 = vld [vmem:[#allocation2 + $0x578] sm:$0xff]
    %v313 = vld [vmem:[#allocation2 + $0x580] sm:$0xff]
    %v314 = vld [vmem:[#allocation2 + $0x588] sm:$0xff]
    %v315 = vld [vmem:[#allocation2 + $0x590] sm:$0xf]
    %v316 = vld [vmem:[#allocation2 + $0x594] sm:$0xff]
    %v317 = vld [vmem:[#allocation2 + $0x59c] sm:$0xff]
    %v318 = vld [vmem:[#allocation2 + $0x5a4] sm:$0xff]
    %v319 = vld [vmem:[#allocation2 + $0x5ac] sm:$0xf]
    %v320 = vld [vmem:[#allocation2 + $0x5b0] sm:$0xff]
    %v321 = vld [vmem:[#allocation2 + $0x5b8] sm:$0xff]
    %v322 = vld [vmem:[#allocation2 + $0x5c0] sm:$0xff]
    %v323 = vld [vmem:[#allocation2 + $0x5c8] sm:$0xf]
    %v324 = vld [vmem:[#allocation2 + $0x5cc] sm:$0xff]
    %v325 = vld [vmem:[#allocation2 + $0x5d4] sm:$0xff]
    %v326 = vld [vmem:[#allocation2 + $0x5dc] sm:$0xff]
    %v327 = vld [vmem:[#allocation2 + $0x5e4] sm:$0xf]
    %v328 = vld [vmem:[#allocation2 + $0x5e8] sm:$0xff]
    %v329 = vld [vmem:[#allocation2 + $0x5f0] sm:$0xff]
    %v330 = vld [vmem:[#allocation2 + $0x5f8] sm:$0xff]
    %v331 = vld [vmem:[#allocation2 + $0x600] sm:$0xf]
    %v332 = vld [vmem:[#allocation2 + $0x604] sm:$0xff]
    %v333 = vld [vmem:[#allocation2 + $0x60c] sm:$0xff]
    %v334 = vld [vmem:[#allocation2 + $0x614] sm:$0xff]
    %v335 = vld [vmem:[#allocation2 + $0x61c] sm:$0xf]
    %v336 = vld [vmem:[#allocation2 + $0x620] sm:$0xff]
    %v337 = vld [vmem:[#allocation2 + $0x628] sm:$0xff]
    %v338 = vld [vmem:[#allocation2 + $0x630] sm:$0xff]
    %v339 = vld [vmem:[#allocation2 + $0x638] sm:$0xf]
    %v340 = vld [vmem:[#allocation2 + $0x63c] sm:$0xff]
    %v341 = vld [vmem:[#allocation2 + $0x644] sm:$0xff]
    %v342 = vld [vmem:[#allocation2 + $0x64c] sm:$0xff]
    %v343 = vld [vmem:[#allocation2 + $0x654] sm:$0xf]
    %v344 = vld [vmem:[#allocation2 + $0x658] sm:$0xff]
    %v345 = vld [vmem:[#allocation2 + $0x660] sm:$0xff]
    %v346 = vld [vmem:[#allocation2 + $0x668] sm:$0xff]
    %v347 = vld [vmem:[#allocation2 + $0x670] sm:$0xf]
    %v348 = vld [vmem:[#allocation2 + $0x674] sm:$0xff]
    %v349 = vld [vmem:[#allocation2 + $0x67c] sm:$0xff]
    %v350 = vld [vmem:[#allocation2 + $0x684] sm:$0xff]
    %v351 = vld [vmem:[#allocation2 + $0x68c] sm:$0xf]
    %v352 = vld [vmem:[#allocation2 + $0x690] sm:$0xff]
    %v353 = vld [vmem:[#allocation2 + $0x698] sm:$0xff]
    %v354 = vld [vmem:[#allocation2 + $0x6a0] sm:$0xff]
    %v355 = vld [vmem:[#allocation2 + $0x6a8] sm:$0xf]
    %v356 = vld [vmem:[#allocation2 + $0x6ac] sm:$0xff]
    %v357 = vld [vmem:[#allocation2 + $0x6b4] sm:$0xff]
    %v358 = vld [vmem:[#allocation2 + $0x6bc] sm:$0xff]
    %v359 = vld [vmem:[#allocation2 + $0x6c4] sm:$0xf]
    %v360 = vld [vmem:[#allocation2 + $0x6c8] sm:$0xff]
    %v361 = vld [vmem:[#allocation2 + $0x6d0] sm:$0xff]
    %v362 = vld [vmem:[#allocation2 + $0x6d8] sm:$0xff]
    %v363 = vld [vmem:[#allocation2 + $0x6e0] sm:$0xf]
    %v364 = vld [vmem:[#allocation2 + $0x6e4] sm:$0xff]
    %v365 = vld [vmem:[#allocation2 + $0x6ec] sm:$0xff]
    %v366 = vld [vmem:[#allocation2 + $0x6f4] sm:$0xff]
    %v367 = vld [vmem:[#allocation2 + $0x6fc] sm:$0xf]
    %v368 = vld [vmem:[#allocation2 + $0x700] sm:$0xff]
    %v369 = vld [vmem:[#allocation2 + $0x708] sm:$0xff]
    %v370 = vld [vmem:[#allocation2 + $0x710] sm:$0xff]
    %v371 = vld [vmem:[#allocation2 + $0x718] sm:$0xf]
    %v372 = vld [vmem:[#allocation2 + $0x71c] sm:$0xff]
    %v373 = vld [vmem:[#allocation2 + $0x724] sm:$0xff]
    %v374 = vld [vmem:[#allocation2 + $0x72c] sm:$0xff]
    %v375 = vld [vmem:[#allocation2 + $0x734] sm:$0xf]
    %v376 = vld [vmem:[#allocation2 + $0x738] sm:$0xff]
    %v377 = vld [vmem:[#allocation2 + $0x740] sm:$0xff]
    %v378 = vld [vmem:[#allocation2 + $0x748] sm:$0xff]
    %v379 = vld [vmem:[#allocation2 + $0x750] sm:$0xf]
    %v380 = vld [vmem:[#allocation2 + $0x754] sm:$0xff]
    %v381 = vld [vmem:[#allocation2 + $0x75c] sm:$0xff]
    %v382 = vld [vmem:[#allocation2 + $0x764] sm:$0xff]
    %v383 = vld [vmem:[#allocation2 + $0x76c] sm:$0xf]
    %v384 = vld [vmem:[#allocation2 + $0x770] sm:$0xff]
    %v385 = vld [vmem:[#allocation2 + $0x778] sm:$0xff]
    %v386 = vld [vmem:[#allocation2 + $0x780] sm:$0xff]
    %v387 = vld [vmem:[#allocation2 + $0x788] sm:$0xf]
    %v388 = vld [vmem:[#allocation2 + $0x78c] sm:$0xff]
    %v389 = vld [vmem:[#allocation2 + $0x794] sm:$0xff]
    %v390 = vld [vmem:[#allocation2 + $0x79c] sm:$0xff]
    %v391 = vld [vmem:[#allocation2 + $0x7a4] sm:$0xf]
    %v392 = vld [vmem:[#allocation2 + $0x7a8] sm:$0xff]
    %v393 = vld [vmem:[#allocation2 + $0x7b0] sm:$0xff]
    %v394 = vld [vmem:[#allocation2 + $0x7b8] sm:$0xff]
    %v395 = vld [vmem:[#allocation2 + $0x7c0] sm:$0xf]
    %v396 = vld [vmem:[#allocation2 + $0x7c4] sm:$0xff]
    %v397 = vld [vmem:[#allocation2 + $0x7cc] sm:$0xff]
    %v398 = vld [vmem:[#allocation2 + $0x7d4] sm:$0xff]
    %v399 = vld [vmem:[#allocation2 + $0x7dc] sm:$0xf]
    %v400 = vld [vmem:[#allocation2 + $0x7e0] sm:$0xff]
    %v401 = vld [vmem:[#allocation2 + $0x7e8] sm:$0xff]
    %v402 = vld [vmem:[#allocation2 + $0x7f0] sm:$0xff]
    %v403 = vld [vmem:[#allocation2 + $0x7f8] sm:$0xf]
    %v404 = vld [vmem:[#allocation2 + $0x7fc] sm:$0xff]
    %v405 = vld [vmem:[#allocation2 + $0x804] sm:$0xff]
    %v406 = vld [vmem:[#allocation2 + $0x80c] sm:$0xff]
    %v407 = vld [vmem:[#allocation2 + $0x814] sm:$0xf]
    %v408 = vld [vmem:[#allocation2 + $0x818] sm:$0xff]
    %v409 = vld [vmem:[#allocation2 + $0x820] sm:$0xff]
    %v410 = vld [vmem:[#allocation2 + $0x828] sm:$0xff]
    %v411 = vld [vmem:[#allocation2 + $0x830] sm:$0xf]
    %v412 = vld [vmem:[#allocation2 + $0x834] sm:$0xff]
    %v413 = vld [vmem:[#allocation2 + $0x83c] sm:$0xff]
    %v414 = vld [vmem:[#allocation2 + $0x844] sm:$0xff]
    %v415 = vld [vmem:[#allocation2 + $0x84c] sm:$0xf]
    %v416 = vld [vmem:[#allocation2 + $0x850] sm:$0xff]
    %v417 = vld [vmem:[#allocation2 + $0x858] sm:$0xff]
    %v418 = vld [vmem:[#allocation2 + $0x860] sm:$0xff]
    %v419 = vld [vmem:[#allocation2 + $0x868] sm:$0xf]
    %v420 = vld [vmem:[#allocation2 + $0x86c] sm:$0xff]
    %v421 = vld [vmem:[#allocation2 + $0x874] sm:$0xff]
    %v422 = vld [vmem:[#allocation2 + $0x87c] sm:$0xff]
    %v423 = vld [vmem:[#allocation2 + $0x884] sm:$0xf]
    %v424 = vld [vmem:[#allocation2 + $0x888] sm:$0xff]
    %v425 = vld [vmem:[#allocation2 + $0x890] sm:$0xff]
    %v426 = vld [vmem:[#allocation2 + $0x898] sm:$0xff]
    %v427 = vld [vmem:[#allocation2 + $0x8a0] sm:$0xf]
    %v428 = vld [vmem:[#allocation2 + $0x8a4] sm:$0xff]
    %v429 = vld [vmem:[#allocation2 + $0x8ac] sm:$0xff]
    %v430 = vld [vmem:[#allocation2 + $0x8b4] sm:$0xff]
    %v431 = vld [vmem:[#allocation2 + $0x8bc] sm:$0xf]
    %v432 = vld [vmem:[#allocation2 + $0x8c0] sm:$0xff]
    %v433 = vld [vmem:[#allocation2 + $0x8c8] sm:$0xff]
    %v434 = vld [vmem:[#allocation2 + $0x8d0] sm:$0xff]
    %v435 = vld [vmem:[#allocation2 + $0x8d8] sm:$0xf]
    %v436 = vld [vmem:[#allocation2 + $0x8dc] sm:$0xff]
    %v437 = vld [vmem:[#allocation2 + $0x8e4] sm:$0xff]
    %v438 = vld [vmem:[#allocation2 + $0x8ec] sm:$0xff]
    %v439 = vld [vmem:[#allocation2 + $0x8f4] sm:$0xf]
    %v440 = vld [vmem:[#allocation2 + $0x8f8] sm:$0xff]
    %v441 = vld [vmem:[#allocation2 + $0x900] sm:$0xff]
    %v442 = vld [vmem:[#allocation2 + $0x908] sm:$0xff]
    %v443 = vld [vmem:[#allocation2 + $0x910] sm:$0xf]
    %v444 = vld [vmem:[#allocation2 + $0x914] sm:$0xff]
    %v445 = vld [vmem:[#allocation2 + $0x91c] sm:$0xff]
    %v446 = vld [vmem:[#allocation2 + $0x924] sm:$0xff]
    %v447 = vld [vmem:[#allocation2 + $0x92c] sm:$0xf]
    %v448 = vld [vmem:[#allocation2 + $0x930] sm:$0xff]
    %v449 = vld [vmem:[#allocation2 + $0x938] sm:$0xff]
    %v450 = vld [vmem:[#allocation2 + $0x940] sm:$0xff]
    %v451 = vld [vmem:[#allocation2 + $0x948] sm:$0xf]
    %v452 = vld [vmem:[#allocation2 + $0x94c] sm:$0xff]
    %v453 = vld [vmem:[#allocation2 + $0x954] sm:$0xff]
    %v454 = vld [vmem:[#allocation2 + $0x95c] sm:$0xff]
    %v455 = vld [vmem:[#allocation2 + $0x964] sm:$0xf]
    %v456 = vld [vmem:[#allocation2 + $0x968] sm:$0xff]
    %v457 = vld [vmem:[#allocation2 + $0x970] sm:$0xff]
    %v458 = vld [vmem:[#allocation2 + $0x978] sm:$0xff]
    %v459 = vld [vmem:[#allocation2 + $0x980] sm:$0xf]
    %v460 = vld [vmem:[#allocation2 + $0x984] sm:$0xff]
    %v461 = vld [vmem:[#allocation2 + $0x98c] sm:$0xff]
    %v462 = vld [vmem:[#allocation2 + $0x994] sm:$0xff]
    %v463 = vld [vmem:[#allocation2 + $0x99c] sm:$0xf]
    %v464 = vld [vmem:[#allocation2 + $0x9a0] sm:$0xff]
    %v465 = vld [vmem:[#allocation2 + $0x9a8] sm:$0xff]
    %v466 = vld [vmem:[#allocation2 + $0x9b0] sm:$0xff]
    %v467 = vld [vmem:[#allocation2 + $0x9b8] sm:$0xf]
    %v468 = vld [vmem:[#allocation2 + $0x9bc] sm:$0xff]
    %v469 = vld [vmem:[#allocation2 + $0x9c4] sm:$0xff]
    %v470 = vld [vmem:[#allocation2 + $0x9cc] sm:$0xff]
    %v471 = vld [vmem:[#allocation2 + $0x9d4] sm:$0xf]
    %v472 = vld [vmem:[#allocation2 + $0x9d8] sm:$0xff]
    %v473 = vld [vmem:[#allocation2 + $0x9e0] sm:$0xff]
    %v474 = vld [vmem:[#allocation2 + $0x9e8] sm:$0xff]
    %v475 = vld [vmem:[#allocation2 + $0x9f0] sm:$0xf]
    %v476 = vld [vmem:[#allocation2 + $0x9f4] sm:$0xff]
    %v477 = vld [vmem:[#allocation2 + $0x9fc] sm:$0xff]
    %v478 = vld [vmem:[#allocation2 + $0xa04] sm:$0xff]
    %v479 = vld [vmem:[#allocation2 + $0xa0c] sm:$0xf]
    %v480 = vld [vmem:[#allocation2 + $0xa10] sm:$0xff]
    %v481 = vld [vmem:[#allocation2 + $0xa18] sm:$0xff]
    %v482 = vld [vmem:[#allocation2 + $0xa20] sm:$0xff]
    %v483 = vld [vmem:[#allocation2 + $0xa28] sm:$0xf]
    %v484 = vld [vmem:[#allocation2 + $0xa2c] sm:$0xff]
    %v485 = vld [vmem:[#allocation2 + $0xa34] sm:$0xff]
    %v486 = vld [vmem:[#allocation2 + $0xa3c] sm:$0xff]
    %v487 = vld [vmem:[#allocation2 + $0xa44] sm:$0xf]
    %v488 = vld [vmem:[#allocation2 + $0xa48] sm:$0xff]
    %v489 = vld [vmem:[#allocation2 + $0xa50] sm:$0xff]
    %v490 = vld [vmem:[#allocation2 + $0xa58] sm:$0xff]
    %v491 = vld [vmem:[#allocation2 + $0xa60] sm:$0xf]
    %v492 = vld [vmem:[#allocation2 + $0xa64] sm:$0xff]
    %v493 = vld [vmem:[#allocation2 + $0xa6c] sm:$0xff]
    %v494 = vld [vmem:[#allocation2 + $0xa74] sm:$0xff]
    %v495 = vld [vmem:[#allocation2 + $0xa7c] sm:$0xf]
    %v496 = vld [vmem:[#allocation2 + $0xa80] sm:$0xff]
    %v497 = vld [vmem:[#allocation2 + $0xa88] sm:$0xff]
    %v498 = vld [vmem:[#allocation2 + $0xa90] sm:$0xff]
    %v499 = vld [vmem:[#allocation2 + $0xa98] sm:$0xf]
    %v500 = vld [vmem:[#allocation2 + $0xa9c] sm:$0xff]
    %v501 = vld [vmem:[#allocation2 + $0xaa4] sm:$0xff]
    %v502 = vld [vmem:[#allocation2 + $0xaac] sm:$0xff]
    %v503 = vld [vmem:[#allocation2 + $0xab4] sm:$0xf]
    %v504 = vld [vmem:[#allocation2 + $0xab8] sm:$0xff]
    %v505 = vld [vmem:[#allocation2 + $0xac0] sm:$0xff]
    %v506 = vld [vmem:[#allocation2 + $0xac8] sm:$0xff]
    %v507 = vld [vmem:[#allocation2 + $0xad0] sm:$0xf]
    %v508 = vld [vmem:[#allocation2 + $0xad4] sm:$0xff]
    %v509 = vld [vmem:[#allocation2 + $0xadc] sm:$0xff]
    %v510 = vld [vmem:[#allocation2 + $0xae4] sm:$0xff]
    %v511 = vld [vmem:[#allocation2 + $0xaec] sm:$0xf]
    %v512 = vld [vmem:[#allocation2 + $0xaf0] sm:$0xff]
    %v513 = vld [vmem:[#allocation2 + $0xaf8] sm:$0xff]
    %v514 = vld [vmem:[#allocation2 + $0xb00] sm:$0xff]
    %v515 = vld [vmem:[#allocation2 + $0xb08] sm:$0xf]
    %v516 = vld [vmem:[#allocation2 + $0xb0c] sm:$0xff]
    %v517 = vld [vmem:[#allocation2 + $0xb14] sm:$0xff]
    %v518 = vld [vmem:[#allocation2 + $0xb1c] sm:$0xff]
    %v519 = vld [vmem:[#allocation2 + $0xb24] sm:$0xf]
    %v520 = vld [vmem:[#allocation2 + $0xb28] sm:$0xff]
    %v521 = vld [vmem:[#allocation2 + $0xb30] sm:$0xff]
    %v522 = vld [vmem:[#allocation2 + $0xb38] sm:$0xff]
    %v523 = vld [vmem:[#allocation2 + $0xb40] sm:$0xf]
    %v524 = vld [vmem:[#allocation2 + $0xb44] sm:$0xff]
    %v525 = vld [vmem:[#allocation2 + $0xb4c] sm:$0xff]
    %v526 = vld [vmem:[#allocation2 + $0xb54] sm:$0xff]
    %v527 = vld [vmem:[#allocation2 + $0xb5c] sm:$0xf]
    %v528 = vld [vmem:[#allocation2 + $0xb60] sm:$0xff]
    %v529 = vld [vmem:[#allocation2 + $0xb68] sm:$0xff]
    %v530 = vld [vmem:[#allocation2 + $0xb70] sm:$0xff]
    %v531 = vld [vmem:[#allocation2 + $0xb78] sm:$0xf]
    %v532 = vld [vmem:[#allocation2 + $0xb7c] sm:$0xff]
    %v533 = vld [vmem:[#allocation2 + $0xb84] sm:$0xff]
    %v534 = vld [vmem:[#allocation2 + $0xb8c] sm:$0xff]
    %v535 = vld [vmem:[#allocation2 + $0xb94] sm:$0xf]
    %v536 = vld [vmem:[#allocation2 + $0xb98] sm:$0xff]
    %v537 = vld [vmem:[#allocation2 + $0xba0] sm:$0xff]
    %v538 = vld [vmem:[#allocation2 + $0xba8] sm:$0xff]
    %v539 = vld [vmem:[#allocation2 + $0xbb0] sm:$0xf]
    %v540 = vld [vmem:[#allocation2 + $0xbb4] sm:$0xff]
    %v541 = vld [vmem:[#allocation2 + $0xbbc] sm:$0xff]
    %v542 = vld [vmem:[#allocation2 + $0xbc4] sm:$0xff]
    %v543 = vld [vmem:[#allocation2 + $0xbcc] sm:$0xf]
    %v544 = vld [vmem:[#allocation2 + $0xbd0] sm:$0xff]
    %v545 = vld [vmem:[#allocation2 + $0xbd8] sm:$0xff]
    %v546 = vld [vmem:[#allocation2 + $0xbe0] sm:$0xff]
    %v547 = vld [vmem:[#allocation2 + $0xbe8] sm:$0xf]
    %v548 = vld [vmem:[#allocation2 + $0xbec] sm:$0xff]
    %v549 = vld [vmem:[#allocation2 + $0xbf4] sm:$0xff]
    %v550 = vld [vmem:[#allocation2 + $0xbfc] sm:$0xff]
    %v551 = vld [vmem:[#allocation2 + $0xc04] sm:$0xf]
    %v552 = vld [vmem:[#allocation2 + $0xc08] sm:$0xff]
    %v553 = vld [vmem:[#allocation2 + $0xc10] sm:$0xff]
    %v554 = vld [vmem:[#allocation2 + $0xc18] sm:$0xff]
    %v555 = vld [vmem:[#allocation2 + $0xc20] sm:$0xf]
    %v556 = vld [vmem:[#allocation2 + $0xc24] sm:$0xff]
    %v557 = vld [vmem:[#allocation2 + $0xc2c] sm:$0xff]
    %v558 = vld [vmem:[#allocation2 + $0xc34] sm:$0xff]
    %v559 = vld [vmem:[#allocation2 + $0xc3c] sm:$0xf]
    %v560 = vld [vmem:[#allocation2 + $0xc40] sm:$0xff]
    %v561 = vld [vmem:[#allocation2 + $0xc48] sm:$0xff]
    %v562 = vld [vmem:[#allocation2 + $0xc50] sm:$0xff]
    %v563 = vld [vmem:[#allocation2 + $0xc58] sm:$0xf]
    %v564 = vld [vmem:[#allocation2 + $0xc5c] sm:$0xff]
    %v565 = vld [vmem:[#allocation2 + $0xc64] sm:$0xff]
    %v566 = vld [vmem:[#allocation2 + $0xc6c] sm:$0xff]
    %v567 = vld [vmem:[#allocation2 + $0xc74] sm:$0xf]
    %v568 = vld [vmem:[#allocation2 + $0xc78] sm:$0xff]
    %v569 = vld [vmem:[#allocation2 + $0xc80] sm:$0xff]
    %v570 = vld [vmem:[#allocation2 + $0xc88] sm:$0xff]
    %v571 = vld [vmem:[#allocation2 + $0xc90] sm:$0xf]
    %v572 = vld [vmem:[#allocation2 + $0xc94] sm:$0xff]
    %v573 = vld [vmem:[#allocation2 + $0xc9c] sm:$0xff]
    %v574 = vld [vmem:[#allocation2 + $0xca4] sm:$0xff]
    %v575 = vld [vmem:[#allocation2 + $0xcac] sm:$0xf]
    %v576 = vld [vmem:[#allocation2 + $0xcb0] sm:$0xff]
    %v577 = vld [vmem:[#allocation2 + $0xcb8] sm:$0xff]
    %v578 = vld [vmem:[#allocation2 + $0xcc0] sm:$0xff]
    %v579 = vld [vmem:[#allocation2 + $0xcc8] sm:$0xf]
    %v580 = vld [vmem:[#allocation2 + $0xccc] sm:$0xff]
    %v581 = vld [vmem:[#allocation2 + $0xcd4] sm:$0xff]
    %v582 = vld [vmem:[#allocation2 + $0xcdc] sm:$0xff]
    %v583 = vld [vmem:[#allocation2 + $0xce4] sm:$0xf]
    %v584 = vld [vmem:[#allocation2 + $0xce8] sm:$0xff]
    %v585 = vld [vmem:[#allocation2 + $0xcf0] sm:$0xff]
    %v586 = vld [vmem:[#allocation2 + $0xcf8] sm:$0xff]
    %v587 = vld [vmem:[#allocation2 + $0xd00] sm:$0xf]
    %v588 = vld [vmem:[#allocation2 + $0xd04] sm:$0xff]
    %v589 = vld [vmem:[#allocation2 + $0xd0c] sm:$0xff]
    %v590 = vld [vmem:[#allocation2 + $0xd14] sm:$0xff]
    %v591 = vld [vmem:[#allocation2 + $0xd1c] sm:$0xf]
    %v592 = vld [vmem:[#allocation2 + $0xd20] sm:$0xff]
    %v593 = vld [vmem:[#allocation2 + $0xd28] sm:$0xff]
    %v594 = vld [vmem:[#allocation2 + $0xd30] sm:$0xff]
    %v595 = vld [vmem:[#allocation2 + $0xd38] sm:$0xf]
    %v596 = vld [vmem:[#allocation2 + $0xd3c] sm:$0xff]
    %v597 = vld [vmem:[#allocation2 + $0xd44] sm:$0xff]
    %v598 = vld [vmem:[#allocation2 + $0xd4c] sm:$0xff]
    %v599 = vld [vmem:[#allocation2 + $0xd54] sm:$0xf]
    %v600 = vld [vmem:[#allocation2 + $0xd58] sm:$0xff]
    %v601 = vld [vmem:[#allocation2 + $0xd60] sm:$0xff]
    %v602 = vld [vmem:[#allocation2 + $0xd68] sm:$0xff]
    %v603 = vld [vmem:[#allocation2 + $0xd70] sm:$0xf]
    %v604 = vld [vmem:[#allocation2 + $0xd74] sm:$0xff]
    %v605 = vld [vmem:[#allocation2 + $0xd7c] sm:$0xff]
    %v606 = vld [vmem:[#allocation2 + $0xd84] sm:$0xff]
    %v607 = vld [vmem:[#allocation2 + $0xd8c] sm:$0xf]
    %v608 = vld [vmem:[#allocation2 + $0xd90] sm:$0xff]
    %v609 = vld [vmem:[#allocation2 + $0xd98] sm:$0xff]
    %v610 = vld [vmem:[#allocation2 + $0xda0] sm:$0xff]
    %v611 = vld [vmem:[#allocation2 + $0xda8] sm:$0xf]
    %v612 = vld [vmem:[#allocation2 + $0xdac] sm:$0xff]
    %v613 = vld [vmem:[#allocation2 + $0xdb4] sm:$0xff]
    %v614 = vld [vmem:[#allocation2 + $0xdbc] sm:$0xff]
    %v615 = vld [vmem:[#allocation2 + $0xdc4] sm:$0xf]
    %v616 = vld [vmem:[#allocation2 + $0xdc8] sm:$0xff]
    %v617 = vld [vmem:[#allocation2 + $0xdd0] sm:$0xff]
    %v618 = vld [vmem:[#allocation2 + $0xdd8] sm:$0xff]
    %v619 = vld [vmem:[#allocation2 + $0xde0] sm:$0xf]
    %v620 = vld [vmem:[#allocation2 + $0xde4] sm:$0xff]
    %v621 = vld [vmem:[#allocation2 + $0xdec] sm:$0xff]
    %v622 = vld [vmem:[#allocation2 + $0xdf4] sm:$0xff]
    %v623 = vld [vmem:[#allocation2 + $0xdfc] sm:$0xf]
    %v624 = vld [vmem:[%s2] sm:$0x7f]
    %v626 = vlaneseq
    %v627 = vshrl.u32 %v626, 7
    %v628 = vsub.s32 0, %v627
    %v629 = vrot.slane %v624, %v628
    %v630 = vlaneseq
    %v631 = vshrl.u32 %v630, 7
    %v632 = vsub.s32 1, %v631
    %v633 = vrot.slane %v624, %v632
    %v634 = vlaneseq
    %v635 = vshrl.u32 %v634, 7
    %v636 = vsub.s32 2, %v635
    %v637 = vrot.slane %v624, %v636
    %v638 = vlaneseq
    %v639 = vshrl.u32 %v638, 7
    %v640 = vsub.s32 3, %v639
    %v641 = vrot.slane %v624, %v640
    %v642 = vlaneseq
    %v643 = vshrl.u32 %v642, 7
    %v644 = vsub.s32 4, %v643
    %v645 = vrot.slane %v624, %v644
    %v646 = vlaneseq
    %v647 = vshrl.u32 %v646, 7
    %v648 = vsub.s32 5, %v647
    %v649 = vrot.slane %v624, %v648
    %v650 = vlaneseq
    %v651 = vshrl.u32 %v650, 7
    %v652 = vsub.s32 6, %v651
    %v653 = vrot.slane %v624, %v652
    %v1173 = vunpack.c.l.b16 %v112
    %v1174 = vunpack.c.h.b16 %v112
    %v1175 = vunpack.c.l.b16 %v113
    %v1176 = vunpack.c.h.b16 %v113
    %v1177 = vunpack.c.l.b16 %v114
    %v1178 = vunpack.c.h.b16 %v114
    %v1179 = vunpack.c.l.b16 %v115
    %v1180 = vunpack.c.l.b16 %v116
    %v1181 = vunpack.c.h.b16 %v116
    %v1182 = vunpack.c.l.b16 %v117
    %v1183 = vunpack.c.h.b16 %v117
    %v1184 = vunpack.c.l.b16 %v118
    %v1185 = vunpack.c.h.b16 %v118
    %v1186 = vunpack.c.l.b16 %v119
    %v1187 = vunpack.c.l.b16 %v120
    %v1188 = vunpack.c.h.b16 %v120
    %v1189 = vunpack.c.l.b16 %v121
    %v1190 = vunpack.c.h.b16 %v121
    %v1191 = vunpack.c.l.b16 %v122
    %v1192 = vunpack.c.h.b16 %v122
    %v1193 = vunpack.c.l.b16 %v123
    %v1194 = vunpack.c.l.b16 %v124
    %v1195 = vunpack.c.h.b16 %v124
    %v1196 = vunpack.c.l.b16 %v125
    %v1197 = vunpack.c.h.b16 %v125
    %v1198 = vunpack.c.l.b16 %v126
    %v1199 = vunpack.c.h.b16 %v126
    %v1200 = vunpack.c.l.b16 %v127
    %v1201 = vunpack.c.l.b16 %v128
    %v1202 = vunpack.c.h.b16 %v128
    %v1203 = vunpack.c.l.b16 %v129
    %v1204 = vunpack.c.h.b16 %v129
    %v1205 = vunpack.c.l.b16 %v130
    %v1206 = vunpack.c.h.b16 %v130
    %v1207 = vunpack.c.l.b16 %v131
    %v1208 = vunpack.c.l.b16 %v132
    %v1209 = vunpack.c.h.b16 %v132
    %v1210 = vunpack.c.l.b16 %v133
    %v1211 = vunpack.c.h.b16 %v133
    %v1212 = vunpack.c.l.b16 %v134
    %v1213 = vunpack.c.h.b16 %v134
    %v1214 = vunpack.c.l.b16 %v135
    %v1215 = vunpack.c.l.b16 %v136
    %v1216 = vunpack.c.h.b16 %v136
    %v1217 = vunpack.c.l.b16 %v137
    %v1218 = vunpack.c.h.b16 %v137
    %v1219 = vunpack.c.l.b16 %v138
    %v1220 = vunpack.c.h.b16 %v138
    %v1221 = vunpack.c.l.b16 %v139
    %v1222 = vunpack.c.l.b16 %v140
    %v1223 = vunpack.c.h.b16 %v140
    %v1224 = vunpack.c.l.b16 %v141
    %v1225 = vunpack.c.h.b16 %v141
    %v1226 = vunpack.c.l.b16 %v142
    %v1227 = vunpack.c.h.b16 %v142
    %v1228 = vunpack.c.l.b16 %v143
    %v1229 = vunpack.c.l.b16 %v144
    %v1230 = vunpack.c.h.b16 %v144
    %v1231 = vunpack.c.l.b16 %v145
    %v1232 = vunpack.c.h.b16 %v145
    %v1233 = vunpack.c.l.b16 %v146
    %v1234 = vunpack.c.h.b16 %v146
    %v1235 = vunpack.c.l.b16 %v147
    %v1236 = vunpack.c.l.b16 %v148
    %v1237 = vunpack.c.h.b16 %v148
    %v1238 = vunpack.c.l.b16 %v149
    %v1239 = vunpack.c.h.b16 %v149
    %v1240 = vunpack.c.l.b16 %v150
    %v1241 = vunpack.c.h.b16 %v150
    %v1242 = vunpack.c.l.b16 %v151
    %v1243 = vunpack.c.l.b16 %v152
    %v1244 = vunpack.c.h.b16 %v152
    %v1245 = vunpack.c.l.b16 %v153
    %v1246 = vunpack.c.h.b16 %v153
    %v1247 = vunpack.c.l.b16 %v154
    %v1248 = vunpack.c.h.b16 %v154
    %v1249 = vunpack.c.l.b16 %v155
    %v1250 = vunpack.c.l.b16 %v156
    %v1251 = vunpack.c.h.b16 %v156
    %v1252 = vunpack.c.l.b16 %v157
    %v1253 = vunpack.c.h.b16 %v157
    %v1254 = vunpack.c.l.b16 %v158
    %v1255 = vunpack.c.h.b16 %v158
    %v1256 = vunpack.c.l.b16 %v159
    %v1257 = vunpack.c.l.b16 %v160
    %v1258 = vunpack.c.h.b16 %v160
    %v1259 = vunpack.c.l.b16 %v161
    %v1260 = vunpack.c.h.b16 %v161
    %v1261 = vunpack.c.l.b16 %v162
    %v1262 = vunpack.c.h.b16 %v162
    %v1263 = vunpack.c.l.b16 %v163
    %v1264 = vunpack.c.l.b16 %v164
    %v1265 = vunpack.c.h.b16 %v164
    %v1266 = vunpack.c.l.b16 %v165
    %v1267 = vunpack.c.h.b16 %v165
    %v1268 = vunpack.c.l.b16 %v166
    %v1269 = vunpack.c.h.b16 %v166
    %v1270 = vunpack.c.l.b16 %v167
    %v1271 = vunpack.c.l.b16 %v168
    %v1272 = vunpack.c.h.b16 %v168
    %v1273 = vunpack.c.l.b16 %v169
    %v1274 = vunpack.c.h.b16 %v169
    %v1275 = vunpack.c.l.b16 %v170
    %v1276 = vunpack.c.h.b16 %v170
    %v1277 = vunpack.c.l.b16 %v171
    %v1278 = vunpack.c.l.b16 %v172
    %v1279 = vunpack.c.h.b16 %v172
    %v1280 = vunpack.c.l.b16 %v173
    %v1281 = vunpack.c.h.b16 %v173
    %v1282 = vunpack.c.l.b16 %v174
    %v1283 = vunpack.c.h.b16 %v174
    %v1284 = vunpack.c.l.b16 %v175
    %v1285 = vunpack.c.l.b16 %v176
    %v1286 = vunpack.c.h.b16 %v176
    %v1287 = vunpack.c.l.b16 %v177
    %v1288 = vunpack.c.h.b16 %v177
    %v1289 = vunpack.c.l.b16 %v178
    %v1290 = vunpack.c.h.b16 %v178
    %v1291 = vunpack.c.l.b16 %v179
    %v1292 = vunpack.c.l.b16 %v180
    %v1293 = vunpack.c.h.b16 %v180
    %v1294 = vunpack.c.l.b16 %v181
    %v1295 = vunpack.c.h.b16 %v181
    %v1296 = vunpack.c.l.b16 %v182
    %v1297 = vunpack.c.h.b16 %v182
    %v1298 = vunpack.c.l.b16 %v183
    %v1299 = vunpack.c.l.b16 %v184
    %v1300 = vunpack.c.h.b16 %v184
    %v1301 = vunpack.c.l.b16 %v185
    %v1302 = vunpack.c.h.b16 %v185
    %v1303 = vunpack.c.l.b16 %v186
    %v1304 = vunpack.c.h.b16 %v186
    %v1305 = vunpack.c.l.b16 %v187
    %v1306 = vunpack.c.l.b16 %v188
    %v1307 = vunpack.c.h.b16 %v188
    %v1308 = vunpack.c.l.b16 %v189
    %v1309 = vunpack.c.h.b16 %v189
    %v1310 = vunpack.c.l.b16 %v190
    %v1311 = vunpack.c.h.b16 %v190
    %v1312 = vunpack.c.l.b16 %v191
    %v1313 = vunpack.c.l.b16 %v192
    %v1314 = vunpack.c.h.b16 %v192
    %v1315 = vunpack.c.l.b16 %v193
    %v1316 = vunpack.c.h.b16 %v193
    %v1317 = vunpack.c.l.b16 %v194
    %v1318 = vunpack.c.h.b16 %v194
    %v1319 = vunpack.c.l.b16 %v195
    %v1320 = vunpack.c.l.b16 %v196
    %v1321 = vunpack.c.h.b16 %v196
    %v1322 = vunpack.c.l.b16 %v197
    %v1323 = vunpack.c.h.b16 %v197
    %v1324 = vunpack.c.l.b16 %v198
    %v1325 = vunpack.c.h.b16 %v198
    %v1326 = vunpack.c.l.b16 %v199
    %v1327 = vunpack.c.l.b16 %v200
    %v1328 = vunpack.c.h.b16 %v200
    %v1329 = vunpack.c.l.b16 %v201
    %v1330 = vunpack.c.h.b16 %v201
    %v1331 = vunpack.c.l.b16 %v202
    %v1332 = vunpack.c.h.b16 %v202
    %v1333 = vunpack.c.l.b16 %v203
    %v1334 = vunpack.c.l.b16 %v204
    %v1335 = vunpack.c.h.b16 %v204
    %v1336 = vunpack.c.l.b16 %v205
    %v1337 = vunpack.c.h.b16 %v205
    %v1338 = vunpack.c.l.b16 %v206
    %v1339 = vunpack.c.h.b16 %v206
    %v1340 = vunpack.c.l.b16 %v207
    %v1341 = vunpack.c.l.b16 %v208
    %v1342 = vunpack.c.h.b16 %v208
    %v1343 = vunpack.c.l.b16 %v209
    %v1344 = vunpack.c.h.b16 %v209
    %v1345 = vunpack.c.l.b16 %v210
    %v1346 = vunpack.c.h.b16 %v210
    %v1347 = vunpack.c.l.b16 %v211
    %v1348 = vunpack.c.l.b16 %v212
    %v1349 = vunpack.c.h.b16 %v212
    %v1350 = vunpack.c.l.b16 %v213
    %v1351 = vunpack.c.h.b16 %v213
    %v1352 = vunpack.c.l.b16 %v214
    %v1353 = vunpack.c.h.b16 %v214
    %v1354 = vunpack.c.l.b16 %v215
    %v1355 = vunpack.c.l.b16 %v216
    %v1356 = vunpack.c.h.b16 %v216
    %v1357 = vunpack.c.l.b16 %v217
    %v1358 = vunpack.c.h.b16 %v217
    %v1359 = vunpack.c.l.b16 %v218
    %v1360 = vunpack.c.h.b16 %v218
    %v1361 = vunpack.c.l.b16 %v219
    %v1362 = vunpack.c.l.b16 %v220
    %v1363 = vunpack.c.h.b16 %v220
    %v1364 = vunpack.c.l.b16 %v221
    %v1365 = vunpack.c.h.b16 %v221
    %v1366 = vunpack.c.l.b16 %v222
    %v1367 = vunpack.c.h.b16 %v222
    %v1368 = vunpack.c.l.b16 %v223
    %v1369 = vunpack.c.l.b16 %v224
    %v1370 = vunpack.c.h.b16 %v224
    %v1371 = vunpack.c.l.b16 %v225
    %v1372 = vunpack.c.h.b16 %v225
    %v1373 = vunpack.c.l.b16 %v226
    %v1374 = vunpack.c.h.b16 %v226
    %v1375 = vunpack.c.l.b16 %v227
    %v1376 = vunpack.c.l.b16 %v228
    %v1377 = vunpack.c.h.b16 %v228
    %v1378 = vunpack.c.l.b16 %v229
    %v1379 = vunpack.c.h.b16 %v229
    %v1380 = vunpack.c.l.b16 %v230
    %v1381 = vunpack.c.h.b16 %v230
    %v1382 = vunpack.c.l.b16 %v231
    %v1383 = vunpack.c.l.b16 %v232
    %v1384 = vunpack.c.h.b16 %v232
    %v1385 = vunpack.c.l.b16 %v233
    %v1386 = vunpack.c.h.b16 %v233
    %v1387 = vunpack.c.l.b16 %v234
    %v1388 = vunpack.c.h.b16 %v234
    %v1389 = vunpack.c.l.b16 %v235
    %v1390 = vunpack.c.l.b16 %v236
    %v1391 = vunpack.c.h.b16 %v236
    %v1392 = vunpack.c.l.b16 %v237
    %v1393 = vunpack.c.h.b16 %v237
    %v1394 = vunpack.c.l.b16 %v238
    %v1395 = vunpack.c.h.b16 %v238
    %v1396 = vunpack.c.l.b16 %v239
    %v1397 = vunpack.c.l.b16 %v240
    %v1398 = vunpack.c.h.b16 %v240
    %v1399 = vunpack.c.l.b16 %v241
    %v1400 = vunpack.c.h.b16 %v241
    %v1401 = vunpack.c.l.b16 %v242
    %v1402 = vunpack.c.h.b16 %v242
    %v1403 = vunpack.c.l.b16 %v243
    %v1404 = vunpack.c.l.b16 %v244
    %v1405 = vunpack.c.h.b16 %v244
    %v1406 = vunpack.c.l.b16 %v245
    %v1407 = vunpack.c.h.b16 %v245
    %v1408 = vunpack.c.l.b16 %v246
    %v1409 = vunpack.c.h.b16 %v246
    %v1410 = vunpack.c.l.b16 %v247
    %v1411 = vunpack.c.l.b16 %v248
    %v1412 = vunpack.c.h.b16 %v248
    %v1413 = vunpack.c.l.b16 %v249
    %v1414 = vunpack.c.h.b16 %v249
    %v1415 = vunpack.c.l.b16 %v250
    %v1416 = vunpack.c.h.b16 %v250
    %v1417 = vunpack.c.l.b16 %v251
    %v1418 = vunpack.c.l.b16 %v252
    %v1419 = vunpack.c.h.b16 %v252
    %v1420 = vunpack.c.l.b16 %v253
    %v1421 = vunpack.c.h.b16 %v253
    %v1422 = vunpack.c.l.b16 %v254
    %v1423 = vunpack.c.h.b16 %v254
    %v1424 = vunpack.c.l.b16 %v255
    %v1425 = vunpack.c.l.b16 %v256
    %v1426 = vunpack.c.h.b16 %v256
    %v1427 = vunpack.c.l.b16 %v257
    %v1428 = vunpack.c.h.b16 %v257
    %v1429 = vunpack.c.l.b16 %v258
    %v1430 = vunpack.c.h.b16 %v258
    %v1431 = vunpack.c.l.b16 %v259
    %v1432 = vunpack.c.l.b16 %v260
    %v1433 = vunpack.c.h.b16 %v260
    %v1434 = vunpack.c.l.b16 %v261
    %v1435 = vunpack.c.h.b16 %v261
    %v1436 = vunpack.c.l.b16 %v262
    %v1437 = vunpack.c.h.b16 %v262
    %v1438 = vunpack.c.l.b16 %v263
    %v1439 = vunpack.c.l.b16 %v264
    %v1440 = vunpack.c.h.b16 %v264
    %v1441 = vunpack.c.l.b16 %v265
    %v1442 = vunpack.c.h.b16 %v265
    %v1443 = vunpack.c.l.b16 %v266
    %v1444 = vunpack.c.h.b16 %v266
    %v1445 = vunpack.c.l.b16 %v267
    %v1446 = vunpack.c.l.b16 %v268
    %v1447 = vunpack.c.h.b16 %v268
    %v1448 = vunpack.c.l.b16 %v269
    %v1449 = vunpack.c.h.b16 %v269
    %v1450 = vunpack.c.l.b16 %v270
    %v1451 = vunpack.c.h.b16 %v270
    %v1452 = vunpack.c.l.b16 %v271
    %v1453 = vunpack.c.l.b16 %v272
    %v1454 = vunpack.c.h.b16 %v272
    %v1455 = vunpack.c.l.b16 %v273
    %v1456 = vunpack.c.h.b16 %v273
    %v1457 = vunpack.c.l.b16 %v274
    %v1458 = vunpack.c.h.b16 %v274
    %v1459 = vunpack.c.l.b16 %v275
    %v1460 = vunpack.c.l.b16 %v276
    %v1461 = vunpack.c.h.b16 %v276
    %v1462 = vunpack.c.l.b16 %v277
    %v1463 = vunpack.c.h.b16 %v277
    %v1464 = vunpack.c.l.b16 %v278
    %v1465 = vunpack.c.h.b16 %v278
    %v1466 = vunpack.c.l.b16 %v279
    %v1467 = vunpack.c.l.b16 %v280
    %v1468 = vunpack.c.h.b16 %v280
    %v1469 = vunpack.c.l.b16 %v281
    %v1470 = vunpack.c.h.b16 %v281
    %v1471 = vunpack.c.l.b16 %v282
    %v1472 = vunpack.c.h.b16 %v282
    %v1473 = vunpack.c.l.b16 %v283
    %v1474 = vunpack.c.l.b16 %v284
    %v1475 = vunpack.c.h.b16 %v284
    %v1476 = vunpack.c.l.b16 %v285
    %v1477 = vunpack.c.h.b16 %v285
    %v1478 = vunpack.c.l.b16 %v286
    %v1479 = vunpack.c.h.b16 %v286
    %v1480 = vunpack.c.l.b16 %v287
    %v1481 = vunpack.c.l.b16 %v288
    %v1482 = vunpack.c.h.b16 %v288
    %v1483 = vunpack.c.l.b16 %v289
    %v1484 = vunpack.c.h.b16 %v289
    %v1485 = vunpack.c.l.b16 %v290
    %v1486 = vunpack.c.h.b16 %v290
    %v1487 = vunpack.c.l.b16 %v291
    %v1488 = vunpack.c.l.b16 %v292
    %v1489 = vunpack.c.h.b16 %v292
    %v1490 = vunpack.c.l.b16 %v293
    %v1491 = vunpack.c.h.b16 %v293
    %v1492 = vunpack.c.l.b16 %v294
    %v1493 = vunpack.c.h.b16 %v294
    %v1494 = vunpack.c.l.b16 %v295
    %v1495 = vunpack.c.l.b16 %v296
    %v1496 = vunpack.c.h.b16 %v296
    %v1497 = vunpack.c.l.b16 %v297
    %v1498 = vunpack.c.h.b16 %v297
    %v1499 = vunpack.c.l.b16 %v298
    %v1500 = vunpack.c.h.b16 %v298
    %v1501 = vunpack.c.l.b16 %v299
    %v1502 = vunpack.c.l.b16 %v300
    %v1503 = vunpack.c.h.b16 %v300
    %v1504 = vunpack.c.l.b16 %v301
    %v1505 = vunpack.c.h.b16 %v301
    %v1506 = vunpack.c.l.b16 %v302
    %v1507 = vunpack.c.h.b16 %v302
    %v1508 = vunpack.c.l.b16 %v303
    %v1509 = vunpack.c.l.b16 %v304
    %v1510 = vunpack.c.h.b16 %v304
    %v1511 = vunpack.c.l.b16 %v305
    %v1512 = vunpack.c.h.b16 %v305
    %v1513 = vunpack.c.l.b16 %v306
    %v1514 = vunpack.c.h.b16 %v306
    %v1515 = vunpack.c.l.b16 %v307
    %v1516 = vunpack.c.l.b16 %v308
    %v1517 = vunpack.c.h.b16 %v308
    %v1518 = vunpack.c.l.b16 %v309
    %v1519 = vunpack.c.h.b16 %v309
    %v1520 = vunpack.c.l.b16 %v310
    %v1521 = vunpack.c.h.b16 %v310
    %v1522 = vunpack.c.l.b16 %v311
    %v1523 = vunpack.c.l.b16 %v312
    %v1524 = vunpack.c.h.b16 %v312
    %v1525 = vunpack.c.l.b16 %v313
    %v1526 = vunpack.c.h.b16 %v313
    %v1527 = vunpack.c.l.b16 %v314
    %v1528 = vunpack.c.h.b16 %v314
    %v1529 = vunpack.c.l.b16 %v315
    %v1530 = vunpack.c.l.b16 %v316
    %v1531 = vunpack.c.h.b16 %v316
    %v1532 = vunpack.c.l.b16 %v317
    %v1533 = vunpack.c.h.b16 %v317
    %v1534 = vunpack.c.l.b16 %v318
    %v1535 = vunpack.c.h.b16 %v318
    %v1536 = vunpack.c.l.b16 %v319
    %v1537 = vunpack.c.l.b16 %v320
    %v1538 = vunpack.c.h.b16 %v320
    %v1539 = vunpack.c.l.b16 %v321
    %v1540 = vunpack.c.h.b16 %v321
    %v1541 = vunpack.c.l.b16 %v322
    %v1542 = vunpack.c.h.b16 %v322
    %v1543 = vunpack.c.l.b16 %v323
    %v1544 = vunpack.c.l.b16 %v324
    %v1545 = vunpack.c.h.b16 %v324
    %v1546 = vunpack.c.l.b16 %v325
    %v1547 = vunpack.c.h.b16 %v325
    %v1548 = vunpack.c.l.b16 %v326
    %v1549 = vunpack.c.h.b16 %v326
    %v1550 = vunpack.c.l.b16 %v327
    %v1551 = vunpack.c.l.b16 %v328
    %v1552 = vunpack.c.h.b16 %v328
    %v1553 = vunpack.c.l.b16 %v329
    %v1554 = vunpack.c.h.b16 %v329
    %v1555 = vunpack.c.l.b16 %v330
    %v1556 = vunpack.c.h.b16 %v330
    %v1557 = vunpack.c.l.b16 %v331
    %v1558 = vunpack.c.l.b16 %v332
    %v1559 = vunpack.c.h.b16 %v332
    %v1560 = vunpack.c.l.b16 %v333
    %v1561 = vunpack.c.h.b16 %v333
    %v1562 = vunpack.c.l.b16 %v334
    %v1563 = vunpack.c.h.b16 %v334
    %v1564 = vunpack.c.l.b16 %v335
    %v1565 = vunpack.c.l.b16 %v336
    %v1566 = vunpack.c.h.b16 %v336
    %v1567 = vunpack.c.l.b16 %v337
    %v1568 = vunpack.c.h.b16 %v337
    %v1569 = vunpack.c.l.b16 %v338
    %v1570 = vunpack.c.h.b16 %v338
    %v1571 = vunpack.c.l.b16 %v339
    %v1572 = vunpack.c.l.b16 %v340
    %v1573 = vunpack.c.h.b16 %v340
    %v1574 = vunpack.c.l.b16 %v341
    %v1575 = vunpack.c.h.b16 %v341
    %v1576 = vunpack.c.l.b16 %v342
    %v1577 = vunpack.c.h.b16 %v342
    %v1578 = vunpack.c.l.b16 %v343
    %v1579 = vunpack.c.l.b16 %v344
    %v1580 = vunpack.c.h.b16 %v344
    %v1581 = vunpack.c.l.b16 %v345
    %v1582 = vunpack.c.h.b16 %v345
    %v1583 = vunpack.c.l.b16 %v346
    %v1584 = vunpack.c.h.b16 %v346
    %v1585 = vunpack.c.l.b16 %v347
    %v1586 = vunpack.c.l.b16 %v348
    %v1587 = vunpack.c.h.b16 %v348
    %v1588 = vunpack.c.l.b16 %v349
    %v1589 = vunpack.c.h.b16 %v349
    %v1590 = vunpack.c.l.b16 %v350
    %v1591 = vunpack.c.h.b16 %v350
    %v1592 = vunpack.c.l.b16 %v351
    %v1593 = vunpack.c.l.b16 %v352
    %v1594 = vunpack.c.h.b16 %v352
    %v1595 = vunpack.c.l.b16 %v353
    %v1596 = vunpack.c.h.b16 %v353
    %v1597 = vunpack.c.l.b16 %v354
    %v1598 = vunpack.c.h.b16 %v354
    %v1599 = vunpack.c.l.b16 %v355
    %v1600 = vunpack.c.l.b16 %v356
    %v1601 = vunpack.c.h.b16 %v356
    %v1602 = vunpack.c.l.b16 %v357
    %v1603 = vunpack.c.h.b16 %v357
    %v1604 = vunpack.c.l.b16 %v358
    %v1605 = vunpack.c.h.b16 %v358
    %v1606 = vunpack.c.l.b16 %v359
    %v1607 = vunpack.c.l.b16 %v360
    %v1608 = vunpack.c.h.b16 %v360
    %v1609 = vunpack.c.l.b16 %v361
    %v1610 = vunpack.c.h.b16 %v361
    %v1611 = vunpack.c.l.b16 %v362
    %v1612 = vunpack.c.h.b16 %v362
    %v1613 = vunpack.c.l.b16 %v363
    %v1614 = vunpack.c.l.b16 %v364
    %v1615 = vunpack.c.h.b16 %v364
    %v1616 = vunpack.c.l.b16 %v365
    %v1617 = vunpack.c.h.b16 %v365
    %v1618 = vunpack.c.l.b16 %v366
    %v1619 = vunpack.c.h.b16 %v366
    %v1620 = vunpack.c.l.b16 %v367
    %v1621 = vunpack.c.l.b16 %v368
    %v1622 = vunpack.c.h.b16 %v368
    %v1623 = vunpack.c.l.b16 %v369
    %v1624 = vunpack.c.h.b16 %v369
    %v1625 = vunpack.c.l.b16 %v370
    %v1626 = vunpack.c.h.b16 %v370
    %v1627 = vunpack.c.l.b16 %v371
    %v1628 = vunpack.c.l.b16 %v372
    %v1629 = vunpack.c.h.b16 %v372
    %v1630 = vunpack.c.l.b16 %v373
    %v1631 = vunpack.c.h.b16 %v373
    %v1632 = vunpack.c.l.b16 %v374
    %v1633 = vunpack.c.h.b16 %v374
    %v1634 = vunpack.c.l.b16 %v375
    %v1635 = vunpack.c.l.b16 %v376
    %v1636 = vunpack.c.h.b16 %v376
    %v1637 = vunpack.c.l.b16 %v377
    %v1638 = vunpack.c.h.b16 %v377
    %v1639 = vunpack.c.l.b16 %v378
    %v1640 = vunpack.c.h.b16 %v378
    %v1641 = vunpack.c.l.b16 %v379
    %v1642 = vunpack.c.l.b16 %v380
    %v1643 = vunpack.c.h.b16 %v380
    %v1644 = vunpack.c.l.b16 %v381
    %v1645 = vunpack.c.h.b16 %v381
    %v1646 = vunpack.c.l.b16 %v382
    %v1647 = vunpack.c.h.b16 %v382
    %v1648 = vunpack.c.l.b16 %v383
    %v1649 = vunpack.c.l.b16 %v384
    %v1650 = vunpack.c.h.b16 %v384
    %v1651 = vunpack.c.l.b16 %v385
    %v1652 = vunpack.c.h.b16 %v385
    %v1653 = vunpack.c.l.b16 %v386
    %v1654 = vunpack.c.h.b16 %v386
    %v1655 = vunpack.c.l.b16 %v387
    %v1656 = vunpack.c.l.b16 %v388
    %v1657 = vunpack.c.h.b16 %v388
    %v1658 = vunpack.c.l.b16 %v389
    %v1659 = vunpack.c.h.b16 %v389
    %v1660 = vunpack.c.l.b16 %v390
    %v1661 = vunpack.c.h.b16 %v390
    %v1662 = vunpack.c.l.b16 %v391
    %v1663 = vunpack.c.l.b16 %v392
    %v1664 = vunpack.c.h.b16 %v392
    %v1665 = vunpack.c.l.b16 %v393
    %v1666 = vunpack.c.h.b16 %v393
    %v1667 = vunpack.c.l.b16 %v394
    %v1668 = vunpack.c.h.b16 %v394
    %v1669 = vunpack.c.l.b16 %v395
    %v1670 = vunpack.c.l.b16 %v396
    %v1671 = vunpack.c.h.b16 %v396
    %v1672 = vunpack.c.l.b16 %v397
    %v1673 = vunpack.c.h.b16 %v397
    %v1674 = vunpack.c.l.b16 %v398
    %v1675 = vunpack.c.h.b16 %v398
    %v1676 = vunpack.c.l.b16 %v399
    %v1677 = vunpack.c.l.b16 %v400
    %v1678 = vunpack.c.h.b16 %v400
    %v1679 = vunpack.c.l.b16 %v401
    %v1680 = vunpack.c.h.b16 %v401
    %v1681 = vunpack.c.l.b16 %v402
    %v1682 = vunpack.c.h.b16 %v402
    %v1683 = vunpack.c.l.b16 %v403
    %v1684 = vunpack.c.l.b16 %v404
    %v1685 = vunpack.c.h.b16 %v404
    %v1686 = vunpack.c.l.b16 %v405
    %v1687 = vunpack.c.h.b16 %v405
    %v1688 = vunpack.c.l.b16 %v406
    %v1689 = vunpack.c.h.b16 %v406
    %v1690 = vunpack.c.l.b16 %v407
    %v1691 = vunpack.c.l.b16 %v408
    %v1692 = vunpack.c.h.b16 %v408
    %v1693 = vunpack.c.l.b16 %v409
    %v1694 = vunpack.c.h.b16 %v409
    %v1695 = vunpack.c.l.b16 %v410
    %v1696 = vunpack.c.h.b16 %v410
    %v1697 = vunpack.c.l.b16 %v411
    %v1698 = vunpack.c.l.b16 %v412
    %v1699 = vunpack.c.h.b16 %v412
    %v1700 = vunpack.c.l.b16 %v413
    %v1701 = vunpack.c.h.b16 %v413
    %v1702 = vunpack.c.l.b16 %v414
    %v1703 = vunpack.c.h.b16 %v414
    %v1704 = vunpack.c.l.b16 %v415
    %v1705 = vunpack.c.l.b16 %v416
    %v1706 = vunpack.c.h.b16 %v416
    %v1707 = vunpack.c.l.b16 %v417
    %v1708 = vunpack.c.h.b16 %v417
    %v1709 = vunpack.c.l.b16 %v418
    %v1710 = vunpack.c.h.b16 %v418
    %v1711 = vunpack.c.l.b16 %v419
    %v1712 = vunpack.c.l.b16 %v420
    %v1713 = vunpack.c.h.b16 %v420
    %v1714 = vunpack.c.l.b16 %v421
    %v1715 = vunpack.c.h.b16 %v421
    %v1716 = vunpack.c.l.b16 %v422
    %v1717 = vunpack.c.h.b16 %v422
    %v1718 = vunpack.c.l.b16 %v423
    %v1719 = vunpack.c.l.b16 %v424
    %v1720 = vunpack.c.h.b16 %v424
    %v1721 = vunpack.c.l.b16 %v425
    %v1722 = vunpack.c.h.b16 %v425
    %v1723 = vunpack.c.l.b16 %v426
    %v1724 = vunpack.c.h.b16 %v426
    %v1725 = vunpack.c.l.b16 %v427
    %v1726 = vunpack.c.l.b16 %v428
    %v1727 = vunpack.c.h.b16 %v428
    %v1728 = vunpack.c.l.b16 %v429
    %v1729 = vunpack.c.h.b16 %v429
    %v1730 = vunpack.c.l.b16 %v430
    %v1731 = vunpack.c.h.b16 %v430
    %v1732 = vunpack.c.l.b16 %v431
    %v1733 = vunpack.c.l.b16 %v432
    %v1734 = vunpack.c.h.b16 %v432
    %v1735 = vunpack.c.l.b16 %v433
    %v1736 = vunpack.c.h.b16 %v433
    %v1737 = vunpack.c.l.b16 %v434
    %v1738 = vunpack.c.h.b16 %v434
    %v1739 = vunpack.c.l.b16 %v435
    %v1740 = vunpack.c.l.b16 %v436
    %v1741 = vunpack.c.h.b16 %v436
    %v1742 = vunpack.c.l.b16 %v437
    %v1743 = vunpack.c.h.b16 %v437
    %v1744 = vunpack.c.l.b16 %v438
    %v1745 = vunpack.c.h.b16 %v438
    %v1746 = vunpack.c.l.b16 %v439
    %v1747 = vunpack.c.l.b16 %v440
    %v1748 = vunpack.c.h.b16 %v440
    %v1749 = vunpack.c.l.b16 %v441
    %v1750 = vunpack.c.h.b16 %v441
    %v1751 = vunpack.c.l.b16 %v442
    %v1752 = vunpack.c.h.b16 %v442
    %v1753 = vunpack.c.l.b16 %v443
    %v1754 = vunpack.c.l.b16 %v444
    %v1755 = vunpack.c.h.b16 %v444
    %v1756 = vunpack.c.l.b16 %v445
    %v1757 = vunpack.c.h.b16 %v445
    %v1758 = vunpack.c.l.b16 %v446
    %v1759 = vunpack.c.h.b16 %v446
    %v1760 = vunpack.c.l.b16 %v447
    %v1761 = vunpack.c.l.b16 %v448
    %v1762 = vunpack.c.h.b16 %v448
    %v1763 = vunpack.c.l.b16 %v449
    %v1764 = vunpack.c.h.b16 %v449
    %v1765 = vunpack.c.l.b16 %v450
    %v1766 = vunpack.c.h.b16 %v450
    %v1767 = vunpack.c.l.b16 %v451
    %v1768 = vunpack.c.l.b16 %v452
    %v1769 = vunpack.c.h.b16 %v452
    %v1770 = vunpack.c.l.b16 %v453
    %v1771 = vunpack.c.h.b16 %v453
    %v1772 = vunpack.c.l.b16 %v454
    %v1773 = vunpack.c.h.b16 %v454
    %v1774 = vunpack.c.l.b16 %v455
    %v1775 = vunpack.c.l.b16 %v456
    %v1776 = vunpack.c.h.b16 %v456
    %v1777 = vunpack.c.l.b16 %v457
    %v1778 = vunpack.c.h.b16 %v457
    %v1779 = vunpack.c.l.b16 %v458
    %v1780 = vunpack.c.h.b16 %v458
    %v1781 = vunpack.c.l.b16 %v459
    %v1782 = vunpack.c.l.b16 %v460
    %v1783 = vunpack.c.h.b16 %v460
    %v1784 = vunpack.c.l.b16 %v461
    %v1785 = vunpack.c.h.b16 %v461
    %v1786 = vunpack.c.l.b16 %v462
    %v1787 = vunpack.c.h.b16 %v462
    %v1788 = vunpack.c.l.b16 %v463
    %v1789 = vunpack.c.l.b16 %v464
    %v1790 = vunpack.c.h.b16 %v464
    %v1791 = vunpack.c.l.b16 %v465
    %v1792 = vunpack.c.h.b16 %v465
    %v1793 = vunpack.c.l.b16 %v466
    %v1794 = vunpack.c.h.b16 %v466
    %v1795 = vunpack.c.l.b16 %v467
    %v1796 = vunpack.c.l.b16 %v468
    %v1797 = vunpack.c.h.b16 %v468
    %v1798 = vunpack.c.l.b16 %v469
    %v1799 = vunpack.c.h.b16 %v469
    %v1800 = vunpack.c.l.b16 %v470
    %v1801 = vunpack.c.h.b16 %v470
    %v1802 = vunpack.c.l.b16 %v471
    %v1803 = vunpack.c.l.b16 %v472
    %v1804 = vunpack.c.h.b16 %v472
    %v1805 = vunpack.c.l.b16 %v473
    %v1806 = vunpack.c.h.b16 %v473
    %v1807 = vunpack.c.l.b16 %v474
    %v1808 = vunpack.c.h.b16 %v474
    %v1809 = vunpack.c.l.b16 %v475
    %v1810 = vunpack.c.l.b16 %v476
    %v1811 = vunpack.c.h.b16 %v476
    %v1812 = vunpack.c.l.b16 %v477
    %v1813 = vunpack.c.h.b16 %v477
    %v1814 = vunpack.c.l.b16 %v478
    %v1815 = vunpack.c.h.b16 %v478
    %v1816 = vunpack.c.l.b16 %v479
    %v1817 = vunpack.c.l.b16 %v480
    %v1818 = vunpack.c.h.b16 %v480
    %v1819 = vunpack.c.l.b16 %v481
    %v1820 = vunpack.c.h.b16 %v481
    %v1821 = vunpack.c.l.b16 %v482
    %v1822 = vunpack.c.h.b16 %v482
    %v1823 = vunpack.c.l.b16 %v483
    %v1824 = vunpack.c.l.b16 %v484
    %v1825 = vunpack.c.h.b16 %v484
    %v1826 = vunpack.c.l.b16 %v485
    %v1827 = vunpack.c.h.b16 %v485
    %v1828 = vunpack.c.l.b16 %v486
    %v1829 = vunpack.c.h.b16 %v486
    %v1830 = vunpack.c.l.b16 %v487
    %v1831 = vunpack.c.l.b16 %v488
    %v1832 = vunpack.c.h.b16 %v488
    %v1833 = vunpack.c.l.b16 %v489
    %v1834 = vunpack.c.h.b16 %v489
    %v1835 = vunpack.c.l.b16 %v490
    %v1836 = vunpack.c.h.b16 %v490
    %v1837 = vunpack.c.l.b16 %v491
    %v1838 = vunpack.c.l.b16 %v492
    %v1839 = vunpack.c.h.b16 %v492
    %v1840 = vunpack.c.l.b16 %v493
    %v1841 = vunpack.c.h.b16 %v493
    %v1842 = vunpack.c.l.b16 %v494
    %v1843 = vunpack.c.h.b16 %v494
    %v1844 = vunpack.c.l.b16 %v495
    %v1845 = vunpack.c.l.b16 %v496
    %v1846 = vunpack.c.h.b16 %v496
    %v1847 = vunpack.c.l.b16 %v497
    %v1848 = vunpack.c.h.b16 %v497
    %v1849 = vunpack.c.l.b16 %v498
    %v1850 = vunpack.c.h.b16 %v498
    %v1851 = vunpack.c.l.b16 %v499
    %v1852 = vunpack.c.l.b16 %v500
    %v1853 = vunpack.c.h.b16 %v500
    %v1854 = vunpack.c.l.b16 %v501
    %v1855 = vunpack.c.h.b16 %v501
    %v1856 = vunpack.c.l.b16 %v502
    %v1857 = vunpack.c.h.b16 %v502
    %v1858 = vunpack.c.l.b16 %v503
    %v1859 = vunpack.c.l.b16 %v504
    %v1860 = vunpack.c.h.b16 %v504
    %v1861 = vunpack.c.l.b16 %v505
    %v1862 = vunpack.c.h.b16 %v505
    %v1863 = vunpack.c.l.b16 %v506
    %v1864 = vunpack.c.h.b16 %v506
    %v1865 = vunpack.c.l.b16 %v507
    %v1866 = vunpack.c.l.b16 %v508
    %v1867 = vunpack.c.h.b16 %v508
    %v1868 = vunpack.c.l.b16 %v509
    %v1869 = vunpack.c.h.b16 %v509
    %v1870 = vunpack.c.l.b16 %v510
    %v1871 = vunpack.c.h.b16 %v510
    %v1872 = vunpack.c.l.b16 %v511
    %v1873 = vunpack.c.l.b16 %v512
    %v1874 = vunpack.c.h.b16 %v512
    %v1875 = vunpack.c.l.b16 %v513
    %v1876 = vunpack.c.h.b16 %v513
    %v1877 = vunpack.c.l.b16 %v514
    %v1878 = vunpack.c.h.b16 %v514
    %v1879 = vunpack.c.l.b16 %v515
    %v1880 = vunpack.c.l.b16 %v516
    %v1881 = vunpack.c.h.b16 %v516
    %v1882 = vunpack.c.l.b16 %v517
    %v1883 = vunpack.c.h.b16 %v517
    %v1884 = vunpack.c.l.b16 %v518
    %v1885 = vunpack.c.h.b16 %v518
    %v1886 = vunpack.c.l.b16 %v519
    %v1887 = vunpack.c.l.b16 %v520
    %v1888 = vunpack.c.h.b16 %v520
    %v1889 = vunpack.c.l.b16 %v521
    %v1890 = vunpack.c.h.b16 %v521
    %v1891 = vunpack.c.l.b16 %v522
    %v1892 = vunpack.c.h.b16 %v522
    %v1893 = vunpack.c.l.b16 %v523
    %v1894 = vunpack.c.l.b16 %v524
    %v1895 = vunpack.c.h.b16 %v524
    %v1896 = vunpack.c.l.b16 %v525
    %v1897 = vunpack.c.h.b16 %v525
    %v1898 = vunpack.c.l.b16 %v526
    %v1899 = vunpack.c.h.b16 %v526
    %v1900 = vunpack.c.l.b16 %v527
    %v1901 = vunpack.c.l.b16 %v528
    %v1902 = vunpack.c.h.b16 %v528
    %v1903 = vunpack.c.l.b16 %v529
    %v1904 = vunpack.c.h.b16 %v529
    %v1905 = vunpack.c.l.b16 %v530
    %v1906 = vunpack.c.h.b16 %v530
    %v1907 = vunpack.c.l.b16 %v531
    %v1908 = vunpack.c.l.b16 %v532
    %v1909 = vunpack.c.h.b16 %v532
    %v1910 = vunpack.c.l.b16 %v533
    %v1911 = vunpack.c.h.b16 %v533
    %v1912 = vunpack.c.l.b16 %v534
    %v1913 = vunpack.c.h.b16 %v534
    %v1914 = vunpack.c.l.b16 %v535
    %v1915 = vunpack.c.l.b16 %v536
    %v1916 = vunpack.c.h.b16 %v536
    %v1917 = vunpack.c.l.b16 %v537
    %v1918 = vunpack.c.h.b16 %v537
    %v1919 = vunpack.c.l.b16 %v538
    %v1920 = vunpack.c.h.b16 %v538
    %v1921 = vunpack.c.l.b16 %v539
    %v1922 = vunpack.c.l.b16 %v540
    %v1923 = vunpack.c.h.b16 %v540
    %v1924 = vunpack.c.l.b16 %v541
    %v1925 = vunpack.c.h.b16 %v541
    %v1926 = vunpack.c.l.b16 %v542
    %v1927 = vunpack.c.h.b16 %v542
    %v1928 = vunpack.c.l.b16 %v543
    %v1929 = vunpack.c.l.b16 %v544
    %v1930 = vunpack.c.h.b16 %v544
    %v1931 = vunpack.c.l.b16 %v545
    %v1932 = vunpack.c.h.b16 %v545
    %v1933 = vunpack.c.l.b16 %v546
    %v1934 = vunpack.c.h.b16 %v546
    %v1935 = vunpack.c.l.b16 %v547
    %v1936 = vunpack.c.l.b16 %v548
    %v1937 = vunpack.c.h.b16 %v548
    %v1938 = vunpack.c.l.b16 %v549
    %v1939 = vunpack.c.h.b16 %v549
    %v1940 = vunpack.c.l.b16 %v550
    %v1941 = vunpack.c.h.b16 %v550
    %v1942 = vunpack.c.l.b16 %v551
    %v1943 = vunpack.c.l.b16 %v552
    %v1944 = vunpack.c.h.b16 %v552
    %v1945 = vunpack.c.l.b16 %v553
    %v1946 = vunpack.c.h.b16 %v553
    %v1947 = vunpack.c.l.b16 %v554
    %v1948 = vunpack.c.h.b16 %v554
    %v1949 = vunpack.c.l.b16 %v555
    %v1950 = vunpack.c.l.b16 %v556
    %v1951 = vunpack.c.h.b16 %v556
    %v1952 = vunpack.c.l.b16 %v557
    %v1953 = vunpack.c.h.b16 %v557
    %v1954 = vunpack.c.l.b16 %v558
    %v1955 = vunpack.c.h.b16 %v558
    %v1956 = vunpack.c.l.b16 %v559
    %v1957 = vunpack.c.l.b16 %v560
    %v1958 = vunpack.c.h.b16 %v560
    %v1959 = vunpack.c.l.b16 %v561
    %v1960 = vunpack.c.h.b16 %v561
    %v1961 = vunpack.c.l.b16 %v562
    %v1962 = vunpack.c.h.b16 %v562
    %v1963 = vunpack.c.l.b16 %v563
    %v1964 = vunpack.c.l.b16 %v564
    %v1965 = vunpack.c.h.b16 %v564
    %v1966 = vunpack.c.l.b16 %v565
    %v1967 = vunpack.c.h.b16 %v565
    %v1968 = vunpack.c.l.b16 %v566
    %v1969 = vunpack.c.h.b16 %v566
    %v1970 = vunpack.c.l.b16 %v567
    %v1971 = vunpack.c.l.b16 %v568
    %v1972 = vunpack.c.h.b16 %v568
    %v1973 = vunpack.c.l.b16 %v569
    %v1974 = vunpack.c.h.b16 %v569
    %v1975 = vunpack.c.l.b16 %v570
    %v1976 = vunpack.c.h.b16 %v570
    %v1977 = vunpack.c.l.b16 %v571
    %v1978 = vunpack.c.l.b16 %v572
    %v1979 = vunpack.c.h.b16 %v572
    %v1980 = vunpack.c.l.b16 %v573
    %v1981 = vunpack.c.h.b16 %v573
    %v1982 = vunpack.c.l.b16 %v574
    %v1983 = vunpack.c.h.b16 %v574
    %v1984 = vunpack.c.l.b16 %v575
    %v1985 = vunpack.c.l.b16 %v576
    %v1986 = vunpack.c.h.b16 %v576
    %v1987 = vunpack.c.l.b16 %v577
    %v1988 = vunpack.c.h.b16 %v577
    %v1989 = vunpack.c.l.b16 %v578
    %v1990 = vunpack.c.h.b16 %v578
    %v1991 = vunpack.c.l.b16 %v579
    %v1992 = vunpack.c.l.b16 %v580
    %v1993 = vunpack.c.h.b16 %v580
    %v1994 = vunpack.c.l.b16 %v581
    %v1995 = vunpack.c.h.b16 %v581
    %v1996 = vunpack.c.l.b16 %v582
    %v1997 = vunpack.c.h.b16 %v582
    %v1998 = vunpack.c.l.b16 %v583
    %v1999 = vunpack.c.l.b16 %v584
    %v2000 = vunpack.c.h.b16 %v584
    %v2001 = vunpack.c.l.b16 %v585
    %v2002 = vunpack.c.h.b16 %v585
    %v2003 = vunpack.c.l.b16 %v586
    %v2004 = vunpack.c.h.b16 %v586
    %v2005 = vunpack.c.l.b16 %v587
    %v2006 = vunpack.c.l.b16 %v588
    %v2007 = vunpack.c.h.b16 %v588
    %v2008 = vunpack.c.l.b16 %v589
    %v2009 = vunpack.c.h.b16 %v589
    %v2010 = vunpack.c.l.b16 %v590
    %v2011 = vunpack.c.h.b16 %v590
    %v2012 = vunpack.c.l.b16 %v591
    %v2013 = vunpack.c.l.b16 %v592
    %v2014 = vunpack.c.h.b16 %v592
    %v2015 = vunpack.c.l.b16 %v593
    %v2016 = vunpack.c.h.b16 %v593
    %v2017 = vunpack.c.l.b16 %v594
    %v2018 = vunpack.c.h.b16 %v594
    %v2019 = vunpack.c.l.b16 %v595
    %v2020 = vunpack.c.l.b16 %v596
    %v2021 = vunpack.c.h.b16 %v596
    %v2022 = vunpack.c.l.b16 %v597
    %v2023 = vunpack.c.h.b16 %v597
    %v2024 = vunpack.c.l.b16 %v598
    %v2025 = vunpack.c.h.b16 %v598
    %v2026 = vunpack.c.l.b16 %v599
    %v2027 = vunpack.c.l.b16 %v600
    %v2028 = vunpack.c.h.b16 %v600
    %v2029 = vunpack.c.l.b16 %v601
    %v2030 = vunpack.c.h.b16 %v601
    %v2031 = vunpack.c.l.b16 %v602
    %v2032 = vunpack.c.h.b16 %v602
    %v2033 = vunpack.c.l.b16 %v603
    %v2034 = vunpack.c.l.b16 %v604
    %v2035 = vunpack.c.h.b16 %v604
    %v2036 = vunpack.c.l.b16 %v605
    %v2037 = vunpack.c.h.b16 %v605
    %v2038 = vunpack.c.l.b16 %v606
    %v2039 = vunpack.c.h.b16 %v606
    %v2040 = vunpack.c.l.b16 %v607
    %v2041 = vunpack.c.l.b16 %v608
    %v2042 = vunpack.c.h.b16 %v608
    %v2043 = vunpack.c.l.b16 %v609
    %v2044 = vunpack.c.h.b16 %v609
    %v2045 = vunpack.c.l.b16 %v610
    %v2046 = vunpack.c.h.b16 %v610
    %v2047 = vunpack.c.l.b16 %v611
    %v2048 = vunpack.c.l.b16 %v612
    %v2049 = vunpack.c.h.b16 %v612
    %v2050 = vunpack.c.l.b16 %v613
    %v2051 = vunpack.c.h.b16 %v613
    %v2052 = vunpack.c.l.b16 %v614
    %v2053 = vunpack.c.h.b16 %v614
    %v2054 = vunpack.c.l.b16 %v615
    %v2055 = vunpack.c.l.b16 %v616
    %v2056 = vunpack.c.h.b16 %v616
    %v2057 = vunpack.c.l.b16 %v617
    %v2058 = vunpack.c.h.b16 %v617
    %v2059 = vunpack.c.l.b16 %v618
    %v2060 = vunpack.c.h.b16 %v618
    %v2061 = vunpack.c.l.b16 %v619
    %v2062 = vunpack.c.l.b16 %v620
    %v2063 = vunpack.c.h.b16 %v620
    %v2064 = vunpack.c.l.b16 %v621
    %v2065 = vunpack.c.h.b16 %v621
    %v2066 = vunpack.c.l.b16 %v622
    %v2067 = vunpack.c.h.b16 %v622
    %v2068 = vunpack.c.l.b16 %v623
    %v2069 = vpack.c.b16 %v1180, %v1173
    %v2070 = vpack.c.b16 %v1181, %v1174
    %v2071 = vpack.c.b16 %v1182, %v1175
    %v2072 = vpack.c.b16 %v1183, %v1176
    %v2073 = vpack.c.b16 %v1184, %v1177
    %v2074 = vpack.c.b16 %v1185, %v1178
    %v2075 = vpack.c.b16 %v1186, %v1179
    %v2076 = vpack.c.b16 %v1194, %v1187
    %v2077 = vpack.c.b16 %v1195, %v1188
    %v2078 = vpack.c.b16 %v1196, %v1189
    %v2079 = vpack.c.b16 %v1197, %v1190
    %v2080 = vpack.c.b16 %v1198, %v1191
    %v2081 = vpack.c.b16 %v1199, %v1192
    %v2082 = vpack.c.b16 %v1200, %v1193
    %v2083 = vpack.c.b16 %v1208, %v1201
    %v2084 = vpack.c.b16 %v1209, %v1202
    %v2085 = vpack.c.b16 %v1210, %v1203
    %v2086 = vpack.c.b16 %v1211, %v1204
    %v2087 = vpack.c.b16 %v1212, %v1205
    %v2088 = vpack.c.b16 %v1213, %v1206
    %v2089 = vpack.c.b16 %v1214, %v1207
    %v2090 = vpack.c.b16 %v1222, %v1215
    %v2091 = vpack.c.b16 %v1223, %v1216
    %v2092 = vpack.c.b16 %v1224, %v1217
    %v2093 = vpack.c.b16 %v1225, %v1218
    %v2094 = vpack.c.b16 %v1226, %v1219
    %v2095 = vpack.c.b16 %v1227, %v1220
    %v2096 = vpack.c.b16 %v1228, %v1221
    %v2097 = vpack.c.b16 %v1236, %v1229
    %v2098 = vpack.c.b16 %v1237, %v1230
    %v2099 = vpack.c.b16 %v1238, %v1231
    %v2100 = vpack.c.b16 %v1239, %v1232
    %v2101 = vpack.c.b16 %v1240, %v1233
    %v2102 = vpack.c.b16 %v1241, %v1234
    %v2103 = vpack.c.b16 %v1242, %v1235
    %v2104 = vpack.c.b16 %v1250, %v1243
    %v2105 = vpack.c.b16 %v1251, %v1244
    %v2106 = vpack.c.b16 %v1252, %v1245
    %v2107 = vpack.c.b16 %v1253, %v1246
    %v2108 = vpack.c.b16 %v1254, %v1247
    %v2109 = vpack.c.b16 %v1255, %v1248
    %v2110 = vpack.c.b16 %v1256, %v1249
    %v2111 = vpack.c.b16 %v1264, %v1257
    %v2112 = vpack.c.b16 %v1265, %v1258
    %v2113 = vpack.c.b16 %v1266, %v1259
    %v2114 = vpack.c.b16 %v1267, %v1260
    %v2115 = vpack.c.b16 %v1268, %v1261
    %v2116 = vpack.c.b16 %v1269, %v1262
    %v2117 = vpack.c.b16 %v1270, %v1263
    %v2118 = vpack.c.b16 %v1278, %v1271
    %v2119 = vpack.c.b16 %v1279, %v1272
    %v2120 = vpack.c.b16 %v1280, %v1273
    %v2121 = vpack.c.b16 %v1281, %v1274
    %v2122 = vpack.c.b16 %v1282, %v1275
    %v2123 = vpack.c.b16 %v1283, %v1276
    %v2124 = vpack.c.b16 %v1284, %v1277
    %v2125 = vpack.c.b16 %v1292, %v1285
    %v2126 = vpack.c.b16 %v1293, %v1286
    %v2127 = vpack.c.b16 %v1294, %v1287
    %v2128 = vpack.c.b16 %v1295, %v1288
    %v2129 = vpack.c.b16 %v1296, %v1289
    %v2130 = vpack.c.b16 %v1297, %v1290
    %v2131 = vpack.c.b16 %v1298, %v1291
    %v2132 = vpack.c.b16 %v1306, %v1299
    %v2133 = vpack.c.b16 %v1307, %v1300
    %v2134 = vpack.c.b16 %v1308, %v1301
    %v2135 = vpack.c.b16 %v1309, %v1302
    %v2136 = vpack.c.b16 %v1310, %v1303
    %v2137 = vpack.c.b16 %v1311, %v1304
    %v2138 = vpack.c.b16 %v1312, %v1305
    %v2139 = vpack.c.b16 %v1320, %v1313
    %v2140 = vpack.c.b16 %v1321, %v1314
    %v2141 = vpack.c.b16 %v1322, %v1315
    %v2142 = vpack.c.b16 %v1323, %v1316
    %v2143 = vpack.c.b16 %v1324, %v1317
    %v2144 = vpack.c.b16 %v1325, %v1318
    %v2145 = vpack.c.b16 %v1326, %v1319
    %v2146 = vpack.c.b16 %v1334, %v1327
    %v2147 = vpack.c.b16 %v1335, %v1328
    %v2148 = vpack.c.b16 %v1336, %v1329
    %v2149 = vpack.c.b16 %v1337, %v1330
    %v2150 = vpack.c.b16 %v1338, %v1331
    %v2151 = vpack.c.b16 %v1339, %v1332
    %v2152 = vpack.c.b16 %v1340, %v1333
    %v2153 = vpack.c.b16 %v1348, %v1341
    %v2154 = vpack.c.b16 %v1349, %v1342
    %v2155 = vpack.c.b16 %v1350, %v1343
    %v2156 = vpack.c.b16 %v1351, %v1344
    %v2157 = vpack.c.b16 %v1352, %v1345
    %v2158 = vpack.c.b16 %v1353, %v1346
    %v2159 = vpack.c.b16 %v1354, %v1347
    %v2160 = vpack.c.b16 %v1362, %v1355
    %v2161 = vpack.c.b16 %v1363, %v1356
    %v2162 = vpack.c.b16 %v1364, %v1357
    %v2163 = vpack.c.b16 %v1365, %v1358
    %v2164 = vpack.c.b16 %v1366, %v1359
    %v2165 = vpack.c.b16 %v1367, %v1360
    %v2166 = vpack.c.b16 %v1368, %v1361
    %v2167 = vpack.c.b16 %v1376, %v1369
    %v2168 = vpack.c.b16 %v1377, %v1370
    %v2169 = vpack.c.b16 %v1378, %v1371
    %v2170 = vpack.c.b16 %v1379, %v1372
    %v2171 = vpack.c.b16 %v1380, %v1373
    %v2172 = vpack.c.b16 %v1381, %v1374
    %v2173 = vpack.c.b16 %v1382, %v1375
    %v2174 = vpack.c.b16 %v1390, %v1383
    %v2175 = vpack.c.b16 %v1391, %v1384
    %v2176 = vpack.c.b16 %v1392, %v1385
    %v2177 = vpack.c.b16 %v1393, %v1386
    %v2178 = vpack.c.b16 %v1394, %v1387
    %v2179 = vpack.c.b16 %v1395, %v1388
    %v2180 = vpack.c.b16 %v1396, %v1389
    %v2181 = vpack.c.b16 %v1404, %v1397
    %v2182 = vpack.c.b16 %v1405, %v1398
    %v2183 = vpack.c.b16 %v1406, %v1399
    %v2184 = vpack.c.b16 %v1407, %v1400
    %v2185 = vpack.c.b16 %v1408, %v1401
    %v2186 = vpack.c.b16 %v1409, %v1402
    %v2187 = vpack.c.b16 %v1410, %v1403
    %v2188 = vpack.c.b16 %v1418, %v1411
    %v2189 = vpack.c.b16 %v1419, %v1412
    %v2190 = vpack.c.b16 %v1420, %v1413
    %v2191 = vpack.c.b16 %v1421, %v1414
    %v2192 = vpack.c.b16 %v1422, %v1415
    %v2193 = vpack.c.b16 %v1423, %v1416
    %v2194 = vpack.c.b16 %v1424, %v1417
    %v2195 = vpack.c.b16 %v1432, %v1425
    %v2196 = vpack.c.b16 %v1433, %v1426
    %v2197 = vpack.c.b16 %v1434, %v1427
    %v2198 = vpack.c.b16 %v1435, %v1428
    %v2199 = vpack.c.b16 %v1436, %v1429
    %v2200 = vpack.c.b16 %v1437, %v1430
    %v2201 = vpack.c.b16 %v1438, %v1431
    %v2202 = vpack.c.b16 %v1446, %v1439
    %v2203 = vpack.c.b16 %v1447, %v1440
    %v2204 = vpack.c.b16 %v1448, %v1441
    %v2205 = vpack.c.b16 %v1449, %v1442
    %v2206 = vpack.c.b16 %v1450, %v1443
    %v2207 = vpack.c.b16 %v1451, %v1444
    %v2208 = vpack.c.b16 %v1452, %v1445
    %v2209 = vpack.c.b16 %v1460, %v1453
    %v2210 = vpack.c.b16 %v1461, %v1454
    %v2211 = vpack.c.b16 %v1462, %v1455
    %v2212 = vpack.c.b16 %v1463, %v1456
    %v2213 = vpack.c.b16 %v1464, %v1457
    %v2214 = vpack.c.b16 %v1465, %v1458
    %v2215 = vpack.c.b16 %v1466, %v1459
    %v2216 = vpack.c.b16 %v1474, %v1467
    %v2217 = vpack.c.b16 %v1475, %v1468
    %v2218 = vpack.c.b16 %v1476, %v1469
    %v2219 = vpack.c.b16 %v1477, %v1470
    %v2220 = vpack.c.b16 %v1478, %v1471
    %v2221 = vpack.c.b16 %v1479, %v1472
    %v2222 = vpack.c.b16 %v1480, %v1473
    %v2223 = vpack.c.b16 %v1488, %v1481
    %v2224 = vpack.c.b16 %v1489, %v1482
    %v2225 = vpack.c.b16 %v1490, %v1483
    %v2226 = vpack.c.b16 %v1491, %v1484
    %v2227 = vpack.c.b16 %v1492, %v1485
    %v2228 = vpack.c.b16 %v1493, %v1486
    %v2229 = vpack.c.b16 %v1494, %v1487
    %v2230 = vpack.c.b16 %v1502, %v1495
    %v2231 = vpack.c.b16 %v1503, %v1496
    %v2232 = vpack.c.b16 %v1504, %v1497
    %v2233 = vpack.c.b16 %v1505, %v1498
    %v2234 = vpack.c.b16 %v1506, %v1499
    %v2235 = vpack.c.b16 %v1507, %v1500
    %v2236 = vpack.c.b16 %v1508, %v1501
    %v2237 = vpack.c.b16 %v1516, %v1509
    %v2238 = vpack.c.b16 %v1517, %v1510
    %v2239 = vpack.c.b16 %v1518, %v1511
    %v2240 = vpack.c.b16 %v1519, %v1512
    %v2241 = vpack.c.b16 %v1520, %v1513
    %v2242 = vpack.c.b16 %v1521, %v1514
    %v2243 = vpack.c.b16 %v1522, %v1515
    %v2244 = vpack.c.b16 %v1530, %v1523
    %v2245 = vpack.c.b16 %v1531, %v1524
    %v2246 = vpack.c.b16 %v1532, %v1525
    %v2247 = vpack.c.b16 %v1533, %v1526
    %v2248 = vpack.c.b16 %v1534, %v1527
    %v2249 = vpack.c.b16 %v1535, %v1528
    %v2250 = vpack.c.b16 %v1536, %v1529
    %v2251 = vpack.c.b16 %v1544, %v1537
    %v2252 = vpack.c.b16 %v1545, %v1538
    %v2253 = vpack.c.b16 %v1546, %v1539
    %v2254 = vpack.c.b16 %v1547, %v1540
    %v2255 = vpack.c.b16 %v1548, %v1541
    %v2256 = vpack.c.b16 %v1549, %v1542
    %v2257 = vpack.c.b16 %v1550, %v1543
    %v2258 = vpack.c.b16 %v1558, %v1551
    %v2259 = vpack.c.b16 %v1559, %v1552
    %v2260 = vpack.c.b16 %v1560, %v1553
    %v2261 = vpack.c.b16 %v1561, %v1554
    %v2262 = vpack.c.b16 %v1562, %v1555
    %v2263 = vpack.c.b16 %v1563, %v1556
    %v2264 = vpack.c.b16 %v1564, %v1557
    %v2265 = vpack.c.b16 %v1572, %v1565
    %v2266 = vpack.c.b16 %v1573, %v1566
    %v2267 = vpack.c.b16 %v1574, %v1567
    %v2268 = vpack.c.b16 %v1575, %v1568
    %v2269 = vpack.c.b16 %v1576, %v1569
    %v2270 = vpack.c.b16 %v1577, %v1570
    %v2271 = vpack.c.b16 %v1578, %v1571
    %v2272 = vpack.c.b16 %v1586, %v1579
    %v2273 = vpack.c.b16 %v1587, %v1580
    %v2274 = vpack.c.b16 %v1588, %v1581
    %v2275 = vpack.c.b16 %v1589, %v1582
    %v2276 = vpack.c.b16 %v1590, %v1583
    %v2277 = vpack.c.b16 %v1591, %v1584
    %v2278 = vpack.c.b16 %v1592, %v1585
    %v2279 = vpack.c.b16 %v1600, %v1593
    %v2280 = vpack.c.b16 %v1601, %v1594
    %v2281 = vpack.c.b16 %v1602, %v1595
    %v2282 = vpack.c.b16 %v1603, %v1596
    %v2283 = vpack.c.b16 %v1604, %v1597
    %v2284 = vpack.c.b16 %v1605, %v1598
    %v2285 = vpack.c.b16 %v1606, %v1599
    %v2286 = vpack.c.b16 %v1614, %v1607
    %v2287 = vpack.c.b16 %v1615, %v1608
    %v2288 = vpack.c.b16 %v1616, %v1609
    %v2289 = vpack.c.b16 %v1617, %v1610
    %v2290 = vpack.c.b16 %v1618, %v1611
    %v2291 = vpack.c.b16 %v1619, %v1612
    %v2292 = vpack.c.b16 %v1620, %v1613
    %v2293 = vpack.c.b16 %v1628, %v1621
    %v2294 = vpack.c.b16 %v1629, %v1622
    %v2295 = vpack.c.b16 %v1630, %v1623
    %v2296 = vpack.c.b16 %v1631, %v1624
    %v2297 = vpack.c.b16 %v1632, %v1625
    %v2298 = vpack.c.b16 %v1633, %v1626
    %v2299 = vpack.c.b16 %v1634, %v1627
    %v2300 = vpack.c.b16 %v1642, %v1635
    %v2301 = vpack.c.b16 %v1643, %v1636
    %v2302 = vpack.c.b16 %v1644, %v1637
    %v2303 = vpack.c.b16 %v1645, %v1638
    %v2304 = vpack.c.b16 %v1646, %v1639
    %v2305 = vpack.c.b16 %v1647, %v1640
    %v2306 = vpack.c.b16 %v1648, %v1641
    %v2307 = vpack.c.b16 %v1656, %v1649
    %v2308 = vpack.c.b16 %v1657, %v1650
    %v2309 = vpack.c.b16 %v1658, %v1651
    %v2310 = vpack.c.b16 %v1659, %v1652
    %v2311 = vpack.c.b16 %v1660, %v1653
    %v2312 = vpack.c.b16 %v1661, %v1654
    %v2313 = vpack.c.b16 %v1662, %v1655
    %v2314 = vpack.c.b16 %v1670, %v1663
    %v2315 = vpack.c.b16 %v1671, %v1664
    %v2316 = vpack.c.b16 %v1672, %v1665
    %v2317 = vpack.c.b16 %v1673, %v1666
    %v2318 = vpack.c.b16 %v1674, %v1667
    %v2319 = vpack.c.b16 %v1675, %v1668
    %v2320 = vpack.c.b16 %v1676, %v1669
    %v2321 = vpack.c.b16 %v1684, %v1677
    %v2322 = vpack.c.b16 %v1685, %v1678
    %v2323 = vpack.c.b16 %v1686, %v1679
    %v2324 = vpack.c.b16 %v1687, %v1680
    %v2325 = vpack.c.b16 %v1688, %v1681
    %v2326 = vpack.c.b16 %v1689, %v1682
    %v2327 = vpack.c.b16 %v1690, %v1683
    %v2328 = vpack.c.b16 %v1698, %v1691
    %v2329 = vpack.c.b16 %v1699, %v1692
    %v2330 = vpack.c.b16 %v1700, %v1693
    %v2331 = vpack.c.b16 %v1701, %v1694
    %v2332 = vpack.c.b16 %v1702, %v1695
    %v2333 = vpack.c.b16 %v1703, %v1696
    %v2334 = vpack.c.b16 %v1704, %v1697
    %v2335 = vpack.c.b16 %v1712, %v1705
    %v2336 = vpack.c.b16 %v1713, %v1706
    %v2337 = vpack.c.b16 %v1714, %v1707
    %v2338 = vpack.c.b16 %v1715, %v1708
    %v2339 = vpack.c.b16 %v1716, %v1709
    %v2340 = vpack.c.b16 %v1717, %v1710
    %v2341 = vpack.c.b16 %v1718, %v1711
    %v2342 = vpack.c.b16 %v1726, %v1719
    %v2343 = vpack.c.b16 %v1727, %v1720
    %v2344 = vpack.c.b16 %v1728, %v1721
    %v2345 = vpack.c.b16 %v1729, %v1722
    %v2346 = vpack.c.b16 %v1730, %v1723
    %v2347 = vpack.c.b16 %v1731, %v1724
    %v2348 = vpack.c.b16 %v1732, %v1725
    %v2349 = vpack.c.b16 %v1740, %v1733
    %v2350 = vpack.c.b16 %v1741, %v1734
    %v2351 = vpack.c.b16 %v1742, %v1735
    %v2352 = vpack.c.b16 %v1743, %v1736
    %v2353 = vpack.c.b16 %v1744, %v1737
    %v2354 = vpack.c.b16 %v1745, %v1738
    %v2355 = vpack.c.b16 %v1746, %v1739
    %v2356 = vpack.c.b16 %v1754, %v1747
    %v2357 = vpack.c.b16 %v1755, %v1748
    %v2358 = vpack.c.b16 %v1756, %v1749
    %v2359 = vpack.c.b16 %v1757, %v1750
    %v2360 = vpack.c.b16 %v1758, %v1751
    %v2361 = vpack.c.b16 %v1759, %v1752
    %v2362 = vpack.c.b16 %v1760, %v1753
    %v2363 = vpack.c.b16 %v1768, %v1761
    %v2364 = vpack.c.b16 %v1769, %v1762
    %v2365 = vpack.c.b16 %v1770, %v1763
    %v2366 = vpack.c.b16 %v1771, %v1764
    %v2367 = vpack.c.b16 %v1772, %v1765
    %v2368 = vpack.c.b16 %v1773, %v1766
    %v2369 = vpack.c.b16 %v1774, %v1767
    %v2370 = vpack.c.b16 %v1782, %v1775
    %v2371 = vpack.c.b16 %v1783, %v1776
    %v2372 = vpack.c.b16 %v1784, %v1777
    %v2373 = vpack.c.b16 %v1785, %v1778
    %v2374 = vpack.c.b16 %v1786, %v1779
    %v2375 = vpack.c.b16 %v1787, %v1780
    %v2376 = vpack.c.b16 %v1788, %v1781
    %v2377 = vpack.c.b16 %v1796, %v1789
    %v2378 = vpack.c.b16 %v1797, %v1790
    %v2379 = vpack.c.b16 %v1798, %v1791
    %v2380 = vpack.c.b16 %v1799, %v1792
    %v2381 = vpack.c.b16 %v1800, %v1793
    %v2382 = vpack.c.b16 %v1801, %v1794
    %v2383 = vpack.c.b16 %v1802, %v1795
    %v2384 = vpack.c.b16 %v1810, %v1803
    %v2385 = vpack.c.b16 %v1811, %v1804
    %v2386 = vpack.c.b16 %v1812, %v1805
    %v2387 = vpack.c.b16 %v1813, %v1806
    %v2388 = vpack.c.b16 %v1814, %v1807
    %v2389 = vpack.c.b16 %v1815, %v1808
    %v2390 = vpack.c.b16 %v1816, %v1809
    %v2391 = vpack.c.b16 %v1824, %v1817
    %v2392 = vpack.c.b16 %v1825, %v1818
    %v2393 = vpack.c.b16 %v1826, %v1819
    %v2394 = vpack.c.b16 %v1827, %v1820
    %v2395 = vpack.c.b16 %v1828, %v1821
    %v2396 = vpack.c.b16 %v1829, %v1822
    %v2397 = vpack.c.b16 %v1830, %v1823
    %v2398 = vpack.c.b16 %v1838, %v1831
    %v2399 = vpack.c.b16 %v1839, %v1832
    %v2400 = vpack.c.b16 %v1840, %v1833
    %v2401 = vpack.c.b16 %v1841, %v1834
    %v2402 = vpack.c.b16 %v1842, %v1835
    %v2403 = vpack.c.b16 %v1843, %v1836
    %v2404 = vpack.c.b16 %v1844, %v1837
    %v2405 = vpack.c.b16 %v1852, %v1845
    %v2406 = vpack.c.b16 %v1853, %v1846
    %v2407 = vpack.c.b16 %v1854, %v1847
    %v2408 = vpack.c.b16 %v1855, %v1848
    %v2409 = vpack.c.b16 %v1856, %v1849
    %v2410 = vpack.c.b16 %v1857, %v1850
    %v2411 = vpack.c.b16 %v1858, %v1851
    %v2412 = vpack.c.b16 %v1866, %v1859
    %v2413 = vpack.c.b16 %v1867, %v1860
    %v2414 = vpack.c.b16 %v1868, %v1861
    %v2415 = vpack.c.b16 %v1869, %v1862
    %v2416 = vpack.c.b16 %v1870, %v1863
    %v2417 = vpack.c.b16 %v1871, %v1864
    %v2418 = vpack.c.b16 %v1872, %v1865
    %v2419 = vpack.c.b16 %v1880, %v1873
    %v2420 = vpack.c.b16 %v1881, %v1874
    %v2421 = vpack.c.b16 %v1882, %v1875
    %v2422 = vpack.c.b16 %v1883, %v1876
    %v2423 = vpack.c.b16 %v1884, %v1877
    %v2424 = vpack.c.b16 %v1885, %v1878
    %v2425 = vpack.c.b16 %v1886, %v1879
    %v2426 = vpack.c.b16 %v1894, %v1887
    %v2427 = vpack.c.b16 %v1895, %v1888
    %v2428 = vpack.c.b16 %v1896, %v1889
    %v2429 = vpack.c.b16 %v1897, %v1890
    %v2430 = vpack.c.b16 %v1898, %v1891
    %v2431 = vpack.c.b16 %v1899, %v1892
    %v2432 = vpack.c.b16 %v1900, %v1893
    %v2433 = vpack.c.b16 %v1908, %v1901
    %v2434 = vpack.c.b16 %v1909, %v1902
    %v2435 = vpack.c.b16 %v1910, %v1903
    %v2436 = vpack.c.b16 %v1911, %v1904
    %v2437 = vpack.c.b16 %v1912, %v1905
    %v2438 = vpack.c.b16 %v1913, %v1906
    %v2439 = vpack.c.b16 %v1914, %v1907
    %v2440 = vpack.c.b16 %v1922, %v1915
    %v2441 = vpack.c.b16 %v1923, %v1916
    %v2442 = vpack.c.b16 %v1924, %v1917
    %v2443 = vpack.c.b16 %v1925, %v1918
    %v2444 = vpack.c.b16 %v1926, %v1919
    %v2445 = vpack.c.b16 %v1927, %v1920
    %v2446 = vpack.c.b16 %v1928, %v1921
    %v2447 = vpack.c.b16 %v1936, %v1929
    %v2448 = vpack.c.b16 %v1937, %v1930
    %v2449 = vpack.c.b16 %v1938, %v1931
    %v2450 = vpack.c.b16 %v1939, %v1932
    %v2451 = vpack.c.b16 %v1940, %v1933
    %v2452 = vpack.c.b16 %v1941, %v1934
    %v2453 = vpack.c.b16 %v1942, %v1935
    %v2454 = vpack.c.b16 %v1950, %v1943
    %v2455 = vpack.c.b16 %v1951, %v1944
    %v2456 = vpack.c.b16 %v1952, %v1945
    %v2457 = vpack.c.b16 %v1953, %v1946
    %v2458 = vpack.c.b16 %v1954, %v1947
    %v2459 = vpack.c.b16 %v1955, %v1948
    %v2460 = vpack.c.b16 %v1956, %v1949
    %v2461 = vpack.c.b16 %v1964, %v1957
    %v2462 = vpack.c.b16 %v1965, %v1958
    %v2463 = vpack.c.b16 %v1966, %v1959
    %v2464 = vpack.c.b16 %v1967, %v1960
    %v2465 = vpack.c.b16 %v1968, %v1961
    %v2466 = vpack.c.b16 %v1969, %v1962
    %v2467 = vpack.c.b16 %v1970, %v1963
    %v2468 = vpack.c.b16 %v1978, %v1971
    %v2469 = vpack.c.b16 %v1979, %v1972
    %v2470 = vpack.c.b16 %v1980, %v1973
    %v2471 = vpack.c.b16 %v1981, %v1974
    %v2472 = vpack.c.b16 %v1982, %v1975
    %v2473 = vpack.c.b16 %v1983, %v1976
    %v2474 = vpack.c.b16 %v1984, %v1977
    %v2475 = vpack.c.b16 %v1992, %v1985
    %v2476 = vpack.c.b16 %v1993, %v1986
    %v2477 = vpack.c.b16 %v1994, %v1987
    %v2478 = vpack.c.b16 %v1995, %v1988
    %v2479 = vpack.c.b16 %v1996, %v1989
    %v2480 = vpack.c.b16 %v1997, %v1990
    %v2481 = vpack.c.b16 %v1998, %v1991
    %v2482 = vpack.c.b16 %v2006, %v1999
    %v2483 = vpack.c.b16 %v2007, %v2000
    %v2484 = vpack.c.b16 %v2008, %v2001
    %v2485 = vpack.c.b16 %v2009, %v2002
    %v2486 = vpack.c.b16 %v2010, %v2003
    %v2487 = vpack.c.b16 %v2011, %v2004
    %v2488 = vpack.c.b16 %v2012, %v2005
    %v2489 = vpack.c.b16 %v2020, %v2013
    %v2490 = vpack.c.b16 %v2021, %v2014
    %v2491 = vpack.c.b16 %v2022, %v2015
    %v2492 = vpack.c.b16 %v2023, %v2016
    %v2493 = vpack.c.b16 %v2024, %v2017
    %v2494 = vpack.c.b16 %v2025, %v2018
    %v2495 = vpack.c.b16 %v2026, %v2019
    %v2496 = vpack.c.b16 %v2034, %v2027
    %v2497 = vpack.c.b16 %v2035, %v2028
    %v2498 = vpack.c.b16 %v2036, %v2029
    %v2499 = vpack.c.b16 %v2037, %v2030
    %v2500 = vpack.c.b16 %v2038, %v2031
    %v2501 = vpack.c.b16 %v2039, %v2032
    %v2502 = vpack.c.b16 %v2040, %v2033
    %v2503 = vpack.c.b16 %v2048, %v2041
    %v2504 = vpack.c.b16 %v2049, %v2042
    %v2505 = vpack.c.b16 %v2050, %v2043
    %v2506 = vpack.c.b16 %v2051, %v2044
    %v2507 = vpack.c.b16 %v2052, %v2045
    %v2508 = vpack.c.b16 %v2053, %v2046
    %v2509 = vpack.c.b16 %v2054, %v2047
    %v2510 = vpack.c.b16 %v2062, %v2055
    %v2511 = vpack.c.b16 %v2063, %v2056
    %v2512 = vpack.c.b16 %v2064, %v2057
    %v2513 = vpack.c.b16 %v2065, %v2058
    %v2514 = vpack.c.b16 %v2066, %v2059
    %v2515 = vpack.c.b16 %v2067, %v2060
    %v2516 = vpack.c.b16 %v2068, %v2061
    %2965 = vmatprep.subr.bf16.mxu0 %v2119
    %2966 = vmatpush1.bf16.msra.mxu0 %v2118
    %2967 = vmatprep.subr.bf16.mxu0 %v2112
    %2968 = vmatpush1.bf16.msra.mxu0 %v2111
    %2969 = vmatprep.subr.bf16.mxu0 %v2105
    %2970 = vmatpush1.bf16.msra.mxu0 %v2104
    %2971 = vmatprep.subr.bf16.mxu0 %v2098
    %2972 = vmatpush1.bf16.msra.mxu0 %v2097
    %2973 = vmatprep.subr.bf16.mxu0 %v2091
    %2974 = vmatpush1.bf16.msra.mxu0 %v2090
    %2975 = vmatprep.subr.bf16.mxu0 %v2084
    %2976 = vmatpush1.bf16.msra.mxu0 %v2083
    %2977 = vmatprep.subr.bf16.mxu0 %v2077
    %2978 = vmatpush1.bf16.msra.mxu0 %v2076
    %2979 = vmatprep.subr.bf16.mxu0 %v2070
    %2980 = vmatpush1.bf16.msra.mxu0 %v2069
    %2981 = vmatprep.subr.bf16.mxu0 %v2175
    %2982 = vmatpush2.bf16.msra.mxu0 %v2174
    %2983 = vmatprep.subr.bf16.mxu0 %v2168
    %2984 = vmatpush2.bf16.msra.mxu0 %v2167
    %2985 = vmatprep.subr.bf16.mxu0 %v2161
    %2986 = vmatpush2.bf16.msra.mxu0 %v2160
    %2987 = vmatprep.subr.bf16.mxu0 %v2154
    %2988 = vmatpush2.bf16.msra.mxu0 %v2153
    %2989 = vmatprep.subr.bf16.mxu0 %v2147
    %2990 = vmatpush2.bf16.msra.mxu0 %v2146
    %2991 = vmatprep.subr.bf16.mxu0 %v2140
    %2992 = vmatpush2.bf16.msra.mxu0 %v2139
    %2993 = vmatprep.subr.bf16.mxu0 %v2133
    %2994 = vmatpush2.bf16.msra.mxu0 %v2132
    %2995 = vmatprep.subr.bf16.mxu0 %v2126
    %2996 = vmatpush2.bf16.msra.mxu0 %v2125
    %2997 = vmatprep.mubr.bf16.mxu0 %v105
    %2998 = vmatmul.mubr.bf16.gmra.mxu0 %v104
    %v2999 = vpop.f32.mrf.mxu0
    %v3000 = vadd.f32 %v629, %v2999
    %v3001 = vpop.f32.mrf.mxu0
    %v3002 = vadd.f32 %v633, %v3001
    %v3003 = vpop.f32.mrf.mxu0
    %v3004 = vpop.f32.mrf.mxu0
    %3005 = vdwg.mxu0
    %3006 = vmatprep.subr.bf16.mxu0 %v2231
    %3007 = vmatpush1.bf16.msra.mxu0 %v2230
    %3008 = vmatprep.subr.bf16.mxu0 %v2224
    %3009 = vmatpush1.bf16.msra.mxu0 %v2223
    %3010 = vmatprep.subr.bf16.mxu0 %v2217
    %3011 = vmatpush1.bf16.msra.mxu0 %v2216
    %3012 = vmatprep.subr.bf16.mxu0 %v2210
    %3013 = vmatpush1.bf16.msra.mxu0 %v2209
    %3014 = vmatprep.subr.bf16.mxu0 %v2203
    %3015 = vmatpush1.bf16.msra.mxu0 %v2202
    %3016 = vmatprep.subr.bf16.mxu0 %v2196
    %3017 = vmatpush1.bf16.msra.mxu0 %v2195
    %3018 = vmatprep.subr.bf16.mxu0 %v2189
    %3019 = vmatpush1.bf16.msra.mxu0 %v2188
    %3020 = vmatprep.subr.bf16.mxu0 %v2182
    %3021 = vmatpush1.bf16.msra.mxu0 %v2181
    %3022 = vmatprep.subr.bf16.mxu0 %v2287
    %3023 = vmatpush2.bf16.msra.mxu0 %v2286
    %3024 = vmatprep.subr.bf16.mxu0 %v2280
    %3025 = vmatpush2.bf16.msra.mxu0 %v2279
    %3026 = vmatprep.subr.bf16.mxu0 %v2273
    %3027 = vmatpush2.bf16.msra.mxu0 %v2272
    %3028 = vmatprep.subr.bf16.mxu0 %v2266
    %3029 = vmatpush2.bf16.msra.mxu0 %v2265
    %3030 = vmatprep.subr.bf16.mxu0 %v2259
    %3031 = vmatpush2.bf16.msra.mxu0 %v2258
    %3032 = vmatprep.subr.bf16.mxu0 %v2252
    %3033 = vmatpush2.bf16.msra.mxu0 %v2251
    %3034 = vmatprep.subr.bf16.mxu0 %v2245
    %3035 = vmatpush2.bf16.msra.mxu0 %v2244
    %3036 = vmatprep.subr.bf16.mxu0 %v2238
    %3037 = vmatpush2.bf16.msra.mxu0 %v2237
    %3038 = vmatprep.mubr.bf16.mxu0 %v107
    %3039 = vmatmul.mubr.bf16.gmra.mxu0 %v106
    %v3040 = vpop.f32.mrf.mxu0
    %v3041 = vadd.f32 %v3000, %v3040
    %v3042 = vpop.f32.mrf.mxu0
    %v3043 = vadd.f32 %v3002, %v3042
    %v3044 = vpop.f32.mrf.mxu0
    %v3045 = vpop.f32.mrf.mxu0
    %3046 = vdwg.mxu0
    %3047 = vmatprep.subr.bf16.mxu0 %v2343
    %3048 = vmatpush1.bf16.msra.mxu0 %v2342
    %3049 = vmatprep.subr.bf16.mxu0 %v2336
    %3050 = vmatpush1.bf16.msra.mxu0 %v2335
    %3051 = vmatprep.subr.bf16.mxu0 %v2329
    %3052 = vmatpush1.bf16.msra.mxu0 %v2328
    %3053 = vmatprep.subr.bf16.mxu0 %v2322
    %3054 = vmatpush1.bf16.msra.mxu0 %v2321
    %3055 = vmatprep.subr.bf16.mxu0 %v2315
    %3056 = vmatpush1.bf16.msra.mxu0 %v2314
    %3057 = vmatprep.subr.bf16.mxu0 %v2308
    %3058 = vmatpush1.bf16.msra.mxu0 %v2307
    %3059 = vmatprep.subr.bf16.mxu0 %v2301
    %3060 = vmatpush1.bf16.msra.mxu0 %v2300
    %3061 = vmatprep.subr.bf16.mxu0 %v2294
    %3062 = vmatpush1.bf16.msra.mxu0 %v2293
    %3063 = vmatprep.subr.bf16.mxu0 %v2399
    %3064 = vmatpush2.bf16.msra.mxu0 %v2398
    %3065 = vmatprep.subr.bf16.mxu0 %v2392
    %3066 = vmatpush2.bf16.msra.mxu0 %v2391
    %3067 = vmatprep.subr.bf16.mxu0 %v2385
    %3068 = vmatpush2.bf16.msra.mxu0 %v2384
    %3069 = vmatprep.subr.bf16.mxu0 %v2378
    %3070 = vmatpush2.bf16.msra.mxu0 %v2377
    %3071 = vmatprep.subr.bf16.mxu0 %v2371
    %3072 = vmatpush2.bf16.msra.mxu0 %v2370
    %3073 = vmatprep.subr.bf16.mxu0 %v2364
    %3074 = vmatpush2.bf16.msra.mxu0 %v2363
    %3075 = vmatprep.subr.bf16.mxu0 %v2357
    %3076 = vmatpush2.bf16.msra.mxu0 %v2356
    %3077 = vmatprep.subr.bf16.mxu0 %v2350
    %3078 = vmatpush2.bf16.msra.mxu0 %v2349
    %3079 = vmatprep.mubr.bf16.mxu0 %v109
    %3080 = vmatmul.mubr.bf16.gmra.mxu0 %v108
    %v3081 = vpop.f32.mrf.mxu0
    %v3082 = vadd.f32 %v3041, %v3081
    %v3083 = vpop.f32.mrf.mxu0
    %v3084 = vadd.f32 %v3043, %v3083
    %v3085 = vpop.f32.mrf.mxu0
    %v3086 = vpop.f32.mrf.mxu0
    %3087 = vdwg.mxu0
    %3088 = vmatprep.subr.bf16.mxu0 %v2455
    %3089 = vmatpush1.bf16.msra.mxu0 %v2454
    %3090 = vmatprep.subr.bf16.mxu0 %v2448
    %3091 = vmatpush1.bf16.msra.mxu0 %v2447
    %3092 = vmatprep.subr.bf16.mxu0 %v2441
    %3093 = vmatpush1.bf16.msra.mxu0 %v2440
    %3094 = vmatprep.subr.bf16.mxu0 %v2434
    %3095 = vmatpush1.bf16.msra.mxu0 %v2433
    %3096 = vmatprep.subr.bf16.mxu0 %v2427
    %3097 = vmatpush1.bf16.msra.mxu0 %v2426
    %3098 = vmatprep.subr.bf16.mxu0 %v2420
    %3099 = vmatpush1.bf16.msra.mxu0 %v2419
    %3100 = vmatprep.subr.bf16.mxu0 %v2413
    %3101 = vmatpush1.bf16.msra.mxu0 %v2412
    %3102 = vmatprep.subr.bf16.mxu0 %v2406
    %3103 = vmatpush1.bf16.msra.mxu0 %v2405
    %3104 = vmatprep.subr.bf16.mxu0 %v2511
    %3105 = vmatpush2.bf16.msra.mxu0 %v2510
    %3106 = vmatprep.subr.bf16.mxu0 %v2504
    %3107 = vmatpush2.bf16.msra.mxu0 %v2503
    %3108 = vmatprep.subr.bf16.mxu0 %v2497
    %3109 = vmatpush2.bf16.msra.mxu0 %v2496
    %3110 = vmatprep.subr.bf16.mxu0 %v2490
    %3111 = vmatpush2.bf16.msra.mxu0 %v2489
    %3112 = vmatprep.subr.bf16.mxu0 %v2483
    %3113 = vmatpush2.bf16.msra.mxu0 %v2482
    %3114 = vmatprep.subr.bf16.mxu0 %v2476
    %3115 = vmatpush2.bf16.msra.mxu0 %v2475
    %3116 = vmatprep.subr.bf16.mxu0 %v2469
    %3117 = vmatpush2.bf16.msra.mxu0 %v2468
    %3118 = vmatprep.subr.bf16.mxu0 %v2462
    %3119 = vmatpush2.bf16.msra.mxu0 %v2461
    %3120 = vmatprep.mubr.bf16.mxu0 %v111
    %3121 = vmatmul.mubr.bf16.gmra.mxu0 %v110
    %v3122 = vpop.f32.mrf.mxu0
    %v3123 = vadd.f32 %v3082, %v3122
    %v3124 = vpop.f32.mrf.mxu0
    %v3125 = vadd.f32 %v3084, %v3124
    %v3126 = vpop.f32.mrf.mxu0
    %v3127 = vpop.f32.mrf.mxu0
    %3128 = vdwg.mxu0
    %3129 = vmatprep.subr.bf16.mxu0 %v2121
    %3130 = vmatpush1.bf16.msra.mxu0 %v2120
    %3131 = vmatprep.subr.bf16.mxu0 %v2114
    %3132 = vmatpush1.bf16.msra.mxu0 %v2113
    %3133 = vmatprep.subr.bf16.mxu0 %v2107
    %3134 = vmatpush1.bf16.msra.mxu0 %v2106
    %3135 = vmatprep.subr.bf16.mxu0 %v2100
    %3136 = vmatpush1.bf16.msra.mxu0 %v2099
    %3137 = vmatprep.subr.bf16.mxu0 %v2093
    %3138 = vmatpush1.bf16.msra.mxu0 %v2092
    %3139 = vmatprep.subr.bf16.mxu0 %v2086
    %3140 = vmatpush1.bf16.msra.mxu0 %v2085
    %3141 = vmatprep.subr.bf16.mxu0 %v2079
    %3142 = vmatpush1.bf16.msra.mxu0 %v2078
    %3143 = vmatprep.subr.bf16.mxu0 %v2072
    %3144 = vmatpush1.bf16.msra.mxu0 %v2071
    %3145 = vmatprep.subr.bf16.mxu0 %v2177
    %3146 = vmatpush2.bf16.msra.mxu0 %v2176
    %3147 = vmatprep.subr.bf16.mxu0 %v2170
    %3148 = vmatpush2.bf16.msra.mxu0 %v2169
    %3149 = vmatprep.subr.bf16.mxu0 %v2163
    %3150 = vmatpush2.bf16.msra.mxu0 %v2162
    %3151 = vmatprep.subr.bf16.mxu0 %v2156
    %3152 = vmatpush2.bf16.msra.mxu0 %v2155
    %3153 = vmatprep.subr.bf16.mxu0 %v2149
    %3154 = vmatpush2.bf16.msra.mxu0 %v2148
    %3155 = vmatprep.subr.bf16.mxu0 %v2142
    %3156 = vmatpush2.bf16.msra.mxu0 %v2141
    %3157 = vmatprep.subr.bf16.mxu0 %v2135
    %3158 = vmatpush2.bf16.msra.mxu0 %v2134
    %3159 = vmatprep.subr.bf16.mxu0 %v2128
    %3160 = vmatpush2.bf16.msra.mxu0 %v2127
    %3161 = vmatprep.mubr.bf16.mxu0 %v105
    %3162 = vmatmul.mubr.bf16.gmra.mxu0 %v104
    %v3163 = vpop.f32.mrf.mxu0
    %v3164 = vadd.f32 %v637, %v3163
    %v3165 = vpop.f32.mrf.mxu0
    %v3166 = vadd.f32 %v641, %v3165
    %v3167 = vpop.f32.mrf.mxu0
    %v3168 = vpop.f32.mrf.mxu0
    %3169 = vdwg.mxu0
    %3170 = vmatprep.subr.bf16.mxu0 %v2233
    %3171 = vmatpush1.bf16.msra.mxu0 %v2232
    %3172 = vmatprep.subr.bf16.mxu0 %v2226
    %3173 = vmatpush1.bf16.msra.mxu0 %v2225
    %3174 = vmatprep.subr.bf16.mxu0 %v2219
    %3175 = vmatpush1.bf16.msra.mxu0 %v2218
    %3176 = vmatprep.subr.bf16.mxu0 %v2212
    %3177 = vmatpush1.bf16.msra.mxu0 %v2211
    %3178 = vmatprep.subr.bf16.mxu0 %v2205
    %3179 = vmatpush1.bf16.msra.mxu0 %v2204
    %3180 = vmatprep.subr.bf16.mxu0 %v2198
    %3181 = vmatpush1.bf16.msra.mxu0 %v2197
    %3182 = vmatprep.subr.bf16.mxu0 %v2191
    %3183 = vmatpush1.bf16.msra.mxu0 %v2190
    %3184 = vmatprep.subr.bf16.mxu0 %v2184
    %3185 = vmatpush1.bf16.msra.mxu0 %v2183
    %3186 = vmatprep.subr.bf16.mxu0 %v2289
    %3187 = vmatpush2.bf16.msra.mxu0 %v2288
    %3188 = vmatprep.subr.bf16.mxu0 %v2282
    %3189 = vmatpush2.bf16.msra.mxu0 %v2281
    %3190 = vmatprep.subr.bf16.mxu0 %v2275
    %3191 = vmatpush2.bf16.msra.mxu0 %v2274
    %3192 = vmatprep.subr.bf16.mxu0 %v2268
    %3193 = vmatpush2.bf16.msra.mxu0 %v2267
    %3194 = vmatprep.subr.bf16.mxu0 %v2261
    %3195 = vmatpush2.bf16.msra.mxu0 %v2260
    %3196 = vmatprep.subr.bf16.mxu0 %v2254
    %3197 = vmatpush2.bf16.msra.mxu0 %v2253
    %3198 = vmatprep.subr.bf16.mxu0 %v2247
    %3199 = vmatpush2.bf16.msra.mxu0 %v2246
    %3200 = vmatprep.subr.bf16.mxu0 %v2240
    %3201 = vmatpush2.bf16.msra.mxu0 %v2239
    %3202 = vmatprep.mubr.bf16.mxu0 %v107
    %3203 = vmatmul.mubr.bf16.gmra.mxu0 %v106
    %v3204 = vpop.f32.mrf.mxu0
    %v3205 = vadd.f32 %v3164, %v3204
    %v3206 = vpop.f32.mrf.mxu0
    %v3207 = vadd.f32 %v3166, %v3206
    %v3208 = vpop.f32.mrf.mxu0
    %v3209 = vpop.f32.mrf.mxu0
    %3210 = vdwg.mxu0
    %3211 = vmatprep.subr.bf16.mxu0 %v2345
    %3212 = vmatpush1.bf16.msra.mxu0 %v2344
    %3213 = vmatprep.subr.bf16.mxu0 %v2338
    %3214 = vmatpush1.bf16.msra.mxu0 %v2337
    %3215 = vmatprep.subr.bf16.mxu0 %v2331
    %3216 = vmatpush1.bf16.msra.mxu0 %v2330
    %3217 = vmatprep.subr.bf16.mxu0 %v2324
    %3218 = vmatpush1.bf16.msra.mxu0 %v2323
    %3219 = vmatprep.subr.bf16.mxu0 %v2317
    %3220 = vmatpush1.bf16.msra.mxu0 %v2316
    %3221 = vmatprep.subr.bf16.mxu0 %v2310
    %3222 = vmatpush1.bf16.msra.mxu0 %v2309
    %3223 = vmatprep.subr.bf16.mxu0 %v2303
    %3224 = vmatpush1.bf16.msra.mxu0 %v2302
    %3225 = vmatprep.subr.bf16.mxu0 %v2296
    %3226 = vmatpush1.bf16.msra.mxu0 %v2295
    %3227 = vmatprep.subr.bf16.mxu0 %v2401
    %3228 = vmatpush2.bf16.msra.mxu0 %v2400
    %3229 = vmatprep.subr.bf16.mxu0 %v2394
    %3230 = vmatpush2.bf16.msra.mxu0 %v2393
    %3231 = vmatprep.subr.bf16.mxu0 %v2387
    %3232 = vmatpush2.bf16.msra.mxu0 %v2386
    %3233 = vmatprep.subr.bf16.mxu0 %v2380
    %3234 = vmatpush2.bf16.msra.mxu0 %v2379
    %3235 = vmatprep.subr.bf16.mxu0 %v2373
    %3236 = vmatpush2.bf16.msra.mxu0 %v2372
    %3237 = vmatprep.subr.bf16.mxu0 %v2366
    %3238 = vmatpush2.bf16.msra.mxu0 %v2365
    %3239 = vmatprep.subr.bf16.mxu0 %v2359
    %3240 = vmatpush2.bf16.msra.mxu0 %v2358
    %3241 = vmatprep.subr.bf16.mxu0 %v2352
    %3242 = vmatpush2.bf16.msra.mxu0 %v2351
    %3243 = vmatprep.mubr.bf16.mxu0 %v109
    %3244 = vmatmul.mubr.bf16.gmra.mxu0 %v108
    %v3245 = vpop.f32.mrf.mxu0
    %v3246 = vadd.f32 %v3205, %v3245
    %v3247 = vpop.f32.mrf.mxu0
    %v3248 = vadd.f32 %v3207, %v3247
    %v3249 = vpop.f32.mrf.mxu0
    %v3250 = vpop.f32.mrf.mxu0
    %3251 = vdwg.mxu0
    %3252 = vmatprep.subr.bf16.mxu0 %v2457
    %3253 = vmatpush1.bf16.msra.mxu0 %v2456
    %3254 = vmatprep.subr.bf16.mxu0 %v2450
    %3255 = vmatpush1.bf16.msra.mxu0 %v2449
    %3256 = vmatprep.subr.bf16.mxu0 %v2443
    %3257 = vmatpush1.bf16.msra.mxu0 %v2442
    %3258 = vmatprep.subr.bf16.mxu0 %v2436
    %3259 = vmatpush1.bf16.msra.mxu0 %v2435
    %3260 = vmatprep.subr.bf16.mxu0 %v2429
    %3261 = vmatpush1.bf16.msra.mxu0 %v2428
    %3262 = vmatprep.subr.bf16.mxu0 %v2422
    %3263 = vmatpush1.bf16.msra.mxu0 %v2421
    %3264 = vmatprep.subr.bf16.mxu0 %v2415
    %3265 = vmatpush1.bf16.msra.mxu0 %v2414
    %3266 = vmatprep.subr.bf16.mxu0 %v2408
    %3267 = vmatpush1.bf16.msra.mxu0 %v2407
    %3268 = vmatprep.subr.bf16.mxu0 %v2513
    %3269 = vmatpush2.bf16.msra.mxu0 %v2512
    %3270 = vmatprep.subr.bf16.mxu0 %v2506
    %3271 = vmatpush2.bf16.msra.mxu0 %v2505
    %3272 = vmatprep.subr.bf16.mxu0 %v2499
    %3273 = vmatpush2.bf16.msra.mxu0 %v2498
    %3274 = vmatprep.subr.bf16.mxu0 %v2492
    %3275 = vmatpush2.bf16.msra.mxu0 %v2491
    %3276 = vmatprep.subr.bf16.mxu0 %v2485
    %3277 = vmatpush2.bf16.msra.mxu0 %v2484
    %3278 = vmatprep.subr.bf16.mxu0 %v2478
    %3279 = vmatpush2.bf16.msra.mxu0 %v2477
    %3280 = vmatprep.subr.bf16.mxu0 %v2471
    %3281 = vmatpush2.bf16.msra.mxu0 %v2470
    %3282 = vmatprep.subr.bf16.mxu0 %v2464
    %3283 = vmatpush2.bf16.msra.mxu0 %v2463
    %3284 = vmatprep.mubr.bf16.mxu0 %v111
    %3285 = vmatmul.mubr.bf16.gmra.mxu0 %v110
    %v3286 = vpop.f32.mrf.mxu0
    %v3287 = vadd.f32 %v3246, %v3286
    %v3288 = vpop.f32.mrf.mxu0
    %v3289 = vadd.f32 %v3248, %v3288
    %v3290 = vpop.f32.mrf.mxu0
    %v3291 = vpop.f32.mrf.mxu0
    %3292 = vdwg.mxu0
    %3293 = vmatprep.subr.bf16.mxu0 %v2123
    %3294 = vmatpush1.bf16.msra.mxu0 %v2122
    %3295 = vmatprep.subr.bf16.mxu0 %v2116
    %3296 = vmatpush1.bf16.msra.mxu0 %v2115
    %3297 = vmatprep.subr.bf16.mxu0 %v2109
    %3298 = vmatpush1.bf16.msra.mxu0 %v2108
    %3299 = vmatprep.subr.bf16.mxu0 %v2102
    %3300 = vmatpush1.bf16.msra.mxu0 %v2101
    %3301 = vmatprep.subr.bf16.mxu0 %v2095
    %3302 = vmatpush1.bf16.msra.mxu0 %v2094
    %3303 = vmatprep.subr.bf16.mxu0 %v2088
    %3304 = vmatpush1.bf16.msra.mxu0 %v2087
    %3305 = vmatprep.subr.bf16.mxu0 %v2081
    %3306 = vmatpush1.bf16.msra.mxu0 %v2080
    %3307 = vmatprep.subr.bf16.mxu0 %v2074
    %3308 = vmatpush1.bf16.msra.mxu0 %v2073
    %3309 = vmatprep.subr.bf16.mxu0 %v2179
    %3310 = vmatpush2.bf16.msra.mxu0 %v2178
    %3311 = vmatprep.subr.bf16.mxu0 %v2172
    %3312 = vmatpush2.bf16.msra.mxu0 %v2171
    %3313 = vmatprep.subr.bf16.mxu0 %v2165
    %3314 = vmatpush2.bf16.msra.mxu0 %v2164
    %3315 = vmatprep.subr.bf16.mxu0 %v2158
    %3316 = vmatpush2.bf16.msra.mxu0 %v2157
    %3317 = vmatprep.subr.bf16.mxu0 %v2151
    %3318 = vmatpush2.bf16.msra.mxu0 %v2150
    %3319 = vmatprep.subr.bf16.mxu0 %v2144
    %3320 = vmatpush2.bf16.msra.mxu0 %v2143
    %3321 = vmatprep.subr.bf16.mxu0 %v2137
    %3322 = vmatpush2.bf16.msra.mxu0 %v2136
    %3323 = vmatprep.subr.bf16.mxu0 %v2130
    %3324 = vmatpush2.bf16.msra.mxu0 %v2129
    %3325 = vmatprep.mubr.bf16.mxu0 %v105
    %3326 = vmatmul.mubr.bf16.gmra.mxu0 %v104
    %v3327 = vpop.f32.mrf.mxu0
    %v3328 = vadd.f32 %v645, %v3327
    %v3329 = vpop.f32.mrf.mxu0
    %v3330 = vadd.f32 %v649, %v3329
    %v3331 = vpop.f32.mrf.mxu0
    %v3332 = vpop.f32.mrf.mxu0
    %3333 = vdwg.mxu0
    %3334 = vmatprep.subr.bf16.mxu0 %v2235
    %3335 = vmatpush1.bf16.msra.mxu0 %v2234
    %3336 = vmatprep.subr.bf16.mxu0 %v2228
    %3337 = vmatpush1.bf16.msra.mxu0 %v2227
    %3338 = vmatprep.subr.bf16.mxu0 %v2221
    %3339 = vmatpush1.bf16.msra.mxu0 %v2220
    %3340 = vmatprep.subr.bf16.mxu0 %v2214
    %3341 = vmatpush1.bf16.msra.mxu0 %v2213
    %3342 = vmatprep.subr.bf16.mxu0 %v2207
    %3343 = vmatpush1.bf16.msra.mxu0 %v2206
    %3344 = vmatprep.subr.bf16.mxu0 %v2200
    %3345 = vmatpush1.bf16.msra.mxu0 %v2199
    %3346 = vmatprep.subr.bf16.mxu0 %v2193
    %3347 = vmatpush1.bf16.msra.mxu0 %v2192
    %3348 = vmatprep.subr.bf16.mxu0 %v2186
    %3349 = vmatpush1.bf16.msra.mxu0 %v2185
    %3350 = vmatprep.subr.bf16.mxu0 %v2291
    %3351 = vmatpush2.bf16.msra.mxu0 %v2290
    %3352 = vmatprep.subr.bf16.mxu0 %v2284
    %3353 = vmatpush2.bf16.msra.mxu0 %v2283
    %3354 = vmatprep.subr.bf16.mxu0 %v2277
    %3355 = vmatpush2.bf16.msra.mxu0 %v2276
    %3356 = vmatprep.subr.bf16.mxu0 %v2270
    %3357 = vmatpush2.bf16.msra.mxu0 %v2269
    %3358 = vmatprep.subr.bf16.mxu0 %v2263
    %3359 = vmatpush2.bf16.msra.mxu0 %v2262
    %3360 = vmatprep.subr.bf16.mxu0 %v2256
    %3361 = vmatpush2.bf16.msra.mxu0 %v2255
    %3362 = vmatprep.subr.bf16.mxu0 %v2249
    %3363 = vmatpush2.bf16.msra.mxu0 %v2248
    %3364 = vmatprep.subr.bf16.mxu0 %v2242
    %3365 = vmatpush2.bf16.msra.mxu0 %v2241
    %3366 = vmatprep.mubr.bf16.mxu0 %v107
    %3367 = vmatmul.mubr.bf16.gmra.mxu0 %v106
    %v3368 = vpop.f32.mrf.mxu0
    %v3369 = vadd.f32 %v3328, %v3368
    %v3370 = vpop.f32.mrf.mxu0
    %v3371 = vadd.f32 %v3330, %v3370
    %v3372 = vpop.f32.mrf.mxu0
    %v3373 = vpop.f32.mrf.mxu0
    %3374 = vdwg.mxu0
    %3375 = vmatprep.subr.bf16.mxu0 %v2347
    %3376 = vmatpush1.bf16.msra.mxu0 %v2346
    %3377 = vmatprep.subr.bf16.mxu0 %v2340
    %3378 = vmatpush1.bf16.msra.mxu0 %v2339
    %3379 = vmatprep.subr.bf16.mxu0 %v2333
    %3380 = vmatpush1.bf16.msra.mxu0 %v2332
    %3381 = vmatprep.subr.bf16.mxu0 %v2326
    %3382 = vmatpush1.bf16.msra.mxu0 %v2325
    %3383 = vmatprep.subr.bf16.mxu0 %v2319
    %3384 = vmatpush1.bf16.msra.mxu0 %v2318
    %3385 = vmatprep.subr.bf16.mxu0 %v2312
    %3386 = vmatpush1.bf16.msra.mxu0 %v2311
    %3387 = vmatprep.subr.bf16.mxu0 %v2305
    %3388 = vmatpush1.bf16.msra.mxu0 %v2304
    %3389 = vmatprep.subr.bf16.mxu0 %v2298
    %3390 = vmatpush1.bf16.msra.mxu0 %v2297
    %3391 = vmatprep.subr.bf16.mxu0 %v2403
    %3392 = vmatpush2.bf16.msra.mxu0 %v2402
    %3393 = vmatprep.subr.bf16.mxu0 %v2396
    %3394 = vmatpush2.bf16.msra.mxu0 %v2395
    %3395 = vmatprep.subr.bf16.mxu0 %v2389
    %3396 = vmatpush2.bf16.msra.mxu0 %v2388
    %3397 = vmatprep.subr.bf16.mxu0 %v2382
    %3398 = vmatpush2.bf16.msra.mxu0 %v2381
    %3399 = vmatprep.subr.bf16.mxu0 %v2375
    %3400 = vmatpush2.bf16.msra.mxu0 %v2374
    %3401 = vmatprep.subr.bf16.mxu0 %v2368
    %3402 = vmatpush2.bf16.msra.mxu0 %v2367
    %3403 = vmatprep.subr.bf16.mxu0 %v2361
    %3404 = vmatpush2.bf16.msra.mxu0 %v2360
    %3405 = vmatprep.subr.bf16.mxu0 %v2354
    %3406 = vmatpush2.bf16.msra.mxu0 %v2353
    %3407 = vmatprep.mubr.bf16.mxu0 %v109
    %3408 = vmatmul.mubr.bf16.gmra.mxu0 %v108
    %v3409 = vpop.f32.mrf.mxu0
    %v3410 = vadd.f32 %v3369, %v3409
    %v3411 = vpop.f32.mrf.mxu0
    %v3412 = vadd.f32 %v3371, %v3411
    %v3413 = vpop.f32.mrf.mxu0
    %v3414 = vpop.f32.mrf.mxu0
    %3415 = vdwg.mxu0
    %3416 = vmatprep.subr.bf16.mxu0 %v2459
    %3417 = vmatpush1.bf16.msra.mxu0 %v2458
    %3418 = vmatprep.subr.bf16.mxu0 %v2452
    %3419 = vmatpush1.bf16.msra.mxu0 %v2451
    %3420 = vmatprep.subr.bf16.mxu0 %v2445
    %3421 = vmatpush1.bf16.msra.mxu0 %v2444
    %3422 = vmatprep.subr.bf16.mxu0 %v2438
    %3423 = vmatpush1.bf16.msra.mxu0 %v2437
    %3424 = vmatprep.subr.bf16.mxu0 %v2431
    %3425 = vmatpush1.bf16.msra.mxu0 %v2430
    %3426 = vmatprep.subr.bf16.mxu0 %v2424
    %3427 = vmatpush1.bf16.msra.mxu0 %v2423
    %3428 = vmatprep.subr.bf16.mxu0 %v2417
    %3429 = vmatpush1.bf16.msra.mxu0 %v2416
    %3430 = vmatprep.subr.bf16.mxu0 %v2410
    %3431 = vmatpush1.bf16.msra.mxu0 %v2409
    %3432 = vmatprep.subr.bf16.mxu0 %v2515
    %3433 = vmatpush2.bf16.msra.mxu0 %v2514
    %3434 = vmatprep.subr.bf16.mxu0 %v2508
    %3435 = vmatpush2.bf16.msra.mxu0 %v2507
    %3436 = vmatprep.subr.bf16.mxu0 %v2501
    %3437 = vmatpush2.bf16.msra.mxu0 %v2500
    %3438 = vmatprep.subr.bf16.mxu0 %v2494
    %3439 = vmatpush2.bf16.msra.mxu0 %v2493
    %3440 = vmatprep.subr.bf16.mxu0 %v2487
    %3441 = vmatpush2.bf16.msra.mxu0 %v2486
    %3442 = vmatprep.subr.bf16.mxu0 %v2480
    %3443 = vmatpush2.bf16.msra.mxu0 %v2479
    %3444 = vmatprep.subr.bf16.mxu0 %v2473
    %3445 = vmatpush2.bf16.msra.mxu0 %v2472
    %3446 = vmatprep.subr.bf16.mxu0 %v2466
    %3447 = vmatpush2.bf16.msra.mxu0 %v2465
    %3448 = vmatprep.mubr.bf16.mxu0 %v111
    %3449 = vmatmul.mubr.bf16.gmra.mxu0 %v110
    %v3450 = vpop.f32.mrf.mxu0
    %v3451 = vadd.f32 %v3410, %v3450
    %v3452 = vpop.f32.mrf.mxu0
    %v3453 = vadd.f32 %v3412, %v3452
    %v3454 = vpop.f32.mrf.mxu0
    %v3455 = vpop.f32.mrf.mxu0
    %3456 = vdwg.mxu0
    %3457 = vmatprep.subr.bf16.mxu0 0
    %3458 = vmatpush1.bf16.msra.mxu0 %v2124
    %3459 = vmatprep.subr.bf16.mxu0 0
    %3460 = vmatpush1.bf16.msra.mxu0 %v2117
    %3461 = vmatprep.subr.bf16.mxu0 0
    %3462 = vmatpush1.bf16.msra.mxu0 %v2110
    %3463 = vmatprep.subr.bf16.mxu0 0
    %3464 = vmatpush1.bf16.msra.mxu0 %v2103
    %3465 = vmatprep.subr.bf16.mxu0 0
    %3466 = vmatpush1.bf16.msra.mxu0 %v2096
    %3467 = vmatprep.subr.bf16.mxu0 0
    %3468 = vmatpush1.bf16.msra.mxu0 %v2089
    %3469 = vmatprep.subr.bf16.mxu0 0
    %3470 = vmatpush1.bf16.msra.mxu0 %v2082
    %3471 = vmatprep.subr.bf16.mxu0 0
    %3472 = vmatpush1.bf16.msra.mxu0 %v2075
    %3473 = vmatprep.subr.bf16.mxu0 0
    %3474 = vmatpush2.bf16.msra.mxu0 %v2180
    %3475 = vmatprep.subr.bf16.mxu0 0
    %3476 = vmatpush2.bf16.msra.mxu0 %v2173
    %3477 = vmatprep.subr.bf16.mxu0 0
    %3478 = vmatpush2.bf16.msra.mxu0 %v2166
    %3479 = vmatprep.subr.bf16.mxu0 0
    %3480 = vmatpush2.bf16.msra.mxu0 %v2159
    %3481 = vmatprep.subr.bf16.mxu0 0
    %3482 = vmatpush2.bf16.msra.mxu0 %v2152
    %3483 = vmatprep.subr.bf16.mxu0 0
    %3484 = vmatpush2.bf16.msra.mxu0 %v2145
    %3485 = vmatprep.subr.bf16.mxu0 0
    %3486 = vmatpush2.bf16.msra.mxu0 %v2138
    %3487 = vmatprep.subr.bf16.mxu0 0
    %3488 = vmatpush2.bf16.msra.mxu0 %v2131
    %3489 = vmatprep.mubr.bf16.mxu0 %v105
    %3490 = vmatmul.mubr.bf16.gmra.mxu0 %v104
    %v3491 = vpop.f32.mrf.mxu0
    %v3492 = vadd.f32 %v653, %v3491
    %v3493 = vpop.f32.mrf.mxu0
    %v3494 = vpop.f32.mrf.mxu0
    %v3495 = vpop.f32.mrf.mxu0
    %3496 = vdwg.mxu0
    %3497 = vmatprep.subr.bf16.mxu0 0
    %3498 = vmatpush1.bf16.msra.mxu0 %v2236
    %3499 = vmatprep.subr.bf16.mxu0 0
    %3500 = vmatpush1.bf16.msra.mxu0 %v2229
    %3501 = vmatprep.subr.bf16.mxu0 0
    %3502 = vmatpush1.bf16.msra.mxu0 %v2222
    %3503 = vmatprep.subr.bf16.mxu0 0
    %3504 = vmatpush1.bf16.msra.mxu0 %v2215
    %3505 = vmatprep.subr.bf16.mxu0 0
    %3506 = vmatpush1.bf16.msra.mxu0 %v2208
    %3507 = vmatprep.subr.bf16.mxu0 0
    %3508 = vmatpush1.bf16.msra.mxu0 %v2201
    %3509 = vmatprep.subr.bf16.mxu0 0
    %3510 = vmatpush1.bf16.msra.mxu0 %v2194
    %3511 = vmatprep.subr.bf16.mxu0 0
    %3512 = vmatpush1.bf16.msra.mxu0 %v2187
    %3513 = vmatprep.subr.bf16.mxu0 0
    %3514 = vmatpush2.bf16.msra.mxu0 %v2292
    %3515 = vmatprep.subr.bf16.mxu0 0
    %3516 = vmatpush2.bf16.msra.mxu0 %v2285
    %3517 = vmatprep.subr.bf16.mxu0 0
    %3518 = vmatpush2.bf16.msra.mxu0 %v2278
    %3519 = vmatprep.subr.bf16.mxu0 0
    %3520 = vmatpush2.bf16.msra.mxu0 %v2271
    %3521 = vmatprep.subr.bf16.mxu0 0
    %3522 = vmatpush2.bf16.msra.mxu0 %v2264
    %3523 = vmatprep.subr.bf16.mxu0 0
    %3524 = vmatpush2.bf16.msra.mxu0 %v2257
    %3525 = vmatprep.subr.bf16.mxu0 0
    %3526 = vmatpush2.bf16.msra.mxu0 %v2250
    %3527 = vmatprep.subr.bf16.mxu0 0
    %3528 = vmatpush2.bf16.msra.mxu0 %v2243
    %3529 = vmatprep.mubr.bf16.mxu0 %v107
    %3530 = vmatmul.mubr.bf16.gmra.mxu0 %v106
    %v3531 = vpop.f32.mrf.mxu0
    %v3532 = vadd.f32 %v3492, %v3531
    %v3533 = vpop.f32.mrf.mxu0
    %v3534 = vpop.f32.mrf.mxu0
    %v3535 = vpop.f32.mrf.mxu0
    %3536 = vdwg.mxu0
    %3537 = vmatprep.subr.bf16.mxu0 0
    %3538 = vmatpush1.bf16.msra.mxu0 %v2348
    %3539 = vmatprep.subr.bf16.mxu0 0
    %3540 = vmatpush1.bf16.msra.mxu0 %v2341
    %3541 = vmatprep.subr.bf16.mxu0 0
    %3542 = vmatpush1.bf16.msra.mxu0 %v2334
    %3543 = vmatprep.subr.bf16.mxu0 0
    %3544 = vmatpush1.bf16.msra.mxu0 %v2327
    %3545 = vmatprep.subr.bf16.mxu0 0
    %3546 = vmatpush1.bf16.msra.mxu0 %v2320
    %3547 = vmatprep.subr.bf16.mxu0 0
    %3548 = vmatpush1.bf16.msra.mxu0 %v2313
    %3549 = vmatprep.subr.bf16.mxu0 0
    %3550 = vmatpush1.bf16.msra.mxu0 %v2306
    %3551 = vmatprep.subr.bf16.mxu0 0
    %3552 = vmatpush1.bf16.msra.mxu0 %v2299
    %3553 = vmatprep.subr.bf16.mxu0 0
    %3554 = vmatpush2.bf16.msra.mxu0 %v2404
    %3555 = vmatprep.subr.bf16.mxu0 0
    %3556 = vmatpush2.bf16.msra.mxu0 %v2397
    %3557 = vmatprep.subr.bf16.mxu0 0
    %3558 = vmatpush2.bf16.msra.mxu0 %v2390
    %3559 = vmatprep.subr.bf16.mxu0 0
    %3560 = vmatpush2.bf16.msra.mxu0 %v2383
    %3561 = vmatprep.subr.bf16.mxu0 0
    %3562 = vmatpush2.bf16.msra.mxu0 %v2376
    %3563 = vmatprep.subr.bf16.mxu0 0
    %3564 = vmatpush2.bf16.msra.mxu0 %v2369
    %3565 = vmatprep.subr.bf16.mxu0 0
    %3566 = vmatpush2.bf16.msra.mxu0 %v2362
    %3567 = vmatprep.subr.bf16.mxu0 0
    %3568 = vmatpush2.bf16.msra.mxu0 %v2355
    %3569 = vmatprep.mubr.bf16.mxu0 %v109
    %3570 = vmatmul.mubr.bf16.gmra.mxu0 %v108
    %v3571 = vpop.f32.mrf.mxu0
    %v3572 = vadd.f32 %v3532, %v3571
    %v3573 = vpop.f32.mrf.mxu0
    %v3574 = vpop.f32.mrf.mxu0
    %v3575 = vpop.f32.mrf.mxu0
    %3576 = vdwg.mxu0
    %3577 = vmatprep.subr.bf16.mxu0 0
    %3578 = vmatpush1.bf16.msra.mxu0 %v2460
    %3579 = vmatprep.subr.bf16.mxu0 0
    %3580 = vmatpush1.bf16.msra.mxu0 %v2453
    %3581 = vmatprep.subr.bf16.mxu0 0
    %3582 = vmatpush1.bf16.msra.mxu0 %v2446
    %3583 = vmatprep.subr.bf16.mxu0 0
    %3584 = vmatpush1.bf16.msra.mxu0 %v2439
    %3585 = vmatprep.subr.bf16.mxu0 0
    %3586 = vmatpush1.bf16.msra.mxu0 %v2432
    %3587 = vmatprep.subr.bf16.mxu0 0
    %3588 = vmatpush1.bf16.msra.mxu0 %v2425
    %3589 = vmatprep.subr.bf16.mxu0 0
    %3590 = vmatpush1.bf16.msra.mxu0 %v2418
    %3591 = vmatprep.subr.bf16.mxu0 0
    %3592 = vmatpush1.bf16.msra.mxu0 %v2411
    %3593 = vmatprep.subr.bf16.mxu0 0
    %3594 = vmatpush2.bf16.msra.mxu0 %v2516
    %3595 = vmatprep.subr.bf16.mxu0 0
    %3596 = vmatpush2.bf16.msra.mxu0 %v2509
    %3597 = vmatprep.subr.bf16.mxu0 0
    %3598 = vmatpush2.bf16.msra.mxu0 %v2502
    %3599 = vmatprep.subr.bf16.mxu0 0
    %3600 = vmatpush2.bf16.msra.mxu0 %v2495
    %3601 = vmatprep.subr.bf16.mxu0 0
    %3602 = vmatpush2.bf16.msra.mxu0 %v2488
    %3603 = vmatprep.subr.bf16.mxu0 0
    %3604 = vmatpush2.bf16.msra.mxu0 %v2481
    %3605 = vmatprep.subr.bf16.mxu0 0
    %3606 = vmatpush2.bf16.msra.mxu0 %v2474
    %3607 = vmatprep.subr.bf16.mxu0 0
    %3608 = vmatpush2.bf16.msra.mxu0 %v2467
    %3609 = vmatprep.mubr.bf16.mxu0 %v111
    %3610 = vmatmul.mubr.bf16.gmra.mxu0 %v110
    %v3611 = vpop.f32.mrf.mxu0
    %v3612 = vadd.f32 %v3572, %v3611
    %v3613 = vpop.f32.mrf.mxu0
    %v3614 = vpop.f32.mrf.mxu0
    %v3615 = vpop.f32.mrf.mxu0
    %3616 = vdwg.mxu0
    %v3617 = vmax.f32 %v3123, 0.0
    %v3618 = vmax.f32 %v3125, 0.0
    %v3619 = vmax.f32 %v3287, 0.0
    %v3620 = vmax.f32 %v3289, 0.0
    %v3621 = vmax.f32 %v3451, 0.0
    %v3622 = vmax.f32 %v3453, 0.0
    %v3623 = vmax.f32 %v3612, 0.0
    %v3624 = vpack.c.bf16 %v3617, %v3617
    %v3625 = vpack.c.bf16 %v3618, %v3618
    %v3626 = vpack.c.bf16 %v3619, %v3619
    %v3627 = vpack.c.bf16 %v3620, %v3620
    %v3628 = vpack.c.bf16 %v3621, %v3621
    %v3629 = vpack.c.bf16 %v3622, %v3622
    %v3630 = vpack.c.bf16 %v3623, %v3623
    %v3631 = vld [vmem:[#allocation4] sm:$0xff]
    %v3632 = vld [vmem:[#allocation4 + $0x8] sm:$0xff]
    %v3633 = vld [vmem:[#allocation4 + $0x10] sm:$0xff]
    %v3634 = vld [vmem:[#allocation4 + $0x18] sm:$0xf]
    %v3635 = vld [vmem:[#allocation4 + $0x1c] sm:$0xff]
    %v3636 = vld [vmem:[#allocation4 + $0x24] sm:$0xff]
    %v3637 = vld [vmem:[#allocation4 + $0x2c] sm:$0xff]
    %v3638 = vld [vmem:[#allocation4 + $0x34] sm:$0xf]
    %v3639 = vld [vmem:[#allocation4 + $0x38] sm:$0xff]
    %v3640 = vld [vmem:[#allocation4 + $0x40] sm:$0xff]
    %v3641 = vld [vmem:[#allocation4 + $0x48] sm:$0xff]
    %v3642 = vld [vmem:[#allocation4 + $0x50] sm:$0xf]
    %v3643 = vld [vmem:[#allocation4 + $0x54] sm:$0xff]
    %v3644 = vld [vmem:[#allocation4 + $0x5c] sm:$0xff]
    %v3645 = vld [vmem:[#allocation4 + $0x64] sm:$0xff]
    %v3646 = vld [vmem:[#allocation4 + $0x6c] sm:$0xf]
    %v3647 = vld [vmem:[#allocation4 + $0x70] sm:$0xff]
    %v3648 = vld [vmem:[#allocation4 + $0x78] sm:$0xff]
    %v3649 = vld [vmem:[#allocation4 + $0x80] sm:$0xff]
    %v3650 = vld [vmem:[#allocation4 + $0x88] sm:$0xf]
    %v3651 = vld [vmem:[#allocation4 + $0x8c] sm:$0xff]
    %v3652 = vld [vmem:[#allocation4 + $0x94] sm:$0xff]
    %v3653 = vld [vmem:[#allocation4 + $0x9c] sm:$0xff]
    %v3654 = vld [vmem:[#allocation4 + $0xa4] sm:$0xf]
    %v3655 = vld [vmem:[#allocation4 + $0xa8] sm:$0xff]
    %v3656 = vld [vmem:[#allocation4 + $0xb0] sm:$0xff]
    %v3657 = vld [vmem:[#allocation4 + $0xb8] sm:$0xff]
    %v3658 = vld [vmem:[#allocation4 + $0xc0] sm:$0xf]
    %v3659 = vld [vmem:[#allocation4 + $0xc4] sm:$0xff]
    %v3660 = vld [vmem:[#allocation4 + $0xcc] sm:$0xff]
    %v3661 = vld [vmem:[#allocation4 + $0xd4] sm:$0xff]
    %v3662 = vld [vmem:[#allocation4 + $0xdc] sm:$0xf]
    %v3663 = vld [vmem:[#allocation4 + $0xe0] sm:$0xff]
    %v3664 = vld [vmem:[#allocation4 + $0xe8] sm:$0xff]
    %v3665 = vld [vmem:[#allocation4 + $0xf0] sm:$0xff]
    %v3666 = vld [vmem:[#allocation4 + $0xf8] sm:$0xf]
    %v3667 = vld [vmem:[#allocation4 + $0xfc] sm:$0xff]
    %v3668 = vld [vmem:[#allocation4 + $0x104] sm:$0xff]
    %v3669 = vld [vmem:[#allocation4 + $0x10c] sm:$0xff]
    %v3670 = vld [vmem:[#allocation4 + $0x114] sm:$0xf]
    %v3671 = vld [vmem:[#allocation4 + $0x118] sm:$0xff]
    %v3672 = vld [vmem:[#allocation4 + $0x120] sm:$0xff]
    %v3673 = vld [vmem:[#allocation4 + $0x128] sm:$0xff]
    %v3674 = vld [vmem:[#allocation4 + $0x130] sm:$0xf]
    %v3675 = vld [vmem:[#allocation4 + $0x134] sm:$0xff]
    %v3676 = vld [vmem:[#allocation4 + $0x13c] sm:$0xff]
    %v3677 = vld [vmem:[#allocation4 + $0x144] sm:$0xff]
    %v3678 = vld [vmem:[#allocation4 + $0x14c] sm:$0xf]
    %v3679 = vld [vmem:[#allocation4 + $0x150] sm:$0xff]
    %v3680 = vld [vmem:[#allocation4 + $0x158] sm:$0xff]
    %v3681 = vld [vmem:[#allocation4 + $0x160] sm:$0xff]
    %v3682 = vld [vmem:[#allocation4 + $0x168] sm:$0xf]
    %v3683 = vld [vmem:[#allocation4 + $0x16c] sm:$0xff]
    %v3684 = vld [vmem:[#allocation4 + $0x174] sm:$0xff]
    %v3685 = vld [vmem:[#allocation4 + $0x17c] sm:$0xff]
    %v3686 = vld [vmem:[#allocation4 + $0x184] sm:$0xf]
    %v3687 = vld [vmem:[#allocation4 + $0x188] sm:$0xff]
    %v3688 = vld [vmem:[#allocation4 + $0x190] sm:$0xff]
    %v3689 = vld [vmem:[#allocation4 + $0x198] sm:$0xff]
    %v3690 = vld [vmem:[#allocation4 + $0x1a0] sm:$0xf]
    %v3691 = vld [vmem:[#allocation4 + $0x1a4] sm:$0xff]
    %v3692 = vld [vmem:[#allocation4 + $0x1ac] sm:$0xff]
    %v3693 = vld [vmem:[#allocation4 + $0x1b4] sm:$0xff]
    %v3694 = vld [vmem:[#allocation4 + $0x1bc] sm:$0xf]
    %v3695 = vld [vmem:[#allocation4 + $0x1c0] sm:$0xff]
    %v3696 = vld [vmem:[#allocation4 + $0x1c8] sm:$0xff]
    %v3697 = vld [vmem:[#allocation4 + $0x1d0] sm:$0xff]
    %v3698 = vld [vmem:[#allocation4 + $0x1d8] sm:$0xf]
    %v3699 = vld [vmem:[#allocation4 + $0x1dc] sm:$0xff]
    %v3700 = vld [vmem:[#allocation4 + $0x1e4] sm:$0xff]
    %v3701 = vld [vmem:[#allocation4 + $0x1ec] sm:$0xff]
    %v3702 = vld [vmem:[#allocation4 + $0x1f4] sm:$0xf]
    %v3703 = vld [vmem:[#allocation4 + $0x1f8] sm:$0xff]
    %v3704 = vld [vmem:[#allocation4 + $0x200] sm:$0xff]
    %v3705 = vld [vmem:[#allocation4 + $0x208] sm:$0xff]
    %v3706 = vld [vmem:[#allocation4 + $0x210] sm:$0xf]
    %v3707 = vld [vmem:[#allocation4 + $0x214] sm:$0xff]
    %v3708 = vld [vmem:[#allocation4 + $0x21c] sm:$0xff]
    %v3709 = vld [vmem:[#allocation4 + $0x224] sm:$0xff]
    %v3710 = vld [vmem:[#allocation4 + $0x22c] sm:$0xf]
    %v3711 = vld [vmem:[#allocation4 + $0x230] sm:$0xff]
    %v3712 = vld [vmem:[#allocation4 + $0x238] sm:$0xff]
    %v3713 = vld [vmem:[#allocation4 + $0x240] sm:$0xff]
    %v3714 = vld [vmem:[#allocation4 + $0x248] sm:$0xf]
    %v3715 = vld [vmem:[#allocation4 + $0x24c] sm:$0xff]
    %v3716 = vld [vmem:[#allocation4 + $0x254] sm:$0xff]
    %v3717 = vld [vmem:[#allocation4 + $0x25c] sm:$0xff]
    %v3718 = vld [vmem:[#allocation4 + $0x264] sm:$0xf]
    %v3719 = vld [vmem:[#allocation4 + $0x268] sm:$0xff]
    %v3720 = vld [vmem:[#allocation4 + $0x270] sm:$0xff]
    %v3721 = vld [vmem:[#allocation4 + $0x278] sm:$0xff]
    %v3722 = vld [vmem:[#allocation4 + $0x280] sm:$0xf]
    %v3723 = vld [vmem:[#allocation4 + $0x284] sm:$0xff]
    %v3724 = vld [vmem:[#allocation4 + $0x28c] sm:$0xff]
    %v3725 = vld [vmem:[#allocation4 + $0x294] sm:$0xff]
    %v3726 = vld [vmem:[#allocation4 + $0x29c] sm:$0xf]
    %v3727 = vld [vmem:[#allocation4 + $0x2a0] sm:$0xff]
    %v3728 = vld [vmem:[#allocation4 + $0x2a8] sm:$0xff]
    %v3729 = vld [vmem:[#allocation4 + $0x2b0] sm:$0xff]
    %v3730 = vld [vmem:[#allocation4 + $0x2b8] sm:$0xf]
    %v3731 = vld [vmem:[#allocation4 + $0x2bc] sm:$0xff]
    %v3732 = vld [vmem:[#allocation4 + $0x2c4] sm:$0xff]
    %v3733 = vld [vmem:[#allocation4 + $0x2cc] sm:$0xff]
    %v3734 = vld [vmem:[#allocation4 + $0x2d4] sm:$0xf]
    %v3735 = vld [vmem:[#allocation4 + $0x2d8] sm:$0xff]
    %v3736 = vld [vmem:[#allocation4 + $0x2e0] sm:$0xff]
    %v3737 = vld [vmem:[#allocation4 + $0x2e8] sm:$0xff]
    %v3738 = vld [vmem:[#allocation4 + $0x2f0] sm:$0xf]
    %v3739 = vld [vmem:[#allocation4 + $0x2f4] sm:$0xff]
    %v3740 = vld [vmem:[#allocation4 + $0x2fc] sm:$0xff]
    %v3741 = vld [vmem:[#allocation4 + $0x304] sm:$0xff]
    %v3742 = vld [vmem:[#allocation4 + $0x30c] sm:$0xf]
    %v3743 = vld [vmem:[#allocation4 + $0x310] sm:$0xff]
    %v3744 = vld [vmem:[#allocation4 + $0x318] sm:$0xff]
    %v3745 = vld [vmem:[#allocation4 + $0x320] sm:$0xff]
    %v3746 = vld [vmem:[#allocation4 + $0x328] sm:$0xf]
    %v3747 = vld [vmem:[#allocation4 + $0x32c] sm:$0xff]
    %v3748 = vld [vmem:[#allocation4 + $0x334] sm:$0xff]
    %v3749 = vld [vmem:[#allocation4 + $0x33c] sm:$0xff]
    %v3750 = vld [vmem:[#allocation4 + $0x344] sm:$0xf]
    %v3751 = vld [vmem:[#allocation4 + $0x348] sm:$0xff]
    %v3752 = vld [vmem:[#allocation4 + $0x350] sm:$0xff]
    %v3753 = vld [vmem:[#allocation4 + $0x358] sm:$0xff]
    %v3754 = vld [vmem:[#allocation4 + $0x360] sm:$0xf]
    %v3755 = vld [vmem:[#allocation4 + $0x364] sm:$0xff]
    %v3756 = vld [vmem:[#allocation4 + $0x36c] sm:$0xff]
    %v3757 = vld [vmem:[#allocation4 + $0x374] sm:$0xff]
    %v3758 = vld [vmem:[#allocation4 + $0x37c] sm:$0xf]
    %v3759 = vld [vmem:[#allocation4 + $0x380] sm:$0xff]
    %v3760 = vld [vmem:[#allocation4 + $0x388] sm:$0xff]
    %v3761 = vld [vmem:[#allocation4 + $0x390] sm:$0xff]
    %v3762 = vld [vmem:[#allocation4 + $0x398] sm:$0xf]
    %v3763 = vld [vmem:[#allocation4 + $0x39c] sm:$0xff]
    %v3764 = vld [vmem:[#allocation4 + $0x3a4] sm:$0xff]
    %v3765 = vld [vmem:[#allocation4 + $0x3ac] sm:$0xff]
    %v3766 = vld [vmem:[#allocation4 + $0x3b4] sm:$0xf]
    %v3767 = vld [vmem:[#allocation4 + $0x3b8] sm:$0xff]
    %v3768 = vld [vmem:[#allocation4 + $0x3c0] sm:$0xff]
    %v3769 = vld [vmem:[#allocation4 + $0x3c8] sm:$0xff]
    %v3770 = vld [vmem:[#allocation4 + $0x3d0] sm:$0xf]
    %v3771 = vld [vmem:[#allocation4 + $0x3d4] sm:$0xff]
    %v3772 = vld [vmem:[#allocation4 + $0x3dc] sm:$0xff]
    %v3773 = vld [vmem:[#allocation4 + $0x3e4] sm:$0xff]
    %v3774 = vld [vmem:[#allocation4 + $0x3ec] sm:$0xf]
    %v3775 = vld [vmem:[#allocation4 + $0x3f0] sm:$0xff]
    %v3776 = vld [vmem:[#allocation4 + $0x3f8] sm:$0xff]
    %v3777 = vld [vmem:[#allocation4 + $0x400] sm:$0xff]
    %v3778 = vld [vmem:[#allocation4 + $0x408] sm:$0xf]
    %v3779 = vld [vmem:[#allocation4 + $0x40c] sm:$0xff]
    %v3780 = vld [vmem:[#allocation4 + $0x414] sm:$0xff]
    %v3781 = vld [vmem:[#allocation4 + $0x41c] sm:$0xff]
    %v3782 = vld [vmem:[#allocation4 + $0x424] sm:$0xf]
    %v3783 = vld [vmem:[#allocation4 + $0x428] sm:$0xff]
    %v3784 = vld [vmem:[#allocation4 + $0x430] sm:$0xff]
    %v3785 = vld [vmem:[#allocation4 + $0x438] sm:$0xff]
    %v3786 = vld [vmem:[#allocation4 + $0x440] sm:$0xf]
    %v3787 = vld [vmem:[#allocation4 + $0x444] sm:$0xff]
    %v3788 = vld [vmem:[#allocation4 + $0x44c] sm:$0xff]
    %v3789 = vld [vmem:[#allocation4 + $0x454] sm:$0xff]
    %v3790 = vld [vmem:[#allocation4 + $0x45c] sm:$0xf]
    %v3791 = vld [vmem:[#allocation4 + $0x460] sm:$0xff]
    %v3792 = vld [vmem:[#allocation4 + $0x468] sm:$0xff]
    %v3793 = vld [vmem:[#allocation4 + $0x470] sm:$0xff]
    %v3794 = vld [vmem:[#allocation4 + $0x478] sm:$0xf]
    %v3795 = vld [vmem:[#allocation4 + $0x47c] sm:$0xff]
    %v3796 = vld [vmem:[#allocation4 + $0x484] sm:$0xff]
    %v3797 = vld [vmem:[#allocation4 + $0x48c] sm:$0xff]
    %v3798 = vld [vmem:[#allocation4 + $0x494] sm:$0xf]
    %v3799 = vld [vmem:[#allocation4 + $0x498] sm:$0xff]
    %v3800 = vld [vmem:[#allocation4 + $0x4a0] sm:$0xff]
    %v3801 = vld [vmem:[#allocation4 + $0x4a8] sm:$0xff]
    %v3802 = vld [vmem:[#allocation4 + $0x4b0] sm:$0xf]
    %v3803 = vld [vmem:[#allocation4 + $0x4b4] sm:$0xff]
    %v3804 = vld [vmem:[#allocation4 + $0x4bc] sm:$0xff]
    %v3805 = vld [vmem:[#allocation4 + $0x4c4] sm:$0xff]
    %v3806 = vld [vmem:[#allocation4 + $0x4cc] sm:$0xf]
    %v3807 = vld [vmem:[#allocation4 + $0x4d0] sm:$0xff]
    %v3808 = vld [vmem:[#allocation4 + $0x4d8] sm:$0xff]
    %v3809 = vld [vmem:[#allocation4 + $0x4e0] sm:$0xff]
    %v3810 = vld [vmem:[#allocation4 + $0x4e8] sm:$0xf]
    %v3811 = vld [vmem:[#allocation4 + $0x4ec] sm:$0xff]
    %v3812 = vld [vmem:[#allocation4 + $0x4f4] sm:$0xff]
    %v3813 = vld [vmem:[#allocation4 + $0x4fc] sm:$0xff]
    %v3814 = vld [vmem:[#allocation4 + $0x504] sm:$0xf]
    %v3815 = vld [vmem:[#allocation4 + $0x508] sm:$0xff]
    %v3816 = vld [vmem:[#allocation4 + $0x510] sm:$0xff]
    %v3817 = vld [vmem:[#allocation4 + $0x518] sm:$0xff]
    %v3818 = vld [vmem:[#allocation4 + $0x520] sm:$0xf]
    %v3819 = vld [vmem:[#allocation4 + $0x524] sm:$0xff]
    %v3820 = vld [vmem:[#allocation4 + $0x52c] sm:$0xff]
    %v3821 = vld [vmem:[#allocation4 + $0x534] sm:$0xff]
    %v3822 = vld [vmem:[#allocation4 + $0x53c] sm:$0xf]
    %v3823 = vld [vmem:[#allocation4 + $0x540] sm:$0xff]
    %v3824 = vld [vmem:[#allocation4 + $0x548] sm:$0xff]
    %v3825 = vld [vmem:[#allocation4 + $0x550] sm:$0xff]
    %v3826 = vld [vmem:[#allocation4 + $0x558] sm:$0xf]
    %v3827 = vld [vmem:[#allocation4 + $0x55c] sm:$0xff]
    %v3828 = vld [vmem:[#allocation4 + $0x564] sm:$0xff]
    %v3829 = vld [vmem:[#allocation4 + $0x56c] sm:$0xff]
    %v3830 = vld [vmem:[#allocation4 + $0x574] sm:$0xf]
    %v3831 = vld [vmem:[#allocation4 + $0x578] sm:$0xff]
    %v3832 = vld [vmem:[#allocation4 + $0x580] sm:$0xff]
    %v3833 = vld [vmem:[#allocation4 + $0x588] sm:$0xff]
    %v3834 = vld [vmem:[#allocation4 + $0x590] sm:$0xf]
    %v3835 = vld [vmem:[#allocation4 + $0x594] sm:$0xff]
    %v3836 = vld [vmem:[#allocation4 + $0x59c] sm:$0xff]
    %v3837 = vld [vmem:[#allocation4 + $0x5a4] sm:$0xff]
    %v3838 = vld [vmem:[#allocation4 + $0x5ac] sm:$0xf]
    %v3839 = vld [vmem:[#allocation4 + $0x5b0] sm:$0xff]
    %v3840 = vld [vmem:[#allocation4 + $0x5b8] sm:$0xff]
    %v3841 = vld [vmem:[#allocation4 + $0x5c0] sm:$0xff]
    %v3842 = vld [vmem:[#allocation4 + $0x5c8] sm:$0xf]
    %v3843 = vld [vmem:[#allocation4 + $0x5cc] sm:$0xff]
    %v3844 = vld [vmem:[#allocation4 + $0x5d4] sm:$0xff]
    %v3845 = vld [vmem:[#allocation4 + $0x5dc] sm:$0xff]
    %v3846 = vld [vmem:[#allocation4 + $0x5e4] sm:$0xf]
    %v3847 = vld [vmem:[#allocation4 + $0x5e8] sm:$0xff]
    %v3848 = vld [vmem:[#allocation4 + $0x5f0] sm:$0xff]
    %v3849 = vld [vmem:[#allocation4 + $0x5f8] sm:$0xff]
    %v3850 = vld [vmem:[#allocation4 + $0x600] sm:$0xf]
    %v3851 = vld [vmem:[#allocation4 + $0x604] sm:$0xff]
    %v3852 = vld [vmem:[#allocation4 + $0x60c] sm:$0xff]
    %v3853 = vld [vmem:[#allocation4 + $0x614] sm:$0xff]
    %v3854 = vld [vmem:[#allocation4 + $0x61c] sm:$0xf]
    %v3855 = vld [vmem:[#allocation4 + $0x620] sm:$0xff]
    %v3856 = vld [vmem:[#allocation4 + $0x628] sm:$0xff]
    %v3857 = vld [vmem:[#allocation4 + $0x630] sm:$0xff]
    %v3858 = vld [vmem:[#allocation4 + $0x638] sm:$0xf]
    %v3859 = vld [vmem:[#allocation4 + $0x63c] sm:$0xff]
    %v3860 = vld [vmem:[#allocation4 + $0x644] sm:$0xff]
    %v3861 = vld [vmem:[#allocation4 + $0x64c] sm:$0xff]
    %v3862 = vld [vmem:[#allocation4 + $0x654] sm:$0xf]
    %v3863 = vld [vmem:[#allocation4 + $0x658] sm:$0xff]
    %v3864 = vld [vmem:[#allocation4 + $0x660] sm:$0xff]
    %v3865 = vld [vmem:[#allocation4 + $0x668] sm:$0xff]
    %v3866 = vld [vmem:[#allocation4 + $0x670] sm:$0xf]
    %v3867 = vld [vmem:[#allocation4 + $0x674] sm:$0xff]
    %v3868 = vld [vmem:[#allocation4 + $0x67c] sm:$0xff]
    %v3869 = vld [vmem:[#allocation4 + $0x684] sm:$0xff]
    %v3870 = vld [vmem:[#allocation4 + $0x68c] sm:$0xf]
    %v3871 = vld [vmem:[#allocation4 + $0x690] sm:$0xff]
    %v3872 = vld [vmem:[#allocation4 + $0x698] sm:$0xff]
    %v3873 = vld [vmem:[#allocation4 + $0x6a0] sm:$0xff]
    %v3874 = vld [vmem:[#allocation4 + $0x6a8] sm:$0xf]
    %v3875 = vld [vmem:[#allocation4 + $0x6ac] sm:$0xff]
    %v3876 = vld [vmem:[#allocation4 + $0x6b4] sm:$0xff]
    %v3877 = vld [vmem:[#allocation4 + $0x6bc] sm:$0xff]
    %v3878 = vld [vmem:[#allocation4 + $0x6c4] sm:$0xf]
    %v3879 = vld [vmem:[#allocation4 + $0x6c8] sm:$0xff]
    %v3880 = vld [vmem:[#allocation4 + $0x6d0] sm:$0xff]
    %v3881 = vld [vmem:[#allocation4 + $0x6d8] sm:$0xff]
    %v3882 = vld [vmem:[#allocation4 + $0x6e0] sm:$0xf]
    %v3883 = vld [vmem:[#allocation4 + $0x6e4] sm:$0xff]
    %v3884 = vld [vmem:[#allocation4 + $0x6ec] sm:$0xff]
    %v3885 = vld [vmem:[#allocation4 + $0x6f4] sm:$0xff]
    %v3886 = vld [vmem:[#allocation4 + $0x6fc] sm:$0xf]
    %v3887 = vld [vmem:[#allocation4 + $0x700] sm:$0xff]
    %v3888 = vld [vmem:[#allocation4 + $0x708] sm:$0xff]
    %v3889 = vld [vmem:[#allocation4 + $0x710] sm:$0xff]
    %v3890 = vld [vmem:[#allocation4 + $0x718] sm:$0xf]
    %v3891 = vld [vmem:[#allocation4 + $0x71c] sm:$0xff]
    %v3892 = vld [vmem:[#allocation4 + $0x724] sm:$0xff]
    %v3893 = vld [vmem:[#allocation4 + $0x72c] sm:$0xff]
    %v3894 = vld [vmem:[#allocation4 + $0x734] sm:$0xf]
    %v3895 = vld [vmem:[#allocation4 + $0x738] sm:$0xff]
    %v3896 = vld [vmem:[#allocation4 + $0x740] sm:$0xff]
    %v3897 = vld [vmem:[#allocation4 + $0x748] sm:$0xff]
    %v3898 = vld [vmem:[#allocation4 + $0x750] sm:$0xf]
    %v3899 = vld [vmem:[#allocation4 + $0x754] sm:$0xff]
    %v3900 = vld [vmem:[#allocation4 + $0x75c] sm:$0xff]
    %v3901 = vld [vmem:[#allocation4 + $0x764] sm:$0xff]
    %v3902 = vld [vmem:[#allocation4 + $0x76c] sm:$0xf]
    %v3903 = vld [vmem:[#allocation4 + $0x770] sm:$0xff]
    %v3904 = vld [vmem:[#allocation4 + $0x778] sm:$0xff]
    %v3905 = vld [vmem:[#allocation4 + $0x780] sm:$0xff]
    %v3906 = vld [vmem:[#allocation4 + $0x788] sm:$0xf]
    %v3907 = vld [vmem:[#allocation4 + $0x78c] sm:$0xff]
    %v3908 = vld [vmem:[#allocation4 + $0x794] sm:$0xff]
    %v3909 = vld [vmem:[#allocation4 + $0x79c] sm:$0xff]
    %v3910 = vld [vmem:[#allocation4 + $0x7a4] sm:$0xf]
    %v3911 = vld [vmem:[#allocation4 + $0x7a8] sm:$0xff]
    %v3912 = vld [vmem:[#allocation4 + $0x7b0] sm:$0xff]
    %v3913 = vld [vmem:[#allocation4 + $0x7b8] sm:$0xff]
    %v3914 = vld [vmem:[#allocation4 + $0x7c0] sm:$0xf]
    %v3915 = vld [vmem:[#allocation4 + $0x7c4] sm:$0xff]
    %v3916 = vld [vmem:[#allocation4 + $0x7cc] sm:$0xff]
    %v3917 = vld [vmem:[#allocation4 + $0x7d4] sm:$0xff]
    %v3918 = vld [vmem:[#allocation4 + $0x7dc] sm:$0xf]
    %v3919 = vld [vmem:[#allocation4 + $0x7e0] sm:$0xff]
    %v3920 = vld [vmem:[#allocation4 + $0x7e8] sm:$0xff]
    %v3921 = vld [vmem:[#allocation4 + $0x7f0] sm:$0xff]
    %v3922 = vld [vmem:[#allocation4 + $0x7f8] sm:$0xf]
    %v3923 = vld [vmem:[#allocation4 + $0x7fc] sm:$0xff]
    %v3924 = vld [vmem:[#allocation4 + $0x804] sm:$0xff]
    %v3925 = vld [vmem:[#allocation4 + $0x80c] sm:$0xff]
    %v3926 = vld [vmem:[#allocation4 + $0x814] sm:$0xf]
    %v3927 = vld [vmem:[#allocation4 + $0x818] sm:$0xff]
    %v3928 = vld [vmem:[#allocation4 + $0x820] sm:$0xff]
    %v3929 = vld [vmem:[#allocation4 + $0x828] sm:$0xff]
    %v3930 = vld [vmem:[#allocation4 + $0x830] sm:$0xf]
    %v3931 = vld [vmem:[#allocation4 + $0x834] sm:$0xff]
    %v3932 = vld [vmem:[#allocation4 + $0x83c] sm:$0xff]
    %v3933 = vld [vmem:[#allocation4 + $0x844] sm:$0xff]
    %v3934 = vld [vmem:[#allocation4 + $0x84c] sm:$0xf]
    %v3935 = vld [vmem:[#allocation4 + $0x850] sm:$0xff]
    %v3936 = vld [vmem:[#allocation4 + $0x858] sm:$0xff]
    %v3937 = vld [vmem:[#allocation4 + $0x860] sm:$0xff]
    %v3938 = vld [vmem:[#allocation4 + $0x868] sm:$0xf]
    %v3939 = vld [vmem:[#allocation4 + $0x86c] sm:$0xff]
    %v3940 = vld [vmem:[#allocation4 + $0x874] sm:$0xff]
    %v3941 = vld [vmem:[#allocation4 + $0x87c] sm:$0xff]
    %v3942 = vld [vmem:[#allocation4 + $0x884] sm:$0xf]
    %v3943 = vld [vmem:[#allocation4 + $0x888] sm:$0xff]
    %v3944 = vld [vmem:[#allocation4 + $0x890] sm:$0xff]
    %v3945 = vld [vmem:[#allocation4 + $0x898] sm:$0xff]
    %v3946 = vld [vmem:[#allocation4 + $0x8a0] sm:$0xf]
    %v3947 = vld [vmem:[#allocation4 + $0x8a4] sm:$0xff]
    %v3948 = vld [vmem:[#allocation4 + $0x8ac] sm:$0xff]
    %v3949 = vld [vmem:[#allocation4 + $0x8b4] sm:$0xff]
    %v3950 = vld [vmem:[#allocation4 + $0x8bc] sm:$0xf]
    %v3951 = vld [vmem:[#allocation4 + $0x8c0] sm:$0xff]
    %v3952 = vld [vmem:[#allocation4 + $0x8c8] sm:$0xff]
    %v3953 = vld [vmem:[#allocation4 + $0x8d0] sm:$0xff]
    %v3954 = vld [vmem:[#allocation4 + $0x8d8] sm:$0xf]
    %v3955 = vld [vmem:[#allocation4 + $0x8dc] sm:$0xff]
    %v3956 = vld [vmem:[#allocation4 + $0x8e4] sm:$0xff]
    %v3957 = vld [vmem:[#allocation4 + $0x8ec] sm:$0xff]
    %v3958 = vld [vmem:[#allocation4 + $0x8f4] sm:$0xf]
    %v3959 = vld [vmem:[#allocation4 + $0x8f8] sm:$0xff]
    %v3960 = vld [vmem:[#allocation4 + $0x900] sm:$0xff]
    %v3961 = vld [vmem:[#allocation4 + $0x908] sm:$0xff]
    %v3962 = vld [vmem:[#allocation4 + $0x910] sm:$0xf]
    %v3963 = vld [vmem:[#allocation4 + $0x914] sm:$0xff]
    %v3964 = vld [vmem:[#allocation4 + $0x91c] sm:$0xff]
    %v3965 = vld [vmem:[#allocation4 + $0x924] sm:$0xff]
    %v3966 = vld [vmem:[#allocation4 + $0x92c] sm:$0xf]
    %v3967 = vld [vmem:[#allocation4 + $0x930] sm:$0xff]
    %v3968 = vld [vmem:[#allocation4 + $0x938] sm:$0xff]
    %v3969 = vld [vmem:[#allocation4 + $0x940] sm:$0xff]
    %v3970 = vld [vmem:[#allocation4 + $0x948] sm:$0xf]
    %v3971 = vld [vmem:[#allocation4 + $0x94c] sm:$0xff]
    %v3972 = vld [vmem:[#allocation4 + $0x954] sm:$0xff]
    %v3973 = vld [vmem:[#allocation4 + $0x95c] sm:$0xff]
    %v3974 = vld [vmem:[#allocation4 + $0x964] sm:$0xf]
    %v3975 = vld [vmem:[#allocation4 + $0x968] sm:$0xff]
    %v3976 = vld [vmem:[#allocation4 + $0x970] sm:$0xff]
    %v3977 = vld [vmem:[#allocation4 + $0x978] sm:$0xff]
    %v3978 = vld [vmem:[#allocation4 + $0x980] sm:$0xf]
    %v3979 = vld [vmem:[#allocation4 + $0x984] sm:$0xff]
    %v3980 = vld [vmem:[#allocation4 + $0x98c] sm:$0xff]
    %v3981 = vld [vmem:[#allocation4 + $0x994] sm:$0xff]
    %v3982 = vld [vmem:[#allocation4 + $0x99c] sm:$0xf]
    %v3983 = vld [vmem:[#allocation4 + $0x9a0] sm:$0xff]
    %v3984 = vld [vmem:[#allocation4 + $0x9a8] sm:$0xff]
    %v3985 = vld [vmem:[#allocation4 + $0x9b0] sm:$0xff]
    %v3986 = vld [vmem:[#allocation4 + $0x9b8] sm:$0xf]
    %v3987 = vld [vmem:[#allocation4 + $0x9bc] sm:$0xff]
    %v3988 = vld [vmem:[#allocation4 + $0x9c4] sm:$0xff]
    %v3989 = vld [vmem:[#allocation4 + $0x9cc] sm:$0xff]
    %v3990 = vld [vmem:[#allocation4 + $0x9d4] sm:$0xf]
    %v3991 = vld [vmem:[#allocation4 + $0x9d8] sm:$0xff]
    %v3992 = vld [vmem:[#allocation4 + $0x9e0] sm:$0xff]
    %v3993 = vld [vmem:[#allocation4 + $0x9e8] sm:$0xff]
    %v3994 = vld [vmem:[#allocation4 + $0x9f0] sm:$0xf]
    %v3995 = vld [vmem:[#allocation4 + $0x9f4] sm:$0xff]
    %v3996 = vld [vmem:[#allocation4 + $0x9fc] sm:$0xff]
    %v3997 = vld [vmem:[#allocation4 + $0xa04] sm:$0xff]
    %v3998 = vld [vmem:[#allocation4 + $0xa0c] sm:$0xf]
    %v3999 = vld [vmem:[#allocation4 + $0xa10] sm:$0xff]
    %v4000 = vld [vmem:[#allocation4 + $0xa18] sm:$0xff]
    %v4001 = vld [vmem:[#allocation4 + $0xa20] sm:$0xff]
    %v4002 = vld [vmem:[#allocation4 + $0xa28] sm:$0xf]
    %v4003 = vld [vmem:[#allocation4 + $0xa2c] sm:$0xff]
    %v4004 = vld [vmem:[#allocation4 + $0xa34] sm:$0xff]
    %v4005 = vld [vmem:[#allocation4 + $0xa3c] sm:$0xff]
    %v4006 = vld [vmem:[#allocation4 + $0xa44] sm:$0xf]
    %v4007 = vld [vmem:[#allocation4 + $0xa48] sm:$0xff]
    %v4008 = vld [vmem:[#allocation4 + $0xa50] sm:$0xff]
    %v4009 = vld [vmem:[#allocation4 + $0xa58] sm:$0xff]
    %v4010 = vld [vmem:[#allocation4 + $0xa60] sm:$0xf]
    %v4011 = vld [vmem:[#allocation4 + $0xa64] sm:$0xff]
    %v4012 = vld [vmem:[#allocation4 + $0xa6c] sm:$0xff]
    %v4013 = vld [vmem:[#allocation4 + $0xa74] sm:$0xff]
    %v4014 = vld [vmem:[#allocation4 + $0xa7c] sm:$0xf]
    %v4015 = vld [vmem:[#allocation4 + $0xa80] sm:$0xff]
    %v4016 = vld [vmem:[#allocation4 + $0xa88] sm:$0xff]
    %v4017 = vld [vmem:[#allocation4 + $0xa90] sm:$0xff]
    %v4018 = vld [vmem:[#allocation4 + $0xa98] sm:$0xf]
    %v4019 = vld [vmem:[#allocation4 + $0xa9c] sm:$0xff]
    %v4020 = vld [vmem:[#allocation4 + $0xaa4] sm:$0xff]
    %v4021 = vld [vmem:[#allocation4 + $0xaac] sm:$0xff]
    %v4022 = vld [vmem:[#allocation4 + $0xab4] sm:$0xf]
    %v4023 = vld [vmem:[%s4] sm:$0x7f]
    %v4025 = vlaneseq
    %v4026 = vshrl.u32 %v4025, 7
    %v4027 = vsub.s32 0, %v4026
    %v4028 = vrot.slane %v4023, %v4027
    %v4029 = vlaneseq
    %v4030 = vshrl.u32 %v4029, 7
    %v4031 = vsub.s32 1, %v4030
    %v4032 = vrot.slane %v4023, %v4031
    %v4033 = vlaneseq
    %v4034 = vshrl.u32 %v4033, 7
    %v4035 = vsub.s32 2, %v4034
    %v4036 = vrot.slane %v4023, %v4035
    %v4037 = vlaneseq
    %v4038 = vshrl.u32 %v4037, 7
    %v4039 = vsub.s32 3, %v4038
    %v4040 = vrot.slane %v4023, %v4039
    %v4041 = vlaneseq
    %v4042 = vshrl.u32 %v4041, 7
    %v4043 = vsub.s32 4, %v4042
    %v4044 = vrot.slane %v4023, %v4043
    %v4045 = vlaneseq
    %v4046 = vshrl.u32 %v4045, 7
    %v4047 = vsub.s32 5, %v4046
    %v4048 = vrot.slane %v4023, %v4047
    %v4049 = vlaneseq
    %v4050 = vshrl.u32 %v4049, 7
    %v4051 = vsub.s32 6, %v4050
    %v4052 = vrot.slane %v4023, %v4051
    %v4452 = vunpack.c.l.b16 %v3631
    %v4453 = vunpack.c.h.b16 %v3631
    %v4454 = vunpack.c.l.b16 %v3632
    %v4455 = vunpack.c.h.b16 %v3632
    %v4456 = vunpack.c.l.b16 %v3633
    %v4457 = vunpack.c.h.b16 %v3633
    %v4458 = vunpack.c.l.b16 %v3634
    %v4459 = vunpack.c.l.b16 %v3635
    %v4460 = vunpack.c.h.b16 %v3635
    %v4461 = vunpack.c.l.b16 %v3636
    %v4462 = vunpack.c.h.b16 %v3636
    %v4463 = vunpack.c.l.b16 %v3637
    %v4464 = vunpack.c.h.b16 %v3637
    %v4465 = vunpack.c.l.b16 %v3638
    %v4466 = vunpack.c.l.b16 %v3639
    %v4467 = vunpack.c.h.b16 %v3639
    %v4468 = vunpack.c.l.b16 %v3640
    %v4469 = vunpack.c.h.b16 %v3640
    %v4470 = vunpack.c.l.b16 %v3641
    %v4471 = vunpack.c.h.b16 %v3641
    %v4472 = vunpack.c.l.b16 %v3642
    %v4473 = vunpack.c.l.b16 %v3643
    %v4474 = vunpack.c.h.b16 %v3643
    %v4475 = vunpack.c.l.b16 %v3644
    %v4476 = vunpack.c.h.b16 %v3644
    %v4477 = vunpack.c.l.b16 %v3645
    %v4478 = vunpack.c.h.b16 %v3645
    %v4479 = vunpack.c.l.b16 %v3646
    %v4480 = vunpack.c.l.b16 %v3647
    %v4481 = vunpack.c.h.b16 %v3647
    %v4482 = vunpack.c.l.b16 %v3648
    %v4483 = vunpack.c.h.b16 %v3648
    %v4484 = vunpack.c.l.b16 %v3649
    %v4485 = vunpack.c.h.b16 %v3649
    %v4486 = vunpack.c.l.b16 %v3650
    %v4487 = vunpack.c.l.b16 %v3651
    %v4488 = vunpack.c.h.b16 %v3651
    %v4489 = vunpack.c.l.b16 %v3652
    %v4490 = vunpack.c.h.b16 %v3652
    %v4491 = vunpack.c.l.b16 %v3653
    %v4492 = vunpack.c.h.b16 %v3653
    %v4493 = vunpack.c.l.b16 %v3654
    %v4494 = vunpack.c.l.b16 %v3655
    %v4495 = vunpack.c.h.b16 %v3655
    %v4496 = vunpack.c.l.b16 %v3656
    %v4497 = vunpack.c.h.b16 %v3656
    %v4498 = vunpack.c.l.b16 %v3657
    %v4499 = vunpack.c.h.b16 %v3657
    %v4500 = vunpack.c.l.b16 %v3658
    %v4501 = vunpack.c.l.b16 %v3659
    %v4502 = vunpack.c.h.b16 %v3659
    %v4503 = vunpack.c.l.b16 %v3660
    %v4504 = vunpack.c.h.b16 %v3660
    %v4505 = vunpack.c.l.b16 %v3661
    %v4506 = vunpack.c.h.b16 %v3661
    %v4507 = vunpack.c.l.b16 %v3662
    %v4508 = vunpack.c.l.b16 %v3663
    %v4509 = vunpack.c.h.b16 %v3663
    %v4510 = vunpack.c.l.b16 %v3664
    %v4511 = vunpack.c.h.b16 %v3664
    %v4512 = vunpack.c.l.b16 %v3665
    %v4513 = vunpack.c.h.b16 %v3665
    %v4514 = vunpack.c.l.b16 %v3666
    %v4515 = vunpack.c.l.b16 %v3667
    %v4516 = vunpack.c.h.b16 %v3667
    %v4517 = vunpack.c.l.b16 %v3668
    %v4518 = vunpack.c.h.b16 %v3668
    %v4519 = vunpack.c.l.b16 %v3669
    %v4520 = vunpack.c.h.b16 %v3669
    %v4521 = vunpack.c.l.b16 %v3670
    %v4522 = vunpack.c.l.b16 %v3671
    %v4523 = vunpack.c.h.b16 %v3671
    %v4524 = vunpack.c.l.b16 %v3672
    %v4525 = vunpack.c.h.b16 %v3672
    %v4526 = vunpack.c.l.b16 %v3673
    %v4527 = vunpack.c.h.b16 %v3673
    %v4528 = vunpack.c.l.b16 %v3674
    %v4529 = vunpack.c.l.b16 %v3675
    %v4530 = vunpack.c.h.b16 %v3675
    %v4531 = vunpack.c.l.b16 %v3676
    %v4532 = vunpack.c.h.b16 %v3676
    %v4533 = vunpack.c.l.b16 %v3677
    %v4534 = vunpack.c.h.b16 %v3677
    %v4535 = vunpack.c.l.b16 %v3678
    %v4536 = vunpack.c.l.b16 %v3679
    %v4537 = vunpack.c.h.b16 %v3679
    %v4538 = vunpack.c.l.b16 %v3680
    %v4539 = vunpack.c.h.b16 %v3680
    %v4540 = vunpack.c.l.b16 %v3681
    %v4541 = vunpack.c.h.b16 %v3681
    %v4542 = vunpack.c.l.b16 %v3682
    %v4543 = vunpack.c.l.b16 %v3683
    %v4544 = vunpack.c.h.b16 %v3683
    %v4545 = vunpack.c.l.b16 %v3684
    %v4546 = vunpack.c.h.b16 %v3684
    %v4547 = vunpack.c.l.b16 %v3685
    %v4548 = vunpack.c.h.b16 %v3685
    %v4549 = vunpack.c.l.b16 %v3686
    %v4550 = vunpack.c.l.b16 %v3687
    %v4551 = vunpack.c.h.b16 %v3687
    %v4552 = vunpack.c.l.b16 %v3688
    %v4553 = vunpack.c.h.b16 %v3688
    %v4554 = vunpack.c.l.b16 %v3689
    %v4555 = vunpack.c.h.b16 %v3689
    %v4556 = vunpack.c.l.b16 %v3690
    %v4557 = vunpack.c.l.b16 %v3691
    %v4558 = vunpack.c.h.b16 %v3691
    %v4559 = vunpack.c.l.b16 %v3692
    %v4560 = vunpack.c.h.b16 %v3692
    %v4561 = vunpack.c.l.b16 %v3693
    %v4562 = vunpack.c.h.b16 %v3693
    %v4563 = vunpack.c.l.b16 %v3694
    %v4564 = vunpack.c.l.b16 %v3695
    %v4565 = vunpack.c.h.b16 %v3695
    %v4566 = vunpack.c.l.b16 %v3696
    %v4567 = vunpack.c.h.b16 %v3696
    %v4568 = vunpack.c.l.b16 %v3697
    %v4569 = vunpack.c.h.b16 %v3697
    %v4570 = vunpack.c.l.b16 %v3698
    %v4571 = vunpack.c.l.b16 %v3699
    %v4572 = vunpack.c.h.b16 %v3699
    %v4573 = vunpack.c.l.b16 %v3700
    %v4574 = vunpack.c.h.b16 %v3700
    %v4575 = vunpack.c.l.b16 %v3701
    %v4576 = vunpack.c.h.b16 %v3701
    %v4577 = vunpack.c.l.b16 %v3702
    %v4578 = vunpack.c.l.b16 %v3703
    %v4579 = vunpack.c.h.b16 %v3703
    %v4580 = vunpack.c.l.b16 %v3704
    %v4581 = vunpack.c.h.b16 %v3704
    %v4582 = vunpack.c.l.b16 %v3705
    %v4583 = vunpack.c.h.b16 %v3705
    %v4584 = vunpack.c.l.b16 %v3706
    %v4585 = vunpack.c.l.b16 %v3707
    %v4586 = vunpack.c.h.b16 %v3707
    %v4587 = vunpack.c.l.b16 %v3708
    %v4588 = vunpack.c.h.b16 %v3708
    %v4589 = vunpack.c.l.b16 %v3709
    %v4590 = vunpack.c.h.b16 %v3709
    %v4591 = vunpack.c.l.b16 %v3710
    %v4592 = vunpack.c.l.b16 %v3711
    %v4593 = vunpack.c.h.b16 %v3711
    %v4594 = vunpack.c.l.b16 %v3712
    %v4595 = vunpack.c.h.b16 %v3712
    %v4596 = vunpack.c.l.b16 %v3713
    %v4597 = vunpack.c.h.b16 %v3713
    %v4598 = vunpack.c.l.b16 %v3714
    %v4599 = vunpack.c.l.b16 %v3715
    %v4600 = vunpack.c.h.b16 %v3715
    %v4601 = vunpack.c.l.b16 %v3716
    %v4602 = vunpack.c.h.b16 %v3716
    %v4603 = vunpack.c.l.b16 %v3717
    %v4604 = vunpack.c.h.b16 %v3717
    %v4605 = vunpack.c.l.b16 %v3718
    %v4606 = vunpack.c.l.b16 %v3719
    %v4607 = vunpack.c.h.b16 %v3719
    %v4608 = vunpack.c.l.b16 %v3720
    %v4609 = vunpack.c.h.b16 %v3720
    %v4610 = vunpack.c.l.b16 %v3721
    %v4611 = vunpack.c.h.b16 %v3721
    %v4612 = vunpack.c.l.b16 %v3722
    %v4613 = vunpack.c.l.b16 %v3723
    %v4614 = vunpack.c.h.b16 %v3723
    %v4615 = vunpack.c.l.b16 %v3724
    %v4616 = vunpack.c.h.b16 %v3724
    %v4617 = vunpack.c.l.b16 %v3725
    %v4618 = vunpack.c.h.b16 %v3725
    %v4619 = vunpack.c.l.b16 %v3726
    %v4620 = vunpack.c.l.b16 %v3727
    %v4621 = vunpack.c.h.b16 %v3727
    %v4622 = vunpack.c.l.b16 %v3728
    %v4623 = vunpack.c.h.b16 %v3728
    %v4624 = vunpack.c.l.b16 %v3729
    %v4625 = vunpack.c.h.b16 %v3729
    %v4626 = vunpack.c.l.b16 %v3730
    %v4627 = vunpack.c.l.b16 %v3731
    %v4628 = vunpack.c.h.b16 %v3731
    %v4629 = vunpack.c.l.b16 %v3732
    %v4630 = vunpack.c.h.b16 %v3732
    %v4631 = vunpack.c.l.b16 %v3733
    %v4632 = vunpack.c.h.b16 %v3733
    %v4633 = vunpack.c.l.b16 %v3734
    %v4634 = vunpack.c.l.b16 %v3735
    %v4635 = vunpack.c.h.b16 %v3735
    %v4636 = vunpack.c.l.b16 %v3736
    %v4637 = vunpack.c.h.b16 %v3736
    %v4638 = vunpack.c.l.b16 %v3737
    %v4639 = vunpack.c.h.b16 %v3737
    %v4640 = vunpack.c.l.b16 %v3738
    %v4641 = vunpack.c.l.b16 %v3739
    %v4642 = vunpack.c.h.b16 %v3739
    %v4643 = vunpack.c.l.b16 %v3740
    %v4644 = vunpack.c.h.b16 %v3740
    %v4645 = vunpack.c.l.b16 %v3741
    %v4646 = vunpack.c.h.b16 %v3741
    %v4647 = vunpack.c.l.b16 %v3742
    %v4648 = vunpack.c.l.b16 %v3743
    %v4649 = vunpack.c.h.b16 %v3743
    %v4650 = vunpack.c.l.b16 %v3744
    %v4651 = vunpack.c.h.b16 %v3744
    %v4652 = vunpack.c.l.b16 %v3745
    %v4653 = vunpack.c.h.b16 %v3745
    %v4654 = vunpack.c.l.b16 %v3746
    %v4655 = vunpack.c.l.b16 %v3747
    %v4656 = vunpack.c.h.b16 %v3747
    %v4657 = vunpack.c.l.b16 %v3748
    %v4658 = vunpack.c.h.b16 %v3748
    %v4659 = vunpack.c.l.b16 %v3749
    %v4660 = vunpack.c.h.b16 %v3749
    %v4661 = vunpack.c.l.b16 %v3750
    %v4662 = vunpack.c.l.b16 %v3751
    %v4663 = vunpack.c.h.b16 %v3751
    %v4664 = vunpack.c.l.b16 %v3752
    %v4665 = vunpack.c.h.b16 %v3752
    %v4666 = vunpack.c.l.b16 %v3753
    %v4667 = vunpack.c.h.b16 %v3753
    %v4668 = vunpack.c.l.b16 %v3754
    %v4669 = vunpack.c.l.b16 %v3755
    %v4670 = vunpack.c.h.b16 %v3755
    %v4671 = vunpack.c.l.b16 %v3756
    %v4672 = vunpack.c.h.b16 %v3756
    %v4673 = vunpack.c.l.b16 %v3757
    %v4674 = vunpack.c.h.b16 %v3757
    %v4675 = vunpack.c.l.b16 %v3758
    %v4676 = vunpack.c.l.b16 %v3759
    %v4677 = vunpack.c.h.b16 %v3759
    %v4678 = vunpack.c.l.b16 %v3760
    %v4679 = vunpack.c.h.b16 %v3760
    %v4680 = vunpack.c.l.b16 %v3761
    %v4681 = vunpack.c.h.b16 %v3761
    %v4682 = vunpack.c.l.b16 %v3762
    %v4683 = vunpack.c.l.b16 %v3763
    %v4684 = vunpack.c.h.b16 %v3763
    %v4685 = vunpack.c.l.b16 %v3764
    %v4686 = vunpack.c.h.b16 %v3764
    %v4687 = vunpack.c.l.b16 %v3765
    %v4688 = vunpack.c.h.b16 %v3765
    %v4689 = vunpack.c.l.b16 %v3766
    %v4690 = vunpack.c.l.b16 %v3767
    %v4691 = vunpack.c.h.b16 %v3767
    %v4692 = vunpack.c.l.b16 %v3768
    %v4693 = vunpack.c.h.b16 %v3768
    %v4694 = vunpack.c.l.b16 %v3769
    %v4695 = vunpack.c.h.b16 %v3769
    %v4696 = vunpack.c.l.b16 %v3770
    %v4697 = vunpack.c.l.b16 %v3771
    %v4698 = vunpack.c.h.b16 %v3771
    %v4699 = vunpack.c.l.b16 %v3772
    %v4700 = vunpack.c.h.b16 %v3772
    %v4701 = vunpack.c.l.b16 %v3773
    %v4702 = vunpack.c.h.b16 %v3773
    %v4703 = vunpack.c.l.b16 %v3774
    %v4704 = vunpack.c.l.b16 %v3775
    %v4705 = vunpack.c.h.b16 %v3775
    %v4706 = vunpack.c.l.b16 %v3776
    %v4707 = vunpack.c.h.b16 %v3776
    %v4708 = vunpack.c.l.b16 %v3777
    %v4709 = vunpack.c.h.b16 %v3777
    %v4710 = vunpack.c.l.b16 %v3778
    %v4711 = vunpack.c.l.b16 %v3779
    %v4712 = vunpack.c.h.b16 %v3779
    %v4713 = vunpack.c.l.b16 %v3780
    %v4714 = vunpack.c.h.b16 %v3780
    %v4715 = vunpack.c.l.b16 %v3781
    %v4716 = vunpack.c.h.b16 %v3781
    %v4717 = vunpack.c.l.b16 %v3782
    %v4718 = vunpack.c.l.b16 %v3783
    %v4719 = vunpack.c.h.b16 %v3783
    %v4720 = vunpack.c.l.b16 %v3784
    %v4721 = vunpack.c.h.b16 %v3784
    %v4722 = vunpack.c.l.b16 %v3785
    %v4723 = vunpack.c.h.b16 %v3785
    %v4724 = vunpack.c.l.b16 %v3786
    %v4725 = vunpack.c.l.b16 %v3787
    %v4726 = vunpack.c.h.b16 %v3787
    %v4727 = vunpack.c.l.b16 %v3788
    %v4728 = vunpack.c.h.b16 %v3788
    %v4729 = vunpack.c.l.b16 %v3789
    %v4730 = vunpack.c.h.b16 %v3789
    %v4731 = vunpack.c.l.b16 %v3790
    %v4732 = vunpack.c.l.b16 %v3791
    %v4733 = vunpack.c.h.b16 %v3791
    %v4734 = vunpack.c.l.b16 %v3792
    %v4735 = vunpack.c.h.b16 %v3792
    %v4736 = vunpack.c.l.b16 %v3793
    %v4737 = vunpack.c.h.b16 %v3793
    %v4738 = vunpack.c.l.b16 %v3794
    %v4739 = vunpack.c.l.b16 %v3795
    %v4740 = vunpack.c.h.b16 %v3795
    %v4741 = vunpack.c.l.b16 %v3796
    %v4742 = vunpack.c.h.b16 %v3796
    %v4743 = vunpack.c.l.b16 %v3797
    %v4744 = vunpack.c.h.b16 %v3797
    %v4745 = vunpack.c.l.b16 %v3798
    %v4746 = vunpack.c.l.b16 %v3799
    %v4747 = vunpack.c.h.b16 %v3799
    %v4748 = vunpack.c.l.b16 %v3800
    %v4749 = vunpack.c.h.b16 %v3800
    %v4750 = vunpack.c.l.b16 %v3801
    %v4751 = vunpack.c.h.b16 %v3801
    %v4752 = vunpack.c.l.b16 %v3802
    %v4753 = vunpack.c.l.b16 %v3803
    %v4754 = vunpack.c.h.b16 %v3803
    %v4755 = vunpack.c.l.b16 %v3804
    %v4756 = vunpack.c.h.b16 %v3804
    %v4757 = vunpack.c.l.b16 %v3805
    %v4758 = vunpack.c.h.b16 %v3805
    %v4759 = vunpack.c.l.b16 %v3806
    %v4760 = vunpack.c.l.b16 %v3807
    %v4761 = vunpack.c.h.b16 %v3807
    %v4762 = vunpack.c.l.b16 %v3808
    %v4763 = vunpack.c.h.b16 %v3808
    %v4764 = vunpack.c.l.b16 %v3809
    %v4765 = vunpack.c.h.b16 %v3809
    %v4766 = vunpack.c.l.b16 %v3810
    %v4767 = vunpack.c.l.b16 %v3811
    %v4768 = vunpack.c.h.b16 %v3811
    %v4769 = vunpack.c.l.b16 %v3812
    %v4770 = vunpack.c.h.b16 %v3812
    %v4771 = vunpack.c.l.b16 %v3813
    %v4772 = vunpack.c.h.b16 %v3813
    %v4773 = vunpack.c.l.b16 %v3814
    %v4774 = vunpack.c.l.b16 %v3815
    %v4775 = vunpack.c.h.b16 %v3815
    %v4776 = vunpack.c.l.b16 %v3816
    %v4777 = vunpack.c.h.b16 %v3816
    %v4778 = vunpack.c.l.b16 %v3817
    %v4779 = vunpack.c.h.b16 %v3817
    %v4780 = vunpack.c.l.b16 %v3818
    %v4781 = vunpack.c.l.b16 %v3819
    %v4782 = vunpack.c.h.b16 %v3819
    %v4783 = vunpack.c.l.b16 %v3820
    %v4784 = vunpack.c.h.b16 %v3820
    %v4785 = vunpack.c.l.b16 %v3821
    %v4786 = vunpack.c.h.b16 %v3821
    %v4787 = vunpack.c.l.b16 %v3822
    %v4788 = vunpack.c.l.b16 %v3823
    %v4789 = vunpack.c.h.b16 %v3823
    %v4790 = vunpack.c.l.b16 %v3824
    %v4791 = vunpack.c.h.b16 %v3824
    %v4792 = vunpack.c.l.b16 %v3825
    %v4793 = vunpack.c.h.b16 %v3825
    %v4794 = vunpack.c.l.b16 %v3826
    %v4795 = vunpack.c.l.b16 %v3827
    %v4796 = vunpack.c.h.b16 %v3827
    %v4797 = vunpack.c.l.b16 %v3828
    %v4798 = vunpack.c.h.b16 %v3828
    %v4799 = vunpack.c.l.b16 %v3829
    %v4800 = vunpack.c.h.b16 %v3829
    %v4801 = vunpack.c.l.b16 %v3830
    %v4802 = vunpack.c.l.b16 %v3831
    %v4803 = vunpack.c.h.b16 %v3831
    %v4804 = vunpack.c.l.b16 %v3832
    %v4805 = vunpack.c.h.b16 %v3832
    %v4806 = vunpack.c.l.b16 %v3833
    %v4807 = vunpack.c.h.b16 %v3833
    %v4808 = vunpack.c.l.b16 %v3834
    %v4809 = vunpack.c.l.b16 %v3835
    %v4810 = vunpack.c.h.b16 %v3835
    %v4811 = vunpack.c.l.b16 %v3836
    %v4812 = vunpack.c.h.b16 %v3836
    %v4813 = vunpack.c.l.b16 %v3837
    %v4814 = vunpack.c.h.b16 %v3837
    %v4815 = vunpack.c.l.b16 %v3838
    %v4816 = vunpack.c.l.b16 %v3839
    %v4817 = vunpack.c.h.b16 %v3839
    %v4818 = vunpack.c.l.b16 %v3840
    %v4819 = vunpack.c.h.b16 %v3840
    %v4820 = vunpack.c.l.b16 %v3841
    %v4821 = vunpack.c.h.b16 %v3841
    %v4822 = vunpack.c.l.b16 %v3842
    %v4823 = vunpack.c.l.b16 %v3843
    %v4824 = vunpack.c.h.b16 %v3843
    %v4825 = vunpack.c.l.b16 %v3844
    %v4826 = vunpack.c.h.b16 %v3844
    %v4827 = vunpack.c.l.b16 %v3845
    %v4828 = vunpack.c.h.b16 %v3845
    %v4829 = vunpack.c.l.b16 %v3846
    %v4830 = vunpack.c.l.b16 %v3847
    %v4831 = vunpack.c.h.b16 %v3847
    %v4832 = vunpack.c.l.b16 %v3848
    %v4833 = vunpack.c.h.b16 %v3848
    %v4834 = vunpack.c.l.b16 %v3849
    %v4835 = vunpack.c.h.b16 %v3849
    %v4836 = vunpack.c.l.b16 %v3850
    %v4837 = vunpack.c.l.b16 %v3851
    %v4838 = vunpack.c.h.b16 %v3851
    %v4839 = vunpack.c.l.b16 %v3852
    %v4840 = vunpack.c.h.b16 %v3852
    %v4841 = vunpack.c.l.b16 %v3853
    %v4842 = vunpack.c.h.b16 %v3853
    %v4843 = vunpack.c.l.b16 %v3854
    %v4844 = vunpack.c.l.b16 %v3855
    %v4845 = vunpack.c.h.b16 %v3855
    %v4846 = vunpack.c.l.b16 %v3856
    %v4847 = vunpack.c.h.b16 %v3856
    %v4848 = vunpack.c.l.b16 %v3857
    %v4849 = vunpack.c.h.b16 %v3857
    %v4850 = vunpack.c.l.b16 %v3858
    %v4851 = vunpack.c.l.b16 %v3859
    %v4852 = vunpack.c.h.b16 %v3859
    %v4853 = vunpack.c.l.b16 %v3860
    %v4854 = vunpack.c.h.b16 %v3860
    %v4855 = vunpack.c.l.b16 %v3861
    %v4856 = vunpack.c.h.b16 %v3861
    %v4857 = vunpack.c.l.b16 %v3862
    %v4858 = vunpack.c.l.b16 %v3863
    %v4859 = vunpack.c.h.b16 %v3863
    %v4860 = vunpack.c.l.b16 %v3864
    %v4861 = vunpack.c.h.b16 %v3864
    %v4862 = vunpack.c.l.b16 %v3865
    %v4863 = vunpack.c.h.b16 %v3865
    %v4864 = vunpack.c.l.b16 %v3866
    %v4865 = vunpack.c.l.b16 %v3867
    %v4866 = vunpack.c.h.b16 %v3867
    %v4867 = vunpack.c.l.b16 %v3868
    %v4868 = vunpack.c.h.b16 %v3868
    %v4869 = vunpack.c.l.b16 %v3869
    %v4870 = vunpack.c.h.b16 %v3869
    %v4871 = vunpack.c.l.b16 %v3870
    %v4872 = vunpack.c.l.b16 %v3871
    %v4873 = vunpack.c.h.b16 %v3871
    %v4874 = vunpack.c.l.b16 %v3872
    %v4875 = vunpack.c.h.b16 %v3872
    %v4876 = vunpack.c.l.b16 %v3873
    %v4877 = vunpack.c.h.b16 %v3873
    %v4878 = vunpack.c.l.b16 %v3874
    %v4879 = vunpack.c.l.b16 %v3875
    %v4880 = vunpack.c.h.b16 %v3875
    %v4881 = vunpack.c.l.b16 %v3876
    %v4882 = vunpack.c.h.b16 %v3876
    %v4883 = vunpack.c.l.b16 %v3877
    %v4884 = vunpack.c.h.b16 %v3877
    %v4885 = vunpack.c.l.b16 %v3878
    %v4886 = vunpack.c.l.b16 %v3879
    %v4887 = vunpack.c.h.b16 %v3879
    %v4888 = vunpack.c.l.b16 %v3880
    %v4889 = vunpack.c.h.b16 %v3880
    %v4890 = vunpack.c.l.b16 %v3881
    %v4891 = vunpack.c.h.b16 %v3881
    %v4892 = vunpack.c.l.b16 %v3882
    %v4893 = vunpack.c.l.b16 %v3883
    %v4894 = vunpack.c.h.b16 %v3883
    %v4895 = vunpack.c.l.b16 %v3884
    %v4896 = vunpack.c.h.b16 %v3884
    %v4897 = vunpack.c.l.b16 %v3885
    %v4898 = vunpack.c.h.b16 %v3885
    %v4899 = vunpack.c.l.b16 %v3886
    %v4900 = vunpack.c.l.b16 %v3887
    %v4901 = vunpack.c.h.b16 %v3887
    %v4902 = vunpack.c.l.b16 %v3888
    %v4903 = vunpack.c.h.b16 %v3888
    %v4904 = vunpack.c.l.b16 %v3889
    %v4905 = vunpack.c.h.b16 %v3889
    %v4906 = vunpack.c.l.b16 %v3890
    %v4907 = vunpack.c.l.b16 %v3891
    %v4908 = vunpack.c.h.b16 %v3891
    %v4909 = vunpack.c.l.b16 %v3892
    %v4910 = vunpack.c.h.b16 %v3892
    %v4911 = vunpack.c.l.b16 %v3893
    %v4912 = vunpack.c.h.b16 %v3893
    %v4913 = vunpack.c.l.b16 %v3894
    %v4914 = vunpack.c.l.b16 %v3895
    %v4915 = vunpack.c.h.b16 %v3895
    %v4916 = vunpack.c.l.b16 %v3896
    %v4917 = vunpack.c.h.b16 %v3896
    %v4918 = vunpack.c.l.b16 %v3897
    %v4919 = vunpack.c.h.b16 %v3897
    %v4920 = vunpack.c.l.b16 %v3898
    %v4921 = vunpack.c.l.b16 %v3899
    %v4922 = vunpack.c.h.b16 %v3899
    %v4923 = vunpack.c.l.b16 %v3900
    %v4924 = vunpack.c.h.b16 %v3900
    %v4925 = vunpack.c.l.b16 %v3901
    %v4926 = vunpack.c.h.b16 %v3901
    %v4927 = vunpack.c.l.b16 %v3902
    %v4928 = vunpack.c.l.b16 %v3903
    %v4929 = vunpack.c.h.b16 %v3903
    %v4930 = vunpack.c.l.b16 %v3904
    %v4931 = vunpack.c.h.b16 %v3904
    %v4932 = vunpack.c.l.b16 %v3905
    %v4933 = vunpack.c.h.b16 %v3905
    %v4934 = vunpack.c.l.b16 %v3906
    %v4935 = vunpack.c.l.b16 %v3907
    %v4936 = vunpack.c.h.b16 %v3907
    %v4937 = vunpack.c.l.b16 %v3908
    %v4938 = vunpack.c.h.b16 %v3908
    %v4939 = vunpack.c.l.b16 %v3909
    %v4940 = vunpack.c.h.b16 %v3909
    %v4941 = vunpack.c.l.b16 %v3910
    %v4942 = vunpack.c.l.b16 %v3911
    %v4943 = vunpack.c.h.b16 %v3911
    %v4944 = vunpack.c.l.b16 %v3912
    %v4945 = vunpack.c.h.b16 %v3912
    %v4946 = vunpack.c.l.b16 %v3913
    %v4947 = vunpack.c.h.b16 %v3913
    %v4948 = vunpack.c.l.b16 %v3914
    %v4949 = vunpack.c.l.b16 %v3915
    %v4950 = vunpack.c.h.b16 %v3915
    %v4951 = vunpack.c.l.b16 %v3916
    %v4952 = vunpack.c.h.b16 %v3916
    %v4953 = vunpack.c.l.b16 %v3917
    %v4954 = vunpack.c.h.b16 %v3917
    %v4955 = vunpack.c.l.b16 %v3918
    %v4956 = vunpack.c.l.b16 %v3919
    %v4957 = vunpack.c.h.b16 %v3919
    %v4958 = vunpack.c.l.b16 %v3920
    %v4959 = vunpack.c.h.b16 %v3920
    %v4960 = vunpack.c.l.b16 %v3921
    %v4961 = vunpack.c.h.b16 %v3921
    %v4962 = vunpack.c.l.b16 %v3922
    %v4963 = vunpack.c.l.b16 %v3923
    %v4964 = vunpack.c.h.b16 %v3923
    %v4965 = vunpack.c.l.b16 %v3924
    %v4966 = vunpack.c.h.b16 %v3924
    %v4967 = vunpack.c.l.b16 %v3925
    %v4968 = vunpack.c.h.b16 %v3925
    %v4969 = vunpack.c.l.b16 %v3926
    %v4970 = vunpack.c.l.b16 %v3927
    %v4971 = vunpack.c.h.b16 %v3927
    %v4972 = vunpack.c.l.b16 %v3928
    %v4973 = vunpack.c.h.b16 %v3928
    %v4974 = vunpack.c.l.b16 %v3929
    %v4975 = vunpack.c.h.b16 %v3929
    %v4976 = vunpack.c.l.b16 %v3930
    %v4977 = vunpack.c.l.b16 %v3931
    %v4978 = vunpack.c.h.b16 %v3931
    %v4979 = vunpack.c.l.b16 %v3932
    %v4980 = vunpack.c.h.b16 %v3932
    %v4981 = vunpack.c.l.b16 %v3933
    %v4982 = vunpack.c.h.b16 %v3933
    %v4983 = vunpack.c.l.b16 %v3934
    %v4984 = vunpack.c.l.b16 %v3935
    %v4985 = vunpack.c.h.b16 %v3935
    %v4986 = vunpack.c.l.b16 %v3936
    %v4987 = vunpack.c.h.b16 %v3936
    %v4988 = vunpack.c.l.b16 %v3937
    %v4989 = vunpack.c.h.b16 %v3937
    %v4990 = vunpack.c.l.b16 %v3938
    %v4991 = vunpack.c.l.b16 %v3939
    %v4992 = vunpack.c.h.b16 %v3939
    %v4993 = vunpack.c.l.b16 %v3940
    %v4994 = vunpack.c.h.b16 %v3940
    %v4995 = vunpack.c.l.b16 %v3941
    %v4996 = vunpack.c.h.b16 %v3941
    %v4997 = vunpack.c.l.b16 %v3942
    %v4998 = vunpack.c.l.b16 %v3943
    %v4999 = vunpack.c.h.b16 %v3943
    %v5000 = vunpack.c.l.b16 %v3944
    %v5001 = vunpack.c.h.b16 %v3944
    %v5002 = vunpack.c.l.b16 %v3945
    %v5003 = vunpack.c.h.b16 %v3945
    %v5004 = vunpack.c.l.b16 %v3946
    %v5005 = vunpack.c.l.b16 %v3947
    %v5006 = vunpack.c.h.b16 %v3947
    %v5007 = vunpack.c.l.b16 %v3948
    %v5008 = vunpack.c.h.b16 %v3948
    %v5009 = vunpack.c.l.b16 %v3949
    %v5010 = vunpack.c.h.b16 %v3949
    %v5011 = vunpack.c.l.b16 %v3950
    %v5012 = vunpack.c.l.b16 %v3951
    %v5013 = vunpack.c.h.b16 %v3951
    %v5014 = vunpack.c.l.b16 %v3952
    %v5015 = vunpack.c.h.b16 %v3952
    %v5016 = vunpack.c.l.b16 %v3953
    %v5017 = vunpack.c.h.b16 %v3953
    %v5018 = vunpack.c.l.b16 %v3954
    %v5019 = vunpack.c.l.b16 %v3955
    %v5020 = vunpack.c.h.b16 %v3955
    %v5021 = vunpack.c.l.b16 %v3956
    %v5022 = vunpack.c.h.b16 %v3956
    %v5023 = vunpack.c.l.b16 %v3957
    %v5024 = vunpack.c.h.b16 %v3957
    %v5025 = vunpack.c.l.b16 %v3958
    %v5026 = vunpack.c.l.b16 %v3959
    %v5027 = vunpack.c.h.b16 %v3959
    %v5028 = vunpack.c.l.b16 %v3960
    %v5029 = vunpack.c.h.b16 %v3960
    %v5030 = vunpack.c.l.b16 %v3961
    %v5031 = vunpack.c.h.b16 %v3961
    %v5032 = vunpack.c.l.b16 %v3962
    %v5033 = vunpack.c.l.b16 %v3963
    %v5034 = vunpack.c.h.b16 %v3963
    %v5035 = vunpack.c.l.b16 %v3964
    %v5036 = vunpack.c.h.b16 %v3964
    %v5037 = vunpack.c.l.b16 %v3965
    %v5038 = vunpack.c.h.b16 %v3965
    %v5039 = vunpack.c.l.b16 %v3966
    %v5040 = vunpack.c.l.b16 %v3967
    %v5041 = vunpack.c.h.b16 %v3967
    %v5042 = vunpack.c.l.b16 %v3968
    %v5043 = vunpack.c.h.b16 %v3968
    %v5044 = vunpack.c.l.b16 %v3969
    %v5045 = vunpack.c.h.b16 %v3969
    %v5046 = vunpack.c.l.b16 %v3970
    %v5047 = vunpack.c.l.b16 %v3971
    %v5048 = vunpack.c.h.b16 %v3971
    %v5049 = vunpack.c.l.b16 %v3972
    %v5050 = vunpack.c.h.b16 %v3972
    %v5051 = vunpack.c.l.b16 %v3973
    %v5052 = vunpack.c.h.b16 %v3973
    %v5053 = vunpack.c.l.b16 %v3974
    %v5054 = vunpack.c.l.b16 %v3975
    %v5055 = vunpack.c.h.b16 %v3975
    %v5056 = vunpack.c.l.b16 %v3976
    %v5057 = vunpack.c.h.b16 %v3976
    %v5058 = vunpack.c.l.b16 %v3977
    %v5059 = vunpack.c.h.b16 %v3977
    %v5060 = vunpack.c.l.b16 %v3978
    %v5061 = vunpack.c.l.b16 %v3979
    %v5062 = vunpack.c.h.b16 %v3979
    %v5063 = vunpack.c.l.b16 %v3980
    %v5064 = vunpack.c.h.b16 %v3980
    %v5065 = vunpack.c.l.b16 %v3981
    %v5066 = vunpack.c.h.b16 %v3981
    %v5067 = vunpack.c.l.b16 %v3982
    %v5068 = vunpack.c.l.b16 %v3983
    %v5069 = vunpack.c.h.b16 %v3983
    %v5070 = vunpack.c.l.b16 %v3984
    %v5071 = vunpack.c.h.b16 %v3984
    %v5072 = vunpack.c.l.b16 %v3985
    %v5073 = vunpack.c.h.b16 %v3985
    %v5074 = vunpack.c.l.b16 %v3986
    %v5075 = vunpack.c.l.b16 %v3987
    %v5076 = vunpack.c.h.b16 %v3987
    %v5077 = vunpack.c.l.b16 %v3988
    %v5078 = vunpack.c.h.b16 %v3988
    %v5079 = vunpack.c.l.b16 %v3989
    %v5080 = vunpack.c.h.b16 %v3989
    %v5081 = vunpack.c.l.b16 %v3990
    %v5082 = vunpack.c.l.b16 %v3991
    %v5083 = vunpack.c.h.b16 %v3991
    %v5084 = vunpack.c.l.b16 %v3992
    %v5085 = vunpack.c.h.b16 %v3992
    %v5086 = vunpack.c.l.b16 %v3993
    %v5087 = vunpack.c.h.b16 %v3993
    %v5088 = vunpack.c.l.b16 %v3994
    %v5089 = vunpack.c.l.b16 %v3995
    %v5090 = vunpack.c.h.b16 %v3995
    %v5091 = vunpack.c.l.b16 %v3996
    %v5092 = vunpack.c.h.b16 %v3996
    %v5093 = vunpack.c.l.b16 %v3997
    %v5094 = vunpack.c.h.b16 %v3997
    %v5095 = vunpack.c.l.b16 %v3998
    %v5096 = vunpack.c.l.b16 %v3999
    %v5097 = vunpack.c.h.b16 %v3999
    %v5098 = vunpack.c.l.b16 %v4000
    %v5099 = vunpack.c.h.b16 %v4000
    %v5100 = vunpack.c.l.b16 %v4001
    %v5101 = vunpack.c.h.b16 %v4001
    %v5102 = vunpack.c.l.b16 %v4002
    %v5103 = vunpack.c.l.b16 %v4003
    %v5104 = vunpack.c.h.b16 %v4003
    %v5105 = vunpack.c.l.b16 %v4004
    %v5106 = vunpack.c.h.b16 %v4004
    %v5107 = vunpack.c.l.b16 %v4005
    %v5108 = vunpack.c.h.b16 %v4005
    %v5109 = vunpack.c.l.b16 %v4006
    %v5110 = vunpack.c.l.b16 %v4007
    %v5111 = vunpack.c.h.b16 %v4007
    %v5112 = vunpack.c.l.b16 %v4008
    %v5113 = vunpack.c.h.b16 %v4008
    %v5114 = vunpack.c.l.b16 %v4009
    %v5115 = vunpack.c.h.b16 %v4009
    %v5116 = vunpack.c.l.b16 %v4010
    %v5117 = vunpack.c.l.b16 %v4011
    %v5118 = vunpack.c.h.b16 %v4011
    %v5119 = vunpack.c.l.b16 %v4012
    %v5120 = vunpack.c.h.b16 %v4012
    %v5121 = vunpack.c.l.b16 %v4013
    %v5122 = vunpack.c.h.b16 %v4013
    %v5123 = vunpack.c.l.b16 %v4014
    %v5124 = vunpack.c.l.b16 %v4015
    %v5125 = vunpack.c.h.b16 %v4015
    %v5126 = vunpack.c.l.b16 %v4016
    %v5127 = vunpack.c.h.b16 %v4016
    %v5128 = vunpack.c.l.b16 %v4017
    %v5129 = vunpack.c.h.b16 %v4017
    %v5130 = vunpack.c.l.b16 %v4018
    %v5131 = vunpack.c.l.b16 %v4019
    %v5132 = vunpack.c.h.b16 %v4019
    %v5133 = vunpack.c.l.b16 %v4020
    %v5134 = vunpack.c.h.b16 %v4020
    %v5135 = vunpack.c.l.b16 %v4021
    %v5136 = vunpack.c.h.b16 %v4021
    %v5137 = vunpack.c.l.b16 %v4022
    %v5138 = vpack.c.b16 %v4459, %v4452
    %v5139 = vpack.c.b16 %v4460, %v4453
    %v5140 = vpack.c.b16 %v4461, %v4454
    %v5141 = vpack.c.b16 %v4462, %v4455
    %v5142 = vpack.c.b16 %v4463, %v4456
    %v5143 = vpack.c.b16 %v4464, %v4457
    %v5144 = vpack.c.b16 %v4465, %v4458
    %v5145 = vpack.c.b16 %v4473, %v4466
    %v5146 = vpack.c.b16 %v4474, %v4467
    %v5147 = vpack.c.b16 %v4475, %v4468
    %v5148 = vpack.c.b16 %v4476, %v4469
    %v5149 = vpack.c.b16 %v4477, %v4470
    %v5150 = vpack.c.b16 %v4478, %v4471
    %v5151 = vpack.c.b16 %v4479, %v4472
    %v5152 = vpack.c.b16 %v4487, %v4480
    %v5153 = vpack.c.b16 %v4488, %v4481
    %v5154 = vpack.c.b16 %v4489, %v4482
    %v5155 = vpack.c.b16 %v4490, %v4483
    %v5156 = vpack.c.b16 %v4491, %v4484
    %v5157 = vpack.c.b16 %v4492, %v4485
    %v5158 = vpack.c.b16 %v4493, %v4486
    %v5159 = vpack.c.b16 %v4501, %v4494
    %v5160 = vpack.c.b16 %v4502, %v4495
    %v5161 = vpack.c.b16 %v4503, %v4496
    %v5162 = vpack.c.b16 %v4504, %v4497
    %v5163 = vpack.c.b16 %v4505, %v4498
    %v5164 = vpack.c.b16 %v4506, %v4499
    %v5165 = vpack.c.b16 %v4507, %v4500
    %v5166 = vpack.c.b16 %v4515, %v4508
    %v5167 = vpack.c.b16 %v4516, %v4509
    %v5168 = vpack.c.b16 %v4517, %v4510
    %v5169 = vpack.c.b16 %v4518, %v4511
    %v5170 = vpack.c.b16 %v4519, %v4512
    %v5171 = vpack.c.b16 %v4520, %v4513
    %v5172 = vpack.c.b16 %v4521, %v4514
    %v5173 = vpack.c.b16 %v4529, %v4522
    %v5174 = vpack.c.b16 %v4530, %v4523
    %v5175 = vpack.c.b16 %v4531, %v4524
    %v5176 = vpack.c.b16 %v4532, %v4525
    %v5177 = vpack.c.b16 %v4533, %v4526
    %v5178 = vpack.c.b16 %v4534, %v4527
    %v5179 = vpack.c.b16 %v4535, %v4528
    %v5180 = vpack.c.b16 %v4543, %v4536
    %v5181 = vpack.c.b16 %v4544, %v4537
    %v5182 = vpack.c.b16 %v4545, %v4538
    %v5183 = vpack.c.b16 %v4546, %v4539
    %v5184 = vpack.c.b16 %v4547, %v4540
    %v5185 = vpack.c.b16 %v4548, %v4541
    %v5186 = vpack.c.b16 %v4549, %v4542
    %v5187 = vpack.c.b16 %v4557, %v4550
    %v5188 = vpack.c.b16 %v4558, %v4551
    %v5189 = vpack.c.b16 %v4559, %v4552
    %v5190 = vpack.c.b16 %v4560, %v4553
    %v5191 = vpack.c.b16 %v4561, %v4554
    %v5192 = vpack.c.b16 %v4562, %v4555
    %v5193 = vpack.c.b16 %v4563, %v4556
    %v5194 = vpack.c.b16 %v4571, %v4564
    %v5195 = vpack.c.b16 %v4572, %v4565
    %v5196 = vpack.c.b16 %v4573, %v4566
    %v5197 = vpack.c.b16 %v4574, %v4567
    %v5198 = vpack.c.b16 %v4575, %v4568
    %v5199 = vpack.c.b16 %v4576, %v4569
    %v5200 = vpack.c.b16 %v4577, %v4570
    %v5201 = vpack.c.b16 %v4585, %v4578
    %v5202 = vpack.c.b16 %v4586, %v4579
    %v5203 = vpack.c.b16 %v4587, %v4580
    %v5204 = vpack.c.b16 %v4588, %v4581
    %v5205 = vpack.c.b16 %v4589, %v4582
    %v5206 = vpack.c.b16 %v4590, %v4583
    %v5207 = vpack.c.b16 %v4591, %v4584
    %v5208 = vpack.c.b16 %v4599, %v4592
    %v5209 = vpack.c.b16 %v4600, %v4593
    %v5210 = vpack.c.b16 %v4601, %v4594
    %v5211 = vpack.c.b16 %v4602, %v4595
    %v5212 = vpack.c.b16 %v4603, %v4596
    %v5213 = vpack.c.b16 %v4604, %v4597
    %v5214 = vpack.c.b16 %v4605, %v4598
    %v5215 = vpack.c.b16 %v4613, %v4606
    %v5216 = vpack.c.b16 %v4614, %v4607
    %v5217 = vpack.c.b16 %v4615, %v4608
    %v5218 = vpack.c.b16 %v4616, %v4609
    %v5219 = vpack.c.b16 %v4617, %v4610
    %v5220 = vpack.c.b16 %v4618, %v4611
    %v5221 = vpack.c.b16 %v4619, %v4612
    %v5222 = vpack.c.b16 %v4627, %v4620
    %v5223 = vpack.c.b16 %v4628, %v4621
    %v5224 = vpack.c.b16 %v4629, %v4622
    %v5225 = vpack.c.b16 %v4630, %v4623
    %v5226 = vpack.c.b16 %v4631, %v4624
    %v5227 = vpack.c.b16 %v4632, %v4625
    %v5228 = vpack.c.b16 %v4633, %v4626
    %v5229 = vpack.c.b16 %v4641, %v4634
    %v5230 = vpack.c.b16 %v4642, %v4635
    %v5231 = vpack.c.b16 %v4643, %v4636
    %v5232 = vpack.c.b16 %v4644, %v4637
    %v5233 = vpack.c.b16 %v4645, %v4638
    %v5234 = vpack.c.b16 %v4646, %v4639
    %v5235 = vpack.c.b16 %v4647, %v4640
    %v5236 = vpack.c.b16 %v4655, %v4648
    %v5237 = vpack.c.b16 %v4656, %v4649
    %v5238 = vpack.c.b16 %v4657, %v4650
    %v5239 = vpack.c.b16 %v4658, %v4651
    %v5240 = vpack.c.b16 %v4659, %v4652
    %v5241 = vpack.c.b16 %v4660, %v4653
    %v5242 = vpack.c.b16 %v4661, %v4654
    %v5243 = vpack.c.b16 %v4669, %v4662
    %v5244 = vpack.c.b16 %v4670, %v4663
    %v5245 = vpack.c.b16 %v4671, %v4664
    %v5246 = vpack.c.b16 %v4672, %v4665
    %v5247 = vpack.c.b16 %v4673, %v4666
    %v5248 = vpack.c.b16 %v4674, %v4667
    %v5249 = vpack.c.b16 %v4675, %v4668
    %v5250 = vpack.c.b16 %v4683, %v4676
    %v5251 = vpack.c.b16 %v4684, %v4677
    %v5252 = vpack.c.b16 %v4685, %v4678
    %v5253 = vpack.c.b16 %v4686, %v4679
    %v5254 = vpack.c.b16 %v4687, %v4680
    %v5255 = vpack.c.b16 %v4688, %v4681
    %v5256 = vpack.c.b16 %v4689, %v4682
    %v5257 = vpack.c.b16 %v4697, %v4690
    %v5258 = vpack.c.b16 %v4698, %v4691
    %v5259 = vpack.c.b16 %v4699, %v4692
    %v5260 = vpack.c.b16 %v4700, %v4693
    %v5261 = vpack.c.b16 %v4701, %v4694
    %v5262 = vpack.c.b16 %v4702, %v4695
    %v5263 = vpack.c.b16 %v4703, %v4696
    %v5264 = vpack.c.b16 %v4711, %v4704
    %v5265 = vpack.c.b16 %v4712, %v4705
    %v5266 = vpack.c.b16 %v4713, %v4706
    %v5267 = vpack.c.b16 %v4714, %v4707
    %v5268 = vpack.c.b16 %v4715, %v4708
    %v5269 = vpack.c.b16 %v4716, %v4709
    %v5270 = vpack.c.b16 %v4717, %v4710
    %v5271 = vpack.c.b16 %v4725, %v4718
    %v5272 = vpack.c.b16 %v4726, %v4719
    %v5273 = vpack.c.b16 %v4727, %v4720
    %v5274 = vpack.c.b16 %v4728, %v4721
    %v5275 = vpack.c.b16 %v4729, %v4722
    %v5276 = vpack.c.b16 %v4730, %v4723
    %v5277 = vpack.c.b16 %v4731, %v4724
    %v5278 = vpack.c.b16 %v4739, %v4732
    %v5279 = vpack.c.b16 %v4740, %v4733
    %v5280 = vpack.c.b16 %v4741, %v4734
    %v5281 = vpack.c.b16 %v4742, %v4735
    %v5282 = vpack.c.b16 %v4743, %v4736
    %v5283 = vpack.c.b16 %v4744, %v4737
    %v5284 = vpack.c.b16 %v4745, %v4738
    %v5285 = vpack.c.b16 %v4753, %v4746
    %v5286 = vpack.c.b16 %v4754, %v4747
    %v5287 = vpack.c.b16 %v4755, %v4748
    %v5288 = vpack.c.b16 %v4756, %v4749
    %v5289 = vpack.c.b16 %v4757, %v4750
    %v5290 = vpack.c.b16 %v4758, %v4751
    %v5291 = vpack.c.b16 %v4759, %v4752
    %v5292 = vpack.c.b16 %v4767, %v4760
    %v5293 = vpack.c.b16 %v4768, %v4761
    %v5294 = vpack.c.b16 %v4769, %v4762
    %v5295 = vpack.c.b16 %v4770, %v4763
    %v5296 = vpack.c.b16 %v4771, %v4764
    %v5297 = vpack.c.b16 %v4772, %v4765
    %v5298 = vpack.c.b16 %v4773, %v4766
    %v5299 = vpack.c.b16 %v4781, %v4774
    %v5300 = vpack.c.b16 %v4782, %v4775
    %v5301 = vpack.c.b16 %v4783, %v4776
    %v5302 = vpack.c.b16 %v4784, %v4777
    %v5303 = vpack.c.b16 %v4785, %v4778
    %v5304 = vpack.c.b16 %v4786, %v4779
    %v5305 = vpack.c.b16 %v4787, %v4780
    %v5306 = vpack.c.b16 %v4795, %v4788
    %v5307 = vpack.c.b16 %v4796, %v4789
    %v5308 = vpack.c.b16 %v4797, %v4790
    %v5309 = vpack.c.b16 %v4798, %v4791
    %v5310 = vpack.c.b16 %v4799, %v4792
    %v5311 = vpack.c.b16 %v4800, %v4793
    %v5312 = vpack.c.b16 %v4801, %v4794
    %v5313 = vpack.c.b16 %v4809, %v4802
    %v5314 = vpack.c.b16 %v4810, %v4803
    %v5315 = vpack.c.b16 %v4811, %v4804
    %v5316 = vpack.c.b16 %v4812, %v4805
    %v5317 = vpack.c.b16 %v4813, %v4806
    %v5318 = vpack.c.b16 %v4814, %v4807
    %v5319 = vpack.c.b16 %v4815, %v4808
    %v5320 = vpack.c.b16 %v4823, %v4816
    %v5321 = vpack.c.b16 %v4824, %v4817
    %v5322 = vpack.c.b16 %v4825, %v4818
    %v5323 = vpack.c.b16 %v4826, %v4819
    %v5324 = vpack.c.b16 %v4827, %v4820
    %v5325 = vpack.c.b16 %v4828, %v4821
    %v5326 = vpack.c.b16 %v4829, %v4822
    %v5327 = vpack.c.b16 %v4837, %v4830
    %v5328 = vpack.c.b16 %v4838, %v4831
    %v5329 = vpack.c.b16 %v4839, %v4832
    %v5330 = vpack.c.b16 %v4840, %v4833
    %v5331 = vpack.c.b16 %v4841, %v4834
    %v5332 = vpack.c.b16 %v4842, %v4835
    %v5333 = vpack.c.b16 %v4843, %v4836
    %v5334 = vpack.c.b16 %v4851, %v4844
    %v5335 = vpack.c.b16 %v4852, %v4845
    %v5336 = vpack.c.b16 %v4853, %v4846
    %v5337 = vpack.c.b16 %v4854, %v4847
    %v5338 = vpack.c.b16 %v4855, %v4848
    %v5339 = vpack.c.b16 %v4856, %v4849
    %v5340 = vpack.c.b16 %v4857, %v4850
    %v5341 = vpack.c.b16 %v4865, %v4858
    %v5342 = vpack.c.b16 %v4866, %v4859
    %v5343 = vpack.c.b16 %v4867, %v4860
    %v5344 = vpack.c.b16 %v4868, %v4861
    %v5345 = vpack.c.b16 %v4869, %v4862
    %v5346 = vpack.c.b16 %v4870, %v4863
    %v5347 = vpack.c.b16 %v4871, %v4864
    %v5348 = vpack.c.b16 %v4879, %v4872
    %v5349 = vpack.c.b16 %v4880, %v4873
    %v5350 = vpack.c.b16 %v4881, %v4874
    %v5351 = vpack.c.b16 %v4882, %v4875
    %v5352 = vpack.c.b16 %v4883, %v4876
    %v5353 = vpack.c.b16 %v4884, %v4877
    %v5354 = vpack.c.b16 %v4885, %v4878
    %v5355 = vpack.c.b16 %v4893, %v4886
    %v5356 = vpack.c.b16 %v4894, %v4887
    %v5357 = vpack.c.b16 %v4895, %v4888
    %v5358 = vpack.c.b16 %v4896, %v4889
    %v5359 = vpack.c.b16 %v4897, %v4890
    %v5360 = vpack.c.b16 %v4898, %v4891
    %v5361 = vpack.c.b16 %v4899, %v4892
    %v5362 = vpack.c.b16 %v4907, %v4900
    %v5363 = vpack.c.b16 %v4908, %v4901
    %v5364 = vpack.c.b16 %v4909, %v4902
    %v5365 = vpack.c.b16 %v4910, %v4903
    %v5366 = vpack.c.b16 %v4911, %v4904
    %v5367 = vpack.c.b16 %v4912, %v4905
    %v5368 = vpack.c.b16 %v4913, %v4906
    %v5369 = vpack.c.b16 %v4921, %v4914
    %v5370 = vpack.c.b16 %v4922, %v4915
    %v5371 = vpack.c.b16 %v4923, %v4916
    %v5372 = vpack.c.b16 %v4924, %v4917
    %v5373 = vpack.c.b16 %v4925, %v4918
    %v5374 = vpack.c.b16 %v4926, %v4919
    %v5375 = vpack.c.b16 %v4927, %v4920
    %v5376 = vpack.c.b16 %v4935, %v4928
    %v5377 = vpack.c.b16 %v4936, %v4929
    %v5378 = vpack.c.b16 %v4937, %v4930
    %v5379 = vpack.c.b16 %v4938, %v4931
    %v5380 = vpack.c.b16 %v4939, %v4932
    %v5381 = vpack.c.b16 %v4940, %v4933
    %v5382 = vpack.c.b16 %v4941, %v4934
    %v5383 = vpack.c.b16 %v4949, %v4942
    %v5384 = vpack.c.b16 %v4950, %v4943
    %v5385 = vpack.c.b16 %v4951, %v4944
    %v5386 = vpack.c.b16 %v4952, %v4945
    %v5387 = vpack.c.b16 %v4953, %v4946
    %v5388 = vpack.c.b16 %v4954, %v4947
    %v5389 = vpack.c.b16 %v4955, %v4948
    %v5390 = vpack.c.b16 %v4963, %v4956
    %v5391 = vpack.c.b16 %v4964, %v4957
    %v5392 = vpack.c.b16 %v4965, %v4958
    %v5393 = vpack.c.b16 %v4966, %v4959
    %v5394 = vpack.c.b16 %v4967, %v4960
    %v5395 = vpack.c.b16 %v4968, %v4961
    %v5396 = vpack.c.b16 %v4969, %v4962
    %v5397 = vpack.c.b16 %v4977, %v4970
    %v5398 = vpack.c.b16 %v4978, %v4971
    %v5399 = vpack.c.b16 %v4979, %v4972
    %v5400 = vpack.c.b16 %v4980, %v4973
    %v5401 = vpack.c.b16 %v4981, %v4974
    %v5402 = vpack.c.b16 %v4982, %v4975
    %v5403 = vpack.c.b16 %v4983, %v4976
    %v5404 = vpack.c.b16 %v4991, %v4984
    %v5405 = vpack.c.b16 %v4992, %v4985
    %v5406 = vpack.c.b16 %v4993, %v4986
    %v5407 = vpack.c.b16 %v4994, %v4987
    %v5408 = vpack.c.b16 %v4995, %v4988
    %v5409 = vpack.c.b16 %v4996, %v4989
    %v5410 = vpack.c.b16 %v4997, %v4990
    %v5411 = vpack.c.b16 %v5005, %v4998
    %v5412 = vpack.c.b16 %v5006, %v4999
    %v5413 = vpack.c.b16 %v5007, %v5000
    %v5414 = vpack.c.b16 %v5008, %v5001
    %v5415 = vpack.c.b16 %v5009, %v5002
    %v5416 = vpack.c.b16 %v5010, %v5003
    %v5417 = vpack.c.b16 %v5011, %v5004
    %v5418 = vpack.c.b16 %v5019, %v5012
    %v5419 = vpack.c.b16 %v5020, %v5013
    %v5420 = vpack.c.b16 %v5021, %v5014
    %v5421 = vpack.c.b16 %v5022, %v5015
    %v5422 = vpack.c.b16 %v5023, %v5016
    %v5423 = vpack.c.b16 %v5024, %v5017
    %v5424 = vpack.c.b16 %v5025, %v5018
    %v5425 = vpack.c.b16 %v5033, %v5026
    %v5426 = vpack.c.b16 %v5034, %v5027
    %v5427 = vpack.c.b16 %v5035, %v5028
    %v5428 = vpack.c.b16 %v5036, %v5029
    %v5429 = vpack.c.b16 %v5037, %v5030
    %v5430 = vpack.c.b16 %v5038, %v5031
    %v5431 = vpack.c.b16 %v5039, %v5032
    %v5432 = vpack.c.b16 %v5047, %v5040
    %v5433 = vpack.c.b16 %v5048, %v5041
    %v5434 = vpack.c.b16 %v5049, %v5042
    %v5435 = vpack.c.b16 %v5050, %v5043
    %v5436 = vpack.c.b16 %v5051, %v5044
    %v5437 = vpack.c.b16 %v5052, %v5045
    %v5438 = vpack.c.b16 %v5053, %v5046
    %v5439 = vpack.c.b16 %v5061, %v5054
    %v5440 = vpack.c.b16 %v5062, %v5055
    %v5441 = vpack.c.b16 %v5063, %v5056
    %v5442 = vpack.c.b16 %v5064, %v5057
    %v5443 = vpack.c.b16 %v5065, %v5058
    %v5444 = vpack.c.b16 %v5066, %v5059
    %v5445 = vpack.c.b16 %v5067, %v5060
    %v5446 = vpack.c.b16 %v5075, %v5068
    %v5447 = vpack.c.b16 %v5076, %v5069
    %v5448 = vpack.c.b16 %v5077, %v5070
    %v5449 = vpack.c.b16 %v5078, %v5071
    %v5450 = vpack.c.b16 %v5079, %v5072
    %v5451 = vpack.c.b16 %v5080, %v5073
    %v5452 = vpack.c.b16 %v5081, %v5074
    %v5453 = vpack.c.b16 %v5089, %v5082
    %v5454 = vpack.c.b16 %v5090, %v5083
    %v5455 = vpack.c.b16 %v5091, %v5084
    %v5456 = vpack.c.b16 %v5092, %v5085
    %v5457 = vpack.c.b16 %v5093, %v5086
    %v5458 = vpack.c.b16 %v5094, %v5087
    %v5459 = vpack.c.b16 %v5095, %v5088
    %v5460 = vpack.c.b16 %v5103, %v5096
    %v5461 = vpack.c.b16 %v5104, %v5097
    %v5462 = vpack.c.b16 %v5105, %v5098
    %v5463 = vpack.c.b16 %v5106, %v5099
    %v5464 = vpack.c.b16 %v5107, %v5100
    %v5465 = vpack.c.b16 %v5108, %v5101
    %v5466 = vpack.c.b16 %v5109, %v5102
    %v5467 = vpack.c.b16 %v5117, %v5110
    %v5468 = vpack.c.b16 %v5118, %v5111
    %v5469 = vpack.c.b16 %v5119, %v5112
    %v5470 = vpack.c.b16 %v5120, %v5113
    %v5471 = vpack.c.b16 %v5121, %v5114
    %v5472 = vpack.c.b16 %v5122, %v5115
    %v5473 = vpack.c.b16 %v5123, %v5116
    %v5474 = vpack.c.b16 %v5131, %v5124
    %v5475 = vpack.c.b16 %v5132, %v5125
    %v5476 = vpack.c.b16 %v5133, %v5126
    %v5477 = vpack.c.b16 %v5134, %v5127
    %v5478 = vpack.c.b16 %v5135, %v5128
    %v5479 = vpack.c.b16 %v5136, %v5129
    %v5480 = vpack.c.b16 %v5137, %v5130
    %vm5824 = vcmask 130048
    %v5826 = vsel %vm5824, %v3630, 0
    %5828 = vmatprep.subr.bf16.mxu0 %v5188
    %5829 = vmatpush1.bf16.msra.mxu0 %v5187
    %5830 = vmatprep.subr.bf16.mxu0 %v5181
    %5831 = vmatpush1.bf16.msra.mxu0 %v5180
    %5832 = vmatprep.subr.bf16.mxu0 %v5174
    %5833 = vmatpush1.bf16.msra.mxu0 %v5173
    %5834 = vmatprep.subr.bf16.mxu0 %v5167
    %5835 = vmatpush1.bf16.msra.mxu0 %v5166
    %5836 = vmatprep.subr.bf16.mxu0 %v5160
    %5837 = vmatpush1.bf16.msra.mxu0 %v5159
    %5838 = vmatprep.subr.bf16.mxu0 %v5153
    %5839 = vmatpush1.bf16.msra.mxu0 %v5152
    %5840 = vmatprep.subr.bf16.mxu0 %v5146
    %5841 = vmatpush1.bf16.msra.mxu0 %v5145
    %5842 = vmatprep.subr.bf16.mxu0 %v5139
    %5843 = vmatpush1.bf16.msra.mxu0 %v5138
    %5844 = vmatprep.subr.bf16.mxu0 %v5244
    %5845 = vmatpush2.bf16.msra.mxu0 %v5243
    %5846 = vmatprep.subr.bf16.mxu0 %v5237
    %5847 = vmatpush2.bf16.msra.mxu0 %v5236
    %5848 = vmatprep.subr.bf16.mxu0 %v5230
    %5849 = vmatpush2.bf16.msra.mxu0 %v5229
    %5850 = vmatprep.subr.bf16.mxu0 %v5223
    %5851 = vmatpush2.bf16.msra.mxu0 %v5222
    %5852 = vmatprep.subr.bf16.mxu0 %v5216
    %5853 = vmatpush2.bf16.msra.mxu0 %v5215
    %5854 = vmatprep.subr.bf16.mxu0 %v5209
    %5855 = vmatpush2.bf16.msra.mxu0 %v5208
    %5856 = vmatprep.subr.bf16.mxu0 %v5202
    %5857 = vmatpush2.bf16.msra.mxu0 %v5201
    %5858 = vmatprep.subr.bf16.mxu0 %v5195
    %5859 = vmatpush2.bf16.msra.mxu0 %v5194
    %5860 = vmatprep.mubr.bf16.mxu0 %v3625
    %5861 = vmatmul.mubr.bf16.gmra.mxu0 %v3624
    %v5862 = vpop.f32.mrf.mxu0
    %v5863 = vadd.f32 %v4028, %v5862
    %v5864 = vpop.f32.mrf.mxu0
    %v5865 = vadd.f32 %v4032, %v5864
    %v5866 = vpop.f32.mrf.mxu0
    %v5867 = vpop.f32.mrf.mxu0
    %5868 = vdwg.mxu0
    %5869 = vmatprep.subr.bf16.mxu0 %v5300
    %5870 = vmatpush1.bf16.msra.mxu0 %v5299
    %5871 = vmatprep.subr.bf16.mxu0 %v5293
    %5872 = vmatpush1.bf16.msra.mxu0 %v5292
    %5873 = vmatprep.subr.bf16.mxu0 %v5286
    %5874 = vmatpush1.bf16.msra.mxu0 %v5285
    %5875 = vmatprep.subr.bf16.mxu0 %v5279
    %5876 = vmatpush1.bf16.msra.mxu0 %v5278
    %5877 = vmatprep.subr.bf16.mxu0 %v5272
    %5878 = vmatpush1.bf16.msra.mxu0 %v5271
    %5879 = vmatprep.subr.bf16.mxu0 %v5265
    %5880 = vmatpush1.bf16.msra.mxu0 %v5264
    %5881 = vmatprep.subr.bf16.mxu0 %v5258
    %5882 = vmatpush1.bf16.msra.mxu0 %v5257
    %5883 = vmatprep.subr.bf16.mxu0 %v5251
    %5884 = vmatpush1.bf16.msra.mxu0 %v5250
    %5885 = vmatprep.subr.bf16.mxu0 %v5356
    %5886 = vmatpush2.bf16.msra.mxu0 %v5355
    %5887 = vmatprep.subr.bf16.mxu0 %v5349
    %5888 = vmatpush2.bf16.msra.mxu0 %v5348
    %5889 = vmatprep.subr.bf16.mxu0 %v5342
    %5890 = vmatpush2.bf16.msra.mxu0 %v5341
    %5891 = vmatprep.subr.bf16.mxu0 %v5335
    %5892 = vmatpush2.bf16.msra.mxu0 %v5334
    %5893 = vmatprep.subr.bf16.mxu0 %v5328
    %5894 = vmatpush2.bf16.msra.mxu0 %v5327
    %5895 = vmatprep.subr.bf16.mxu0 %v5321
    %5896 = vmatpush2.bf16.msra.mxu0 %v5320
    %5897 = vmatprep.subr.bf16.mxu0 %v5314
    %5898 = vmatpush2.bf16.msra.mxu0 %v5313
    %5899 = vmatprep.subr.bf16.mxu0 %v5307
    %5900 = vmatpush2.bf16.msra.mxu0 %v5306
    %5901 = vmatprep.mubr.bf16.mxu0 %v3627
    %5902 = vmatmul.mubr.bf16.gmra.mxu0 %v3626
    %v5903 = vpop.f32.mrf.mxu0
    %v5904 = vadd.f32 %v5863, %v5903
    %v5905 = vpop.f32.mrf.mxu0
    %v5906 = vadd.f32 %v5865, %v5905
    %v5907 = vpop.f32.mrf.mxu0
    %v5908 = vpop.f32.mrf.mxu0
    %5909 = vdwg.mxu0
    %5910 = vmatprep.subr.bf16.mxu0 %v5412
    %5911 = vmatpush1.bf16.msra.mxu0 %v5411
    %5912 = vmatprep.subr.bf16.mxu0 %v5405
    %5913 = vmatpush1.bf16.msra.mxu0 %v5404
    %5914 = vmatprep.subr.bf16.mxu0 %v5398
    %5915 = vmatpush1.bf16.msra.mxu0 %v5397
    %5916 = vmatprep.subr.bf16.mxu0 %v5391
    %5917 = vmatpush1.bf16.msra.mxu0 %v5390
    %5918 = vmatprep.subr.bf16.mxu0 %v5384
    %5919 = vmatpush1.bf16.msra.mxu0 %v5383
    %5920 = vmatprep.subr.bf16.mxu0 %v5377
    %5921 = vmatpush1.bf16.msra.mxu0 %v5376
    %5922 = vmatprep.subr.bf16.mxu0 %v5370
    %5923 = vmatpush1.bf16.msra.mxu0 %v5369
    %5924 = vmatprep.subr.bf16.mxu0 %v5363
    %5925 = vmatpush1.bf16.msra.mxu0 %v5362
    %5926 = vmatprep.subr.bf16.mxu0 %v5468
    %5927 = vmatpush2.bf16.msra.mxu0 %v5467
    %5928 = vmatprep.subr.bf16.mxu0 %v5461
    %5929 = vmatpush2.bf16.msra.mxu0 %v5460
    %5930 = vmatprep.subr.bf16.mxu0 %v5454
    %5931 = vmatpush2.bf16.msra.mxu0 %v5453
    %5932 = vmatprep.subr.bf16.mxu0 %v5447
    %5933 = vmatpush2.bf16.msra.mxu0 %v5446
    %5934 = vmatprep.subr.bf16.mxu0 %v5440
    %5935 = vmatpush2.bf16.msra.mxu0 %v5439
    %5936 = vmatprep.subr.bf16.mxu0 %v5433
    %5937 = vmatpush2.bf16.msra.mxu0 %v5432
    %5938 = vmatprep.subr.bf16.mxu0 %v5426
    %5939 = vmatpush2.bf16.msra.mxu0 %v5425
    %5940 = vmatprep.subr.bf16.mxu0 %v5419
    %5941 = vmatpush2.bf16.msra.mxu0 %v5418
    %5942 = vmatprep.mubr.bf16.mxu0 %v3629
    %5943 = vmatmul.mubr.bf16.gmra.mxu0 %v3628
    %v5944 = vpop.f32.mrf.mxu0
    %v5945 = vadd.f32 %v5904, %v5944
    %v5946 = vpop.f32.mrf.mxu0
    %v5947 = vadd.f32 %v5906, %v5946
    %v5948 = vpop.f32.mrf.mxu0
    %v5949 = vpop.f32.mrf.mxu0
    %5950 = vdwg.mxu0
    %5951 = vmatprep.subr.bf16.mxu0 0
    %5952 = vmatpush1.bf16.msra.mxu0 0
    %5953 = vmatprep.subr.bf16.mxu0 0
    %5954 = vmatpush1.bf16.msra.mxu0 0
    %5955 = vmatprep.subr.bf16.mxu0 0
    %5956 = vmatpush1.bf16.msra.mxu0 0
    %5957 = vmatprep.subr.bf16.mxu0 0
    %5958 = vmatpush1.bf16.msra.mxu0 0
    %5959 = vmatprep.subr.bf16.mxu0 0
    %5960 = vmatpush1.bf16.msra.mxu0 0
    %5961 = vmatprep.subr.bf16.mxu0 0
    %5962 = vmatpush1.bf16.msra.mxu0 0
    %5963 = vmatprep.subr.bf16.mxu0 0
    %5964 = vmatpush1.bf16.msra.mxu0 0
    %5965 = vmatprep.subr.bf16.mxu0 %v5475
    %5966 = vmatpush1.bf16.msra.mxu0 %v5474
    %5967 = vmatprep.subr.bf16.mxu0 0
    %5968 = vmatpush2.bf16.msra.mxu0 0
    %5969 = vmatprep.subr.bf16.mxu0 0
    %5970 = vmatpush2.bf16.msra.mxu0 0
    %5971 = vmatprep.subr.bf16.mxu0 0
    %5972 = vmatpush2.bf16.msra.mxu0 0
    %5973 = vmatprep.subr.bf16.mxu0 0
    %5974 = vmatpush2.bf16.msra.mxu0 0
    %5975 = vmatprep.subr.bf16.mxu0 0
    %5976 = vmatpush2.bf16.msra.mxu0 0
    %5977 = vmatprep.subr.bf16.mxu0 0
    %5978 = vmatpush2.bf16.msra.mxu0 0
    %5979 = vmatprep.subr.bf16.mxu0 0
    %5980 = vmatpush2.bf16.msra.mxu0 0
    %5981 = vmatprep.subr.bf16.mxu0 0
    %5982 = vmatpush2.bf16.msra.mxu0 0
    %5983 = vmatprep.mubr.bf16.mxu0 0
    %5984 = vmatmul.mubr.bf16.gmra.mxu0 %v5826
    %v5985 = vpop.f32.mrf.mxu0
    %v5986 = vadd.f32 %v5945, %v5985
    %v5987 = vpop.f32.mrf.mxu0
    %v5988 = vadd.f32 %v5947, %v5987
    %v5989 = vpop.f32.mrf.mxu0
    %v5990 = vpop.f32.mrf.mxu0
    %5991 = vdwg.mxu0
    %5992 = vmatprep.subr.bf16.mxu0 %v5190
    %5993 = vmatpush1.bf16.msra.mxu0 %v5189
    %5994 = vmatprep.subr.bf16.mxu0 %v5183
    %5995 = vmatpush1.bf16.msra.mxu0 %v5182
    %5996 = vmatprep.subr.bf16.mxu0 %v5176
    %5997 = vmatpush1.bf16.msra.mxu0 %v5175
    %5998 = vmatprep.subr.bf16.mxu0 %v5169
    %5999 = vmatpush1.bf16.msra.mxu0 %v5168
    %6000 = vmatprep.subr.bf16.mxu0 %v5162
    %6001 = vmatpush1.bf16.msra.mxu0 %v5161
    %6002 = vmatprep.subr.bf16.mxu0 %v5155
    %6003 = vmatpush1.bf16.msra.mxu0 %v5154
    %6004 = vmatprep.subr.bf16.mxu0 %v5148
    %6005 = vmatpush1.bf16.msra.mxu0 %v5147
    %6006 = vmatprep.subr.bf16.mxu0 %v5141
    %6007 = vmatpush1.bf16.msra.mxu0 %v5140
    %6008 = vmatprep.subr.bf16.mxu0 %v5246
    %6009 = vmatpush2.bf16.msra.mxu0 %v5245
    %6010 = vmatprep.subr.bf16.mxu0 %v5239
    %6011 = vmatpush2.bf16.msra.mxu0 %v5238
    %6012 = vmatprep.subr.bf16.mxu0 %v5232
    %6013 = vmatpush2.bf16.msra.mxu0 %v5231
    %6014 = vmatprep.subr.bf16.mxu0 %v5225
    %6015 = vmatpush2.bf16.msra.mxu0 %v5224
    %6016 = vmatprep.subr.bf16.mxu0 %v5218
    %6017 = vmatpush2.bf16.msra.mxu0 %v5217
    %6018 = vmatprep.subr.bf16.mxu0 %v5211
    %6019 = vmatpush2.bf16.msra.mxu0 %v5210
    %6020 = vmatprep.subr.bf16.mxu0 %v5204
    %6021 = vmatpush2.bf16.msra.mxu0 %v5203
    %6022 = vmatprep.subr.bf16.mxu0 %v5197
    %6023 = vmatpush2.bf16.msra.mxu0 %v5196
    %6024 = vmatprep.mubr.bf16.mxu0 %v3625
    %6025 = vmatmul.mubr.bf16.gmra.mxu0 %v3624
    %v6026 = vpop.f32.mrf.mxu0
    %v6027 = vadd.f32 %v4036, %v6026
    %v6028 = vpop.f32.mrf.mxu0
    %v6029 = vadd.f32 %v4040, %v6028
    %v6030 = vpop.f32.mrf.mxu0
    %v6031 = vpop.f32.mrf.mxu0
    %6032 = vdwg.mxu0
    %6033 = vmatprep.subr.bf16.mxu0 %v5302
    %6034 = vmatpush1.bf16.msra.mxu0 %v5301
    %6035 = vmatprep.subr.bf16.mxu0 %v5295
    %6036 = vmatpush1.bf16.msra.mxu0 %v5294
    %6037 = vmatprep.subr.bf16.mxu0 %v5288
    %6038 = vmatpush1.bf16.msra.mxu0 %v5287
    %6039 = vmatprep.subr.bf16.mxu0 %v5281
    %6040 = vmatpush1.bf16.msra.mxu0 %v5280
    %6041 = vmatprep.subr.bf16.mxu0 %v5274
    %6042 = vmatpush1.bf16.msra.mxu0 %v5273
    %6043 = vmatprep.subr.bf16.mxu0 %v5267
    %6044 = vmatpush1.bf16.msra.mxu0 %v5266
    %6045 = vmatprep.subr.bf16.mxu0 %v5260
    %6046 = vmatpush1.bf16.msra.mxu0 %v5259
    %6047 = vmatprep.subr.bf16.mxu0 %v5253
    %6048 = vmatpush1.bf16.msra.mxu0 %v5252
    %6049 = vmatprep.subr.bf16.mxu0 %v5358
    %6050 = vmatpush2.bf16.msra.mxu0 %v5357
    %6051 = vmatprep.subr.bf16.mxu0 %v5351
    %6052 = vmatpush2.bf16.msra.mxu0 %v5350
    %6053 = vmatprep.subr.bf16.mxu0 %v5344
    %6054 = vmatpush2.bf16.msra.mxu0 %v5343
    %6055 = vmatprep.subr.bf16.mxu0 %v5337
    %6056 = vmatpush2.bf16.msra.mxu0 %v5336
    %6057 = vmatprep.subr.bf16.mxu0 %v5330
    %6058 = vmatpush2.bf16.msra.mxu0 %v5329
    %6059 = vmatprep.subr.bf16.mxu0 %v5323
    %6060 = vmatpush2.bf16.msra.mxu0 %v5322
    %6061 = vmatprep.subr.bf16.mxu0 %v5316
    %6062 = vmatpush2.bf16.msra.mxu0 %v5315
    %6063 = vmatprep.subr.bf16.mxu0 %v5309
    %6064 = vmatpush2.bf16.msra.mxu0 %v5308
    %6065 = vmatprep.mubr.bf16.mxu0 %v3627
    %6066 = vmatmul.mubr.bf16.gmra.mxu0 %v3626
    %v6067 = vpop.f32.mrf.mxu0
    %v6068 = vadd.f32 %v6027, %v6067
    %v6069 = vpop.f32.mrf.mxu0
    %v6070 = vadd.f32 %v6029, %v6069
    %v6071 = vpop.f32.mrf.mxu0
    %v6072 = vpop.f32.mrf.mxu0
    %6073 = vdwg.mxu0
    %6074 = vmatprep.subr.bf16.mxu0 %v5414
    %6075 = vmatpush1.bf16.msra.mxu0 %v5413
    %6076 = vmatprep.subr.bf16.mxu0 %v5407
    %6077 = vmatpush1.bf16.msra.mxu0 %v5406
    %6078 = vmatprep.subr.bf16.mxu0 %v5400
    %6079 = vmatpush1.bf16.msra.mxu0 %v5399
    %6080 = vmatprep.subr.bf16.mxu0 %v5393
    %6081 = vmatpush1.bf16.msra.mxu0 %v5392
    %6082 = vmatprep.subr.bf16.mxu0 %v5386
    %6083 = vmatpush1.bf16.msra.mxu0 %v5385
    %6084 = vmatprep.subr.bf16.mxu0 %v5379
    %6085 = vmatpush1.bf16.msra.mxu0 %v5378
    %6086 = vmatprep.subr.bf16.mxu0 %v5372
    %6087 = vmatpush1.bf16.msra.mxu0 %v5371
    %6088 = vmatprep.subr.bf16.mxu0 %v5365
    %6089 = vmatpush1.bf16.msra.mxu0 %v5364
    %6090 = vmatprep.subr.bf16.mxu0 %v5470
    %6091 = vmatpush2.bf16.msra.mxu0 %v5469
    %6092 = vmatprep.subr.bf16.mxu0 %v5463
    %6093 = vmatpush2.bf16.msra.mxu0 %v5462
    %6094 = vmatprep.subr.bf16.mxu0 %v5456
    %6095 = vmatpush2.bf16.msra.mxu0 %v5455
    %6096 = vmatprep.subr.bf16.mxu0 %v5449
    %6097 = vmatpush2.bf16.msra.mxu0 %v5448
    %6098 = vmatprep.subr.bf16.mxu0 %v5442
    %6099 = vmatpush2.bf16.msra.mxu0 %v5441
    %6100 = vmatprep.subr.bf16.mxu0 %v5435
    %6101 = vmatpush2.bf16.msra.mxu0 %v5434
    %6102 = vmatprep.subr.bf16.mxu0 %v5428
    %6103 = vmatpush2.bf16.msra.mxu0 %v5427
    %6104 = vmatprep.subr.bf16.mxu0 %v5421
    %6105 = vmatpush2.bf16.msra.mxu0 %v5420
    %6106 = vmatprep.mubr.bf16.mxu0 %v3629
    %6107 = vmatmul.mubr.bf16.gmra.mxu0 %v3628
    %v6108 = vpop.f32.mrf.mxu0
    %v6109 = vadd.f32 %v6068, %v6108
    %v6110 = vpop.f32.mrf.mxu0
    %v6111 = vadd.f32 %v6070, %v6110
    %v6112 = vpop.f32.mrf.mxu0
    %v6113 = vpop.f32.mrf.mxu0
    %6114 = vdwg.mxu0
    %6115 = vmatprep.subr.bf16.mxu0 0
    %6116 = vmatpush1.bf16.msra.mxu0 0
    %6117 = vmatprep.subr.bf16.mxu0 0
    %6118 = vmatpush1.bf16.msra.mxu0 0
    %6119 = vmatprep.subr.bf16.mxu0 0
    %6120 = vmatpush1.bf16.msra.mxu0 0
    %6121 = vmatprep.subr.bf16.mxu0 0
    %6122 = vmatpush1.bf16.msra.mxu0 0
    %6123 = vmatprep.subr.bf16.mxu0 0
    %6124 = vmatpush1.bf16.msra.mxu0 0
    %6125 = vmatprep.subr.bf16.mxu0 0
    %6126 = vmatpush1.bf16.msra.mxu0 0
    %6127 = vmatprep.subr.bf16.mxu0 0
    %6128 = vmatpush1.bf16.msra.mxu0 0
    %6129 = vmatprep.subr.bf16.mxu0 %v5477
    %6130 = vmatpush1.bf16.msra.mxu0 %v5476
    %6131 = vmatprep.subr.bf16.mxu0 0
    %6132 = vmatpush2.bf16.msra.mxu0 0
    %6133 = vmatprep.subr.bf16.mxu0 0
    %6134 = vmatpush2.bf16.msra.mxu0 0
    %6135 = vmatprep.subr.bf16.mxu0 0
    %6136 = vmatpush2.bf16.msra.mxu0 0
    %6137 = vmatprep.subr.bf16.mxu0 0
    %6138 = vmatpush2.bf16.msra.mxu0 0
    %6139 = vmatprep.subr.bf16.mxu0 0
    %6140 = vmatpush2.bf16.msra.mxu0 0
    %6141 = vmatprep.subr.bf16.mxu0 0
    %6142 = vmatpush2.bf16.msra.mxu0 0
    %6143 = vmatprep.subr.bf16.mxu0 0
    %6144 = vmatpush2.bf16.msra.mxu0 0
    %6145 = vmatprep.subr.bf16.mxu0 0
    %6146 = vmatpush2.bf16.msra.mxu0 0
    %6147 = vmatprep.mubr.bf16.mxu0 0
    %6148 = vmatmul.mubr.bf16.gmra.mxu0 %v5826
    %v6149 = vpop.f32.mrf.mxu0
    %v6150 = vadd.f32 %v6109, %v6149
    %v6151 = vpop.f32.mrf.mxu0
    %v6152 = vadd.f32 %v6111, %v6151
    %v6153 = vpop.f32.mrf.mxu0
    %v6154 = vpop.f32.mrf.mxu0
    %6155 = vdwg.mxu0
    %6156 = vmatprep.subr.bf16.mxu0 %v5192
    %6157 = vmatpush1.bf16.msra.mxu0 %v5191
    %6158 = vmatprep.subr.bf16.mxu0 %v5185
    %6159 = vmatpush1.bf16.msra.mxu0 %v5184
    %6160 = vmatprep.subr.bf16.mxu0 %v5178
    %6161 = vmatpush1.bf16.msra.mxu0 %v5177
    %6162 = vmatprep.subr.bf16.mxu0 %v5171
    %6163 = vmatpush1.bf16.msra.mxu0 %v5170
    %6164 = vmatprep.subr.bf16.mxu0 %v5164
    %6165 = vmatpush1.bf16.msra.mxu0 %v5163
    %6166 = vmatprep.subr.bf16.mxu0 %v5157
    %6167 = vmatpush1.bf16.msra.mxu0 %v5156
    %6168 = vmatprep.subr.bf16.mxu0 %v5150
    %6169 = vmatpush1.bf16.msra.mxu0 %v5149
    %6170 = vmatprep.subr.bf16.mxu0 %v5143
    %6171 = vmatpush1.bf16.msra.mxu0 %v5142
    %6172 = vmatprep.subr.bf16.mxu0 %v5248
    %6173 = vmatpush2.bf16.msra.mxu0 %v5247
    %6174 = vmatprep.subr.bf16.mxu0 %v5241
    %6175 = vmatpush2.bf16.msra.mxu0 %v5240
    %6176 = vmatprep.subr.bf16.mxu0 %v5234
    %6177 = vmatpush2.bf16.msra.mxu0 %v5233
    %6178 = vmatprep.subr.bf16.mxu0 %v5227
    %6179 = vmatpush2.bf16.msra.mxu0 %v5226
    %6180 = vmatprep.subr.bf16.mxu0 %v5220
    %6181 = vmatpush2.bf16.msra.mxu0 %v5219
    %6182 = vmatprep.subr.bf16.mxu0 %v5213
    %6183 = vmatpush2.bf16.msra.mxu0 %v5212
    %6184 = vmatprep.subr.bf16.mxu0 %v5206
    %6185 = vmatpush2.bf16.msra.mxu0 %v5205
    %6186 = vmatprep.subr.bf16.mxu0 %v5199
    %6187 = vmatpush2.bf16.msra.mxu0 %v5198
    %6188 = vmatprep.mubr.bf16.mxu0 %v3625
    %6189 = vmatmul.mubr.bf16.gmra.mxu0 %v3624
    %v6190 = vpop.f32.mrf.mxu0
    %v6191 = vadd.f32 %v4044, %v6190
    %v6192 = vpop.f32.mrf.mxu0
    %v6193 = vadd.f32 %v4048, %v6192
    %v6194 = vpop.f32.mrf.mxu0
    %v6195 = vpop.f32.mrf.mxu0
    %6196 = vdwg.mxu0
    %6197 = vmatprep.subr.bf16.mxu0 %v5304
    %6198 = vmatpush1.bf16.msra.mxu0 %v5303
    %6199 = vmatprep.subr.bf16.mxu0 %v5297
    %6200 = vmatpush1.bf16.msra.mxu0 %v5296
    %6201 = vmatprep.subr.bf16.mxu0 %v5290
    %6202 = vmatpush1.bf16.msra.mxu0 %v5289
    %6203 = vmatprep.subr.bf16.mxu0 %v5283
    %6204 = vmatpush1.bf16.msra.mxu0 %v5282
    %6205 = vmatprep.subr.bf16.mxu0 %v5276
    %6206 = vmatpush1.bf16.msra.mxu0 %v5275
    %6207 = vmatprep.subr.bf16.mxu0 %v5269
    %6208 = vmatpush1.bf16.msra.mxu0 %v5268
    %6209 = vmatprep.subr.bf16.mxu0 %v5262
    %6210 = vmatpush1.bf16.msra.mxu0 %v5261
    %6211 = vmatprep.subr.bf16.mxu0 %v5255
    %6212 = vmatpush1.bf16.msra.mxu0 %v5254
    %6213 = vmatprep.subr.bf16.mxu0 %v5360
    %6214 = vmatpush2.bf16.msra.mxu0 %v5359
    %6215 = vmatprep.subr.bf16.mxu0 %v5353
    %6216 = vmatpush2.bf16.msra.mxu0 %v5352
    %6217 = vmatprep.subr.bf16.mxu0 %v5346
    %6218 = vmatpush2.bf16.msra.mxu0 %v5345
    %6219 = vmatprep.subr.bf16.mxu0 %v5339
    %6220 = vmatpush2.bf16.msra.mxu0 %v5338
    %6221 = vmatprep.subr.bf16.mxu0 %v5332
    %6222 = vmatpush2.bf16.msra.mxu0 %v5331
    %6223 = vmatprep.subr.bf16.mxu0 %v5325
    %6224 = vmatpush2.bf16.msra.mxu0 %v5324
    %6225 = vmatprep.subr.bf16.mxu0 %v5318
    %6226 = vmatpush2.bf16.msra.mxu0 %v5317
    %6227 = vmatprep.subr.bf16.mxu0 %v5311
    %6228 = vmatpush2.bf16.msra.mxu0 %v5310
    %6229 = vmatprep.mubr.bf16.mxu0 %v3627
    %6230 = vmatmul.mubr.bf16.gmra.mxu0 %v3626
    %v6231 = vpop.f32.mrf.mxu0
    %v6232 = vadd.f32 %v6191, %v6231
    %v6233 = vpop.f32.mrf.mxu0
    %v6234 = vadd.f32 %v6193, %v6233
    %v6235 = vpop.f32.mrf.mxu0
    %v6236 = vpop.f32.mrf.mxu0
    %6237 = vdwg.mxu0
    %6238 = vmatprep.subr.bf16.mxu0 %v5416
    %6239 = vmatpush1.bf16.msra.mxu0 %v5415
    %6240 = vmatprep.subr.bf16.mxu0 %v5409
    %6241 = vmatpush1.bf16.msra.mxu0 %v5408
    %6242 = vmatprep.subr.bf16.mxu0 %v5402
    %6243 = vmatpush1.bf16.msra.mxu0 %v5401
    %6244 = vmatprep.subr.bf16.mxu0 %v5395
    %6245 = vmatpush1.bf16.msra.mxu0 %v5394
    %6246 = vmatprep.subr.bf16.mxu0 %v5388
    %6247 = vmatpush1.bf16.msra.mxu0 %v5387
    %6248 = vmatprep.subr.bf16.mxu0 %v5381
    %6249 = vmatpush1.bf16.msra.mxu0 %v5380
    %6250 = vmatprep.subr.bf16.mxu0 %v5374
    %6251 = vmatpush1.bf16.msra.mxu0 %v5373
    %6252 = vmatprep.subr.bf16.mxu0 %v5367
    %6253 = vmatpush1.bf16.msra.mxu0 %v5366
    %6254 = vmatprep.subr.bf16.mxu0 %v5472
    %6255 = vmatpush2.bf16.msra.mxu0 %v5471
    %6256 = vmatprep.subr.bf16.mxu0 %v5465
    %6257 = vmatpush2.bf16.msra.mxu0 %v5464
    %6258 = vmatprep.subr.bf16.mxu0 %v5458
    %6259 = vmatpush2.bf16.msra.mxu0 %v5457
    %6260 = vmatprep.subr.bf16.mxu0 %v5451
    %6261 = vmatpush2.bf16.msra.mxu0 %v5450
    %6262 = vmatprep.subr.bf16.mxu0 %v5444
    %6263 = vmatpush2.bf16.msra.mxu0 %v5443
    %6264 = vmatprep.subr.bf16.mxu0 %v5437
    %6265 = vmatpush2.bf16.msra.mxu0 %v5436
    %6266 = vmatprep.subr.bf16.mxu0 %v5430
    %6267 = vmatpush2.bf16.msra.mxu0 %v5429
    %6268 = vmatprep.subr.bf16.mxu0 %v5423
    %6269 = vmatpush2.bf16.msra.mxu0 %v5422
    %6270 = vmatprep.mubr.bf16.mxu0 %v3629
    %6271 = vmatmul.mubr.bf16.gmra.mxu0 %v3628
    %v6272 = vpop.f32.mrf.mxu0
    %v6273 = vadd.f32 %v6232, %v6272
    %v6274 = vpop.f32.mrf.mxu0
    %v6275 = vadd.f32 %v6234, %v6274
    %v6276 = vpop.f32.mrf.mxu0
    %v6277 = vpop.f32.mrf.mxu0
    %6278 = vdwg.mxu0
    %6279 = vmatprep.subr.bf16.mxu0 0
    %6280 = vmatpush1.bf16.msra.mxu0 0
    %6281 = vmatprep.subr.bf16.mxu0 0
    %6282 = vmatpush1.bf16.msra.mxu0 0
    %6283 = vmatprep.subr.bf16.mxu0 0
    %6284 = vmatpush1.bf16.msra.mxu0 0
    %6285 = vmatprep.subr.bf16.mxu0 0
    %6286 = vmatpush1.bf16.msra.mxu0 0
    %6287 = vmatprep.subr.bf16.mxu0 0
    %6288 = vmatpush1.bf16.msra.mxu0 0
    %6289 = vmatprep.subr.bf16.mxu0 0
    %6290 = vmatpush1.bf16.msra.mxu0 0
    %6291 = vmatprep.subr.bf16.mxu0 0
    %6292 = vmatpush1.bf16.msra.mxu0 0
    %6293 = vmatprep.subr.bf16.mxu0 %v5479
    %6294 = vmatpush1.bf16.msra.mxu0 %v5478
    %6295 = vmatprep.subr.bf16.mxu0 0
    %6296 = vmatpush2.bf16.msra.mxu0 0
    %6297 = vmatprep.subr.bf16.mxu0 0
    %6298 = vmatpush2.bf16.msra.mxu0 0
    %6299 = vmatprep.subr.bf16.mxu0 0
    %6300 = vmatpush2.bf16.msra.mxu0 0
    %6301 = vmatprep.subr.bf16.mxu0 0
    %6302 = vmatpush2.bf16.msra.mxu0 0
    %6303 = vmatprep.subr.bf16.mxu0 0
    %6304 = vmatpush2.bf16.msra.mxu0 0
    %6305 = vmatprep.subr.bf16.mxu0 0
    %6306 = vmatpush2.bf16.msra.mxu0 0
    %6307 = vmatprep.subr.bf16.mxu0 0
    %6308 = vmatpush2.bf16.msra.mxu0 0
    %6309 = vmatprep.subr.bf16.mxu0 0
    %6310 = vmatpush2.bf16.msra.mxu0 0
    %6311 = vmatprep.mubr.bf16.mxu0 0
    %6312 = vmatmul.mubr.bf16.gmra.mxu0 %v5826
    %v6313 = vpop.f32.mrf.mxu0
    %v6314 = vadd.f32 %v6273, %v6313
    %v6315 = vpop.f32.mrf.mxu0
    %v6316 = vadd.f32 %v6275, %v6315
    %v6317 = vpop.f32.mrf.mxu0
    %v6318 = vpop.f32.mrf.mxu0
    %6319 = vdwg.mxu0
    %6320 = vmatprep.subr.bf16.mxu0 0
    %6321 = vmatpush1.bf16.msra.mxu0 %v5193
    %6322 = vmatprep.subr.bf16.mxu0 0
    %6323 = vmatpush1.bf16.msra.mxu0 %v5186
    %6324 = vmatprep.subr.bf16.mxu0 0
    %6325 = vmatpush1.bf16.msra.mxu0 %v5179
    %6326 = vmatprep.subr.bf16.mxu0 0
    %6327 = vmatpush1.bf16.msra.mxu0 %v5172
    %6328 = vmatprep.subr.bf16.mxu0 0
    %6329 = vmatpush1.bf16.msra.mxu0 %v5165
    %6330 = vmatprep.subr.bf16.mxu0 0
    %6331 = vmatpush1.bf16.msra.mxu0 %v5158
    %6332 = vmatprep.subr.bf16.mxu0 0
    %6333 = vmatpush1.bf16.msra.mxu0 %v5151
    %6334 = vmatprep.subr.bf16.mxu0 0
    %6335 = vmatpush1.bf16.msra.mxu0 %v5144
    %6336 = vmatprep.subr.bf16.mxu0 0
    %6337 = vmatpush2.bf16.msra.mxu0 %v5249
    %6338 = vmatprep.subr.bf16.mxu0 0
    %6339 = vmatpush2.bf16.msra.mxu0 %v5242
    %6340 = vmatprep.subr.bf16.mxu0 0
    %6341 = vmatpush2.bf16.msra.mxu0 %v5235
    %6342 = vmatprep.subr.bf16.mxu0 0
    %6343 = vmatpush2.bf16.msra.mxu0 %v5228
    %6344 = vmatprep.subr.bf16.mxu0 0
    %6345 = vmatpush2.bf16.msra.mxu0 %v5221
    %6346 = vmatprep.subr.bf16.mxu0 0
    %6347 = vmatpush2.bf16.msra.mxu0 %v5214
    %6348 = vmatprep.subr.bf16.mxu0 0
    %6349 = vmatpush2.bf16.msra.mxu0 %v5207
    %6350 = vmatprep.subr.bf16.mxu0 0
    %6351 = vmatpush2.bf16.msra.mxu0 %v5200
    %6352 = vmatprep.mubr.bf16.mxu0 %v3625
    %6353 = vmatmul.mubr.bf16.gmra.mxu0 %v3624
    %v6354 = vpop.f32.mrf.mxu0
    %v6355 = vadd.f32 %v4052, %v6354
    %v6356 = vpop.f32.mrf.mxu0
    %v6357 = vpop.f32.mrf.mxu0
    %v6358 = vpop.f32.mrf.mxu0
    %6359 = vdwg.mxu0
    %6360 = vmatprep.subr.bf16.mxu0 0
    %6361 = vmatpush1.bf16.msra.mxu0 %v5305
    %6362 = vmatprep.subr.bf16.mxu0 0
    %6363 = vmatpush1.bf16.msra.mxu0 %v5298
    %6364 = vmatprep.subr.bf16.mxu0 0
    %6365 = vmatpush1.bf16.msra.mxu0 %v5291
    %6366 = vmatprep.subr.bf16.mxu0 0
    %6367 = vmatpush1.bf16.msra.mxu0 %v5284
    %6368 = vmatprep.subr.bf16.mxu0 0
    %6369 = vmatpush1.bf16.msra.mxu0 %v5277
    %6370 = vmatprep.subr.bf16.mxu0 0
    %6371 = vmatpush1.bf16.msra.mxu0 %v5270
    %6372 = vmatprep.subr.bf16.mxu0 0
    %6373 = vmatpush1.bf16.msra.mxu0 %v5263
    %6374 = vmatprep.subr.bf16.mxu0 0
    %6375 = vmatpush1.bf16.msra.mxu0 %v5256
    %6376 = vmatprep.subr.bf16.mxu0 0
    %6377 = vmatpush2.bf16.msra.mxu0 %v5361
    %6378 = vmatprep.subr.bf16.mxu0 0
    %6379 = vmatpush2.bf16.msra.mxu0 %v5354
    %6380 = vmatprep.subr.bf16.mxu0 0
    %6381 = vmatpush2.bf16.msra.mxu0 %v5347
    %6382 = vmatprep.subr.bf16.mxu0 0
    %6383 = vmatpush2.bf16.msra.mxu0 %v5340
    %6384 = vmatprep.subr.bf16.mxu0 0
    %6385 = vmatpush2.bf16.msra.mxu0 %v5333
    %6386 = vmatprep.subr.bf16.mxu0 0
    %6387 = vmatpush2.bf16.msra.mxu0 %v5326
    %6388 = vmatprep.subr.bf16.mxu0 0
    %6389 = vmatpush2.bf16.msra.mxu0 %v5319
    %6390 = vmatprep.subr.bf16.mxu0 0
    %6391 = vmatpush2.bf16.msra.mxu0 %v5312
    %6392 = vmatprep.mubr.bf16.mxu0 %v3627
    %6393 = vmatmul.mubr.bf16.gmra.mxu0 %v3626
    %v6394 = vpop.f32.mrf.mxu0
    %v6395 = vadd.f32 %v6355, %v6394
    %v6396 = vpop.f32.mrf.mxu0
    %v6397 = vpop.f32.mrf.mxu0
    %v6398 = vpop.f32.mrf.mxu0
    %6399 = vdwg.mxu0
    %6400 = vmatprep.subr.bf16.mxu0 0
    %6401 = vmatpush1.bf16.msra.mxu0 %v5417
    %6402 = vmatprep.subr.bf16.mxu0 0
    %6403 = vmatpush1.bf16.msra.mxu0 %v5410
    %6404 = vmatprep.subr.bf16.mxu0 0
    %6405 = vmatpush1.bf16.msra.mxu0 %v5403
    %6406 = vmatprep.subr.bf16.mxu0 0
    %6407 = vmatpush1.bf16.msra.mxu0 %v5396
    %6408 = vmatprep.subr.bf16.mxu0 0
    %6409 = vmatpush1.bf16.msra.mxu0 %v5389
    %6410 = vmatprep.subr.bf16.mxu0 0
    %6411 = vmatpush1.bf16.msra.mxu0 %v5382
    %6412 = vmatprep.subr.bf16.mxu0 0
    %6413 = vmatpush1.bf16.msra.mxu0 %v5375
    %6414 = vmatprep.subr.bf16.mxu0 0
    %6415 = vmatpush1.bf16.msra.mxu0 %v5368
    %6416 = vmatprep.subr.bf16.mxu0 0
    %6417 = vmatpush2.bf16.msra.mxu0 %v5473
    %6418 = vmatprep.subr.bf16.mxu0 0
    %6419 = vmatpush2.bf16.msra.mxu0 %v5466
    %6420 = vmatprep.subr.bf16.mxu0 0
    %6421 = vmatpush2.bf16.msra.mxu0 %v5459
    %6422 = vmatprep.subr.bf16.mxu0 0
    %6423 = vmatpush2.bf16.msra.mxu0 %v5452
    %6424 = vmatprep.subr.bf16.mxu0 0
    %6425 = vmatpush2.bf16.msra.mxu0 %v5445
    %6426 = vmatprep.subr.bf16.mxu0 0
    %6427 = vmatpush2.bf16.msra.mxu0 %v5438
    %6428 = vmatprep.subr.bf16.mxu0 0
    %6429 = vmatpush2.bf16.msra.mxu0 %v5431
    %6430 = vmatprep.subr.bf16.mxu0 0
    %6431 = vmatpush2.bf16.msra.mxu0 %v5424
    %6432 = vmatprep.mubr.bf16.mxu0 %v3629
    %6433 = vmatmul.mubr.bf16.gmra.mxu0 %v3628
    %v6434 = vpop.f32.mrf.mxu0
    %v6435 = vadd.f32 %v6395, %v6434
    %v6436 = vpop.f32.mrf.mxu0
    %v6437 = vpop.f32.mrf.mxu0
    %v6438 = vpop.f32.mrf.mxu0
    %6439 = vdwg.mxu0
    %6440 = vmatprep.subr.bf16.mxu0 0
    %6441 = vmatpush1.bf16.msra.mxu0 0
    %6442 = vmatprep.subr.bf16.mxu0 0
    %6443 = vmatpush1.bf16.msra.mxu0 0
    %6444 = vmatprep.subr.bf16.mxu0 0
    %6445 = vmatpush1.bf16.msra.mxu0 0
    %6446 = vmatprep.subr.bf16.mxu0 0
    %6447 = vmatpush1.bf16.msra.mxu0 0
    %6448 = vmatprep.subr.bf16.mxu0 0
    %6449 = vmatpush1.bf16.msra.mxu0 0
    %6450 = vmatprep.subr.bf16.mxu0 0
    %6451 = vmatpush1.bf16.msra.mxu0 0
    %6452 = vmatprep.subr.bf16.mxu0 0
    %6453 = vmatpush1.bf16.msra.mxu0 0
    %6454 = vmatprep.subr.bf16.mxu0 0
    %6455 = vmatpush1.bf16.msra.mxu0 %v5480
    %6456 = vmatprep.subr.bf16.mxu0 0
    %6457 = vmatpush2.bf16.msra.mxu0 0
    %6458 = vmatprep.subr.bf16.mxu0 0
    %6459 = vmatpush2.bf16.msra.mxu0 0
    %6460 = vmatprep.subr.bf16.mxu0 0
    %6461 = vmatpush2.bf16.msra.mxu0 0
    %6462 = vmatprep.subr.bf16.mxu0 0
    %6463 = vmatpush2.bf16.msra.mxu0 0
    %6464 = vmatprep.subr.bf16.mxu0 0
    %6465 = vmatpush2.bf16.msra.mxu0 0
    %6466 = vmatprep.subr.bf16.mxu0 0
    %6467 = vmatpush2.bf16.msra.mxu0 0
    %6468 = vmatprep.subr.bf16.mxu0 0
    %6469 = vmatpush2.bf16.msra.mxu0 0
    %6470 = vmatprep.subr.bf16.mxu0 0
    %6471 = vmatpush2.bf16.msra.mxu0 0
    %6472 = vmatprep.mubr.bf16.mxu0 0
    %6473 = vmatmul.mubr.bf16.gmra.mxu0 %v5826
    %v6474 = vpop.f32.mrf.mxu0
    %v6475 = vadd.f32 %v6435, %v6474
    %v6476 = vpop.f32.mrf.mxu0
    %v6477 = vpop.f32.mrf.mxu0
    %v6478 = vpop.f32.mrf.mxu0
    %6479 = vdwg.mxu0
    %v6480 = vmax.f32 %v5986, 0.0
    %v6481 = vmax.f32 %v5988, 0.0
    %v6482 = vmax.f32 %v6150, 0.0
    %v6483 = vmax.f32 %v6152, 0.0
    %v6484 = vmax.f32 %v6314, 0.0
    %v6485 = vmax.f32 %v6316, 0.0
    %v6486 = vmax.f32 %v6475, 0.0
    %v6487 = vld [vmem:[#allocation9] sm:$0xff]
    %v6488 = vpack.c.bf16 %v6480, %v6480
    %v6489 = vpack.c.bf16 %v6481, %v6481
    %v6490 = vpack.c.bf16 %v6482, %v6482
    %v6491 = vpack.c.bf16 %v6483, %v6483
    %v6492 = vpack.c.bf16 %v6484, %v6484
    %v6493 = vpack.c.bf16 %v6485, %v6485
    %v6494 = vpack.c.bf16 %v6486, %v6486
    %v6495 = vld [vmem:[#allocation6] sm:$0xf]
    %v6496 = vld [vmem:[#allocation6 + $0x4] sm:$0xf]
    %v6497 = vld [vmem:[#allocation6 + $0x8] sm:$0xf]
    %v6498 = vld [vmem:[#allocation6 + $0xc] sm:$0xf]
    %v6499 = vld [vmem:[#allocation6 + $0x10] sm:$0xf]
    %v6500 = vld [vmem:[#allocation6 + $0x14] sm:$0xf]
    %v6501 = vld [vmem:[#allocation6 + $0x18] sm:$0xf]
    %v6502 = vld [vmem:[#allocation6 + $0x1c] sm:$0xf]
    %v6503 = vld [vmem:[#allocation6 + $0x20] sm:$0xf]
    %v6504 = vld [vmem:[#allocation6 + $0x24] sm:$0xf]
    %v6505 = vld [vmem:[#allocation6 + $0x28] sm:$0xf]
    %v6506 = vld [vmem:[#allocation6 + $0x2c] sm:$0xf]
    %v6507 = vld [vmem:[#allocation6 + $0x30] sm:$0xf]
    %v6508 = vld [vmem:[#allocation6 + $0x34] sm:$0xf]
    %v6509 = vld [vmem:[#allocation6 + $0x38] sm:$0xf]
    %v6510 = vld [vmem:[#allocation6 + $0x3c] sm:$0xf]
    %v6511 = vld [vmem:[#allocation6 + $0x40] sm:$0xf]
    %v6512 = vld [vmem:[#allocation6 + $0x44] sm:$0xf]
    %v6513 = vld [vmem:[#allocation6 + $0x48] sm:$0xf]
    %v6514 = vld [vmem:[#allocation6 + $0x4c] sm:$0xf]
    %v6515 = vld [vmem:[#allocation6 + $0x50] sm:$0xf]
    %v6516 = vld [vmem:[#allocation6 + $0x54] sm:$0xf]
    %v6517 = vld [vmem:[#allocation6 + $0x58] sm:$0xf]
    %v6518 = vld [vmem:[#allocation6 + $0x5c] sm:$0xf]
    %v6519 = vld [vmem:[#allocation6 + $0x60] sm:$0xf]
    %v6520 = vld [vmem:[#allocation6 + $0x64] sm:$0xf]
    %v6521 = vld [vmem:[#allocation6 + $0x68] sm:$0xf]
    %v6522 = vld [vmem:[#allocation6 + $0x6c] sm:$0xf]
    %v6523 = vld [vmem:[#allocation6 + $0x70] sm:$0xf]
    %v6524 = vld [vmem:[#allocation6 + $0x74] sm:$0xf]
    %v6525 = vld [vmem:[#allocation6 + $0x78] sm:$0xf]
    %v6526 = vld [vmem:[#allocation6 + $0x7c] sm:$0xf]
    %v6527 = vld [vmem:[#allocation6 + $0x80] sm:$0xf]
    %v6528 = vld [vmem:[#allocation6 + $0x84] sm:$0xf]
    %v6529 = vld [vmem:[#allocation6 + $0x88] sm:$0xf]
    %v6530 = vld [vmem:[#allocation6 + $0x8c] sm:$0xf]
    %v6531 = vld [vmem:[#allocation6 + $0x90] sm:$0xf]
    %v6532 = vld [vmem:[#allocation6 + $0x94] sm:$0xf]
    %v6533 = vld [vmem:[#allocation6 + $0x98] sm:$0xf]
    %v6534 = vld [vmem:[#allocation6 + $0x9c] sm:$0xf]
    %v6535 = vld [vmem:[#allocation6 + $0xa0] sm:$0xf]
    %v6536 = vld [vmem:[#allocation6 + $0xa4] sm:$0xf]
    %v6537 = vld [vmem:[#allocation6 + $0xa8] sm:$0xf]
    %v6538 = vld [vmem:[#allocation6 + $0xac] sm:$0xf]
    %v6539 = vld [vmem:[#allocation6 + $0xb0] sm:$0xf]
    %v6540 = vld [vmem:[#allocation6 + $0xb4] sm:$0xf]
    %v6541 = vld [vmem:[#allocation6 + $0xb8] sm:$0xf]
    %v6542 = vld [vmem:[#allocation6 + $0xbc] sm:$0xf]
    %v6543 = vld [vmem:[#allocation6 + $0xc0] sm:$0xf]
    %v6544 = vld [vmem:[#allocation6 + $0xc4] sm:$0xf]
    %v6545 = vld [vmem:[#allocation6 + $0xc8] sm:$0xf]
    %v6546 = vld [vmem:[#allocation6 + $0xcc] sm:$0xf]
    %v6547 = vld [vmem:[#allocation6 + $0xd0] sm:$0xf]
    %v6548 = vld [vmem:[#allocation6 + $0xd4] sm:$0xf]
    %v6549 = vld [vmem:[#allocation6 + $0xd8] sm:$0xf]
    %v6550 = vld [vmem:[#allocation6 + $0xdc] sm:$0xf]
    %v6551 = vld [vmem:[#allocation6 + $0xe0] sm:$0xf]
    %v6552 = vld [vmem:[#allocation6 + $0xe4] sm:$0xf]
    %v6553 = vld [vmem:[#allocation6 + $0xe8] sm:$0xf]
    %v6554 = vld [vmem:[#allocation6 + $0xec] sm:$0xf]
    %v6555 = vld [vmem:[#allocation6 + $0xf0] sm:$0xf]
    %v6556 = vld [vmem:[#allocation6 + $0xf4] sm:$0xf]
    %v6557 = vld [vmem:[#allocation6 + $0xf8] sm:$0xf]
    %v6558 = vld [vmem:[#allocation6 + $0xfc] sm:$0xf]
    %v6559 = vld [vmem:[#allocation6 + $0x100] sm:$0xf]
    %v6560 = vld [vmem:[#allocation6 + $0x104] sm:$0xf]
    %v6561 = vld [vmem:[#allocation6 + $0x108] sm:$0xf]
    %v6562 = vld [vmem:[#allocation6 + $0x10c] sm:$0xf]
    %v6563 = vld [vmem:[#allocation6 + $0x110] sm:$0xf]
    %v6564 = vld [vmem:[#allocation6 + $0x114] sm:$0xf]
    %v6565 = vld [vmem:[#allocation6 + $0x118] sm:$0xf]
    %v6566 = vld [vmem:[#allocation6 + $0x11c] sm:$0xf]
    %v6567 = vld [vmem:[#allocation6 + $0x120] sm:$0xf]
    %v6568 = vld [vmem:[#allocation6 + $0x124] sm:$0xf]
    %v6569 = vld [vmem:[#allocation6 + $0x128] sm:$0xf]
    %v6570 = vld [vmem:[#allocation6 + $0x12c] sm:$0xf]
    %v6571 = vld [vmem:[#allocation6 + $0x130] sm:$0xf]
    %v6572 = vld [vmem:[#allocation6 + $0x134] sm:$0xf]
    %v6573 = vld [vmem:[#allocation6 + $0x138] sm:$0xf]
    %v6574 = vld [vmem:[#allocation6 + $0x13c] sm:$0xf]
    %v6575 = vld [vmem:[#allocation6 + $0x140] sm:$0xf]
    %v6576 = vld [vmem:[#allocation6 + $0x144] sm:$0xf]
    %v6577 = vld [vmem:[#allocation6 + $0x148] sm:$0xf]
    %v6578 = vld [vmem:[#allocation6 + $0x14c] sm:$0xf]
    %v6579 = vld [vmem:[#allocation6 + $0x150] sm:$0xf]
    %v6580 = vld [vmem:[#allocation6 + $0x154] sm:$0xf]
    %v6581 = vld [vmem:[#allocation6 + $0x158] sm:$0xf]
    %v6582 = vld [vmem:[#allocation6 + $0x15c] sm:$0xf]
    %v6583 = vld [vmem:[#allocation6 + $0x160] sm:$0xf]
    %v6584 = vld [vmem:[#allocation6 + $0x164] sm:$0xf]
    %v6585 = vld [vmem:[#allocation6 + $0x168] sm:$0xf]
    %v6586 = vld [vmem:[#allocation6 + $0x16c] sm:$0xf]
    %v6587 = vld [vmem:[#allocation6 + $0x170] sm:$0xf]
    %v6588 = vld [vmem:[#allocation6 + $0x174] sm:$0xf]
    %v6589 = vld [vmem:[#allocation6 + $0x178] sm:$0xf]
    %v6590 = vld [vmem:[#allocation6 + $0x17c] sm:$0xf]
    %v6591 = vld [vmem:[#allocation6 + $0x180] sm:$0xf]
    %v6592 = vld [vmem:[#allocation6 + $0x184] sm:$0xf]
    %v6593 = vld [vmem:[#allocation6 + $0x188] sm:$0xf]
    %v6594 = vld [vmem:[#allocation6 + $0x18c] sm:$0xf]
    %v6595 = vlaneseq
    %v6596 = vshrl.u32 %v6595, 7
    %v6597 = vsub.s32 0, %v6596
    %v6598 = vrot.slane %v6487, %v6597
    %v6699 = vunpack.c.l.b16 %v6495
    %v6700 = vunpack.c.l.b16 %v6496
    %v6701 = vunpack.c.l.b16 %v6497
    %v6702 = vunpack.c.l.b16 %v6498
    %v6703 = vunpack.c.l.b16 %v6499
    %v6704 = vunpack.c.l.b16 %v6500
    %v6705 = vunpack.c.l.b16 %v6501
    %v6706 = vunpack.c.l.b16 %v6502
    %v6707 = vunpack.c.l.b16 %v6503
    %v6708 = vunpack.c.l.b16 %v6504
    %v6709 = vunpack.c.l.b16 %v6505
    %v6710 = vunpack.c.l.b16 %v6506
    %v6711 = vunpack.c.l.b16 %v6507
    %v6712 = vunpack.c.l.b16 %v6508
    %v6713 = vunpack.c.l.b16 %v6509
    %v6714 = vunpack.c.l.b16 %v6510
    %v6715 = vunpack.c.l.b16 %v6511
    %v6716 = vunpack.c.l.b16 %v6512
    %v6717 = vunpack.c.l.b16 %v6513
    %v6718 = vunpack.c.l.b16 %v6514
    %v6719 = vunpack.c.l.b16 %v6515
    %v6720 = vunpack.c.l.b16 %v6516
    %v6721 = vunpack.c.l.b16 %v6517
    %v6722 = vunpack.c.l.b16 %v6518
    %v6723 = vunpack.c.l.b16 %v6519
    %v6724 = vunpack.c.l.b16 %v6520
    %v6725 = vunpack.c.l.b16 %v6521
    %v6726 = vunpack.c.l.b16 %v6522
    %v6727 = vunpack.c.l.b16 %v6523
    %v6728 = vunpack.c.l.b16 %v6524
    %v6729 = vunpack.c.l.b16 %v6525
    %v6730 = vunpack.c.l.b16 %v6526
    %v6731 = vunpack.c.l.b16 %v6527
    %v6732 = vunpack.c.l.b16 %v6528
    %v6733 = vunpack.c.l.b16 %v6529
    %v6734 = vunpack.c.l.b16 %v6530
    %v6735 = vunpack.c.l.b16 %v6531
    %v6736 = vunpack.c.l.b16 %v6532
    %v6737 = vunpack.c.l.b16 %v6533
    %v6738 = vunpack.c.l.b16 %v6534
    %v6739 = vunpack.c.l.b16 %v6535
    %v6740 = vunpack.c.l.b16 %v6536
    %v6741 = vunpack.c.l.b16 %v6537
    %v6742 = vunpack.c.l.b16 %v6538
    %v6743 = vunpack.c.l.b16 %v6539
    %v6744 = vunpack.c.l.b16 %v6540
    %v6745 = vunpack.c.l.b16 %v6541
    %v6746 = vunpack.c.l.b16 %v6542
    %v6747 = vunpack.c.l.b16 %v6543
    %v6748 = vunpack.c.l.b16 %v6544
    %v6749 = vunpack.c.l.b16 %v6545
    %v6750 = vunpack.c.l.b16 %v6546
    %v6751 = vunpack.c.l.b16 %v6547
    %v6752 = vunpack.c.l.b16 %v6548
    %v6753 = vunpack.c.l.b16 %v6549
    %v6754 = vunpack.c.l.b16 %v6550
    %v6755 = vunpack.c.l.b16 %v6551
    %v6756 = vunpack.c.l.b16 %v6552
    %v6757 = vunpack.c.l.b16 %v6553
    %v6758 = vunpack.c.l.b16 %v6554
    %v6759 = vunpack.c.l.b16 %v6555
    %v6760 = vunpack.c.l.b16 %v6556
    %v6761 = vunpack.c.l.b16 %v6557
    %v6762 = vunpack.c.l.b16 %v6558
    %v6763 = vunpack.c.l.b16 %v6559
    %v6764 = vunpack.c.l.b16 %v6560
    %v6765 = vunpack.c.l.b16 %v6561
    %v6766 = vunpack.c.l.b16 %v6562
    %v6767 = vunpack.c.l.b16 %v6563
    %v6768 = vunpack.c.l.b16 %v6564
    %v6769 = vunpack.c.l.b16 %v6565
    %v6770 = vunpack.c.l.b16 %v6566
    %v6771 = vunpack.c.l.b16 %v6567
    %v6772 = vunpack.c.l.b16 %v6568
    %v6773 = vunpack.c.l.b16 %v6569
    %v6774 = vunpack.c.l.b16 %v6570
    %v6775 = vunpack.c.l.b16 %v6571
    %v6776 = vunpack.c.l.b16 %v6572
    %v6777 = vunpack.c.l.b16 %v6573
    %v6778 = vunpack.c.l.b16 %v6574
    %v6779 = vunpack.c.l.b16 %v6575
    %v6780 = vunpack.c.l.b16 %v6576
    %v6781 = vunpack.c.l.b16 %v6577
    %v6782 = vunpack.c.l.b16 %v6578
    %v6783 = vunpack.c.l.b16 %v6579
    %v6784 = vunpack.c.l.b16 %v6580
    %v6785 = vunpack.c.l.b16 %v6581
    %v6786 = vunpack.c.l.b16 %v6582
    %v6787 = vunpack.c.l.b16 %v6583
    %v6788 = vunpack.c.l.b16 %v6584
    %v6789 = vunpack.c.l.b16 %v6585
    %v6790 = vunpack.c.l.b16 %v6586
    %v6791 = vunpack.c.l.b16 %v6587
    %v6792 = vunpack.c.l.b16 %v6588
    %v6793 = vunpack.c.l.b16 %v6589
    %v6794 = vunpack.c.l.b16 %v6590
    %v6795 = vunpack.c.l.b16 %v6591
    %v6796 = vunpack.c.l.b16 %v6592
    %v6797 = vunpack.c.l.b16 %v6593
    %v6798 = vunpack.c.l.b16 %v6594
    %v6799 = vpack.c.b16 %v6700, %v6699
    %v6800 = vpack.c.b16 %v6702, %v6701
    %v6801 = vpack.c.b16 %v6704, %v6703
    %v6802 = vpack.c.b16 %v6706, %v6705
    %v6803 = vpack.c.b16 %v6708, %v6707
    %v6804 = vpack.c.b16 %v6710, %v6709
    %v6805 = vpack.c.b16 %v6712, %v6711
    %v6806 = vpack.c.b16 %v6714, %v6713
    %v6807 = vpack.c.b16 %v6716, %v6715
    %v6808 = vpack.c.b16 %v6718, %v6717
    %v6809 = vpack.c.b16 %v6720, %v6719
    %v6810 = vpack.c.b16 %v6722, %v6721
    %v6811 = vpack.c.b16 %v6724, %v6723
    %v6812 = vpack.c.b16 %v6726, %v6725
    %v6813 = vpack.c.b16 %v6728, %v6727
    %v6814 = vpack.c.b16 %v6730, %v6729
    %v6815 = vpack.c.b16 %v6732, %v6731
    %v6816 = vpack.c.b16 %v6734, %v6733
    %v6817 = vpack.c.b16 %v6736, %v6735
    %v6818 = vpack.c.b16 %v6738, %v6737
    %v6819 = vpack.c.b16 %v6740, %v6739
    %v6820 = vpack.c.b16 %v6742, %v6741
    %v6821 = vpack.c.b16 %v6744, %v6743
    %v6822 = vpack.c.b16 %v6746, %v6745
    %v6823 = vpack.c.b16 %v6748, %v6747
    %v6824 = vpack.c.b16 %v6750, %v6749
    %v6825 = vpack.c.b16 %v6752, %v6751
    %v6826 = vpack.c.b16 %v6754, %v6753
    %v6827 = vpack.c.b16 %v6756, %v6755
    %v6828 = vpack.c.b16 %v6758, %v6757
    %v6829 = vpack.c.b16 %v6760, %v6759
    %v6830 = vpack.c.b16 %v6762, %v6761
    %v6831 = vpack.c.b16 %v6764, %v6763
    %v6832 = vpack.c.b16 %v6766, %v6765
    %v6833 = vpack.c.b16 %v6768, %v6767
    %v6834 = vpack.c.b16 %v6770, %v6769
    %v6835 = vpack.c.b16 %v6772, %v6771
    %v6836 = vpack.c.b16 %v6774, %v6773
    %v6837 = vpack.c.b16 %v6776, %v6775
    %v6838 = vpack.c.b16 %v6778, %v6777
    %v6839 = vpack.c.b16 %v6780, %v6779
    %v6840 = vpack.c.b16 %v6782, %v6781
    %v6841 = vpack.c.b16 %v6784, %v6783
    %v6842 = vpack.c.b16 %v6786, %v6785
    %v6843 = vpack.c.b16 %v6788, %v6787
    %v6844 = vpack.c.b16 %v6790, %v6789
    %v6845 = vpack.c.b16 %v6792, %v6791
    %v6846 = vpack.c.b16 %v6794, %v6793
    %v6847 = vpack.c.b16 %v6796, %v6795
    %v6848 = vpack.c.b16 %v6798, %v6797
    %vm6899 = vcmask 261120
    %v6901 = vsel %vm6899, %v6494, 0
    %6903 = vmatprep.subr.bf16.mxu0 0
    %6904 = vmatpush1.bf16.msra.mxu0 %v6806
    %6905 = vmatprep.subr.bf16.mxu0 0
    %6906 = vmatpush1.bf16.msra.mxu0 %v6805
    %6907 = vmatprep.subr.bf16.mxu0 0
    %6908 = vmatpush1.bf16.msra.mxu0 %v6804
    %6909 = vmatprep.subr.bf16.mxu0 0
    %6910 = vmatpush1.bf16.msra.mxu0 %v6803
    %6911 = vmatprep.subr.bf16.mxu0 0
    %6912 = vmatpush1.bf16.msra.mxu0 %v6802
    %6913 = vmatprep.subr.bf16.mxu0 0
    %6914 = vmatpush1.bf16.msra.mxu0 %v6801
    %6915 = vmatprep.subr.bf16.mxu0 0
    %6916 = vmatpush1.bf16.msra.mxu0 %v6800
    %6917 = vmatprep.subr.bf16.mxu0 0
    %6918 = vmatpush1.bf16.msra.mxu0 %v6799
    %6919 = vmatprep.subr.bf16.mxu0 0
    %6920 = vmatpush2.bf16.msra.mxu0 %v6814
    %6921 = vmatprep.subr.bf16.mxu0 0
    %6922 = vmatpush2.bf16.msra.mxu0 %v6813
    %6923 = vmatprep.subr.bf16.mxu0 0
    %6924 = vmatpush2.bf16.msra.mxu0 %v6812
    %6925 = vmatprep.subr.bf16.mxu0 0
    %6926 = vmatpush2.bf16.msra.mxu0 %v6811
    %6927 = vmatprep.subr.bf16.mxu0 0
    %6928 = vmatpush2.bf16.msra.mxu0 %v6810
    %6929 = vmatprep.subr.bf16.mxu0 0
    %6930 = vmatpush2.bf16.msra.mxu0 %v6809
    %6931 = vmatprep.subr.bf16.mxu0 0
    %6932 = vmatpush2.bf16.msra.mxu0 %v6808
    %6933 = vmatprep.subr.bf16.mxu0 0
    %6934 = vmatpush2.bf16.msra.mxu0 %v6807
    %6935 = vmatprep.mubr.bf16.mxu0 %v6489
    %6936 = vmatmul.mubr.bf16.gmra.mxu0 %v6488
    %v6937 = vpop.f32.mrf.mxu0
    %v6938 = vadd.f32 %v6598, %v6937
    %v6939 = vpop.f32.mrf.mxu0
    %v6940 = vpop.f32.mrf.mxu0
    %v6941 = vpop.f32.mrf.mxu0
    %6942 = vdwg.mxu0
    %6943 = vmatprep.subr.bf16.mxu0 0
    %6944 = vmatpush1.bf16.msra.mxu0 %v6822
    %6945 = vmatprep.subr.bf16.mxu0 0
    %6946 = vmatpush1.bf16.msra.mxu0 %v6821
    %6947 = vmatprep.subr.bf16.mxu0 0
    %6948 = vmatpush1.bf16.msra.mxu0 %v6820
    %6949 = vmatprep.subr.bf16.mxu0 0
    %6950 = vmatpush1.bf16.msra.mxu0 %v6819
    %6951 = vmatprep.subr.bf16.mxu0 0
    %6952 = vmatpush1.bf16.msra.mxu0 %v6818
    %6953 = vmatprep.subr.bf16.mxu0 0
    %6954 = vmatpush1.bf16.msra.mxu0 %v6817
    %6955 = vmatprep.subr.bf16.mxu0 0
    %6956 = vmatpush1.bf16.msra.mxu0 %v6816
    %6957 = vmatprep.subr.bf16.mxu0 0
    %6958 = vmatpush1.bf16.msra.mxu0 %v6815
    %6959 = vmatprep.subr.bf16.mxu0 0
    %6960 = vmatpush2.bf16.msra.mxu0 %v6830
    %6961 = vmatprep.subr.bf16.mxu0 0
    %6962 = vmatpush2.bf16.msra.mxu0 %v6829
    %6963 = vmatprep.subr.bf16.mxu0 0
    %6964 = vmatpush2.bf16.msra.mxu0 %v6828
    %6965 = vmatprep.subr.bf16.mxu0 0
    %6966 = vmatpush2.bf16.msra.mxu0 %v6827
    %6967 = vmatprep.subr.bf16.mxu0 0
    %6968 = vmatpush2.bf16.msra.mxu0 %v6826
    %6969 = vmatprep.subr.bf16.mxu0 0
    %6970 = vmatpush2.bf16.msra.mxu0 %v6825
    %6971 = vmatprep.subr.bf16.mxu0 0
    %6972 = vmatpush2.bf16.msra.mxu0 %v6824
    %6973 = vmatprep.subr.bf16.mxu0 0
    %6974 = vmatpush2.bf16.msra.mxu0 %v6823
    %6975 = vmatprep.mubr.bf16.mxu0 %v6491
    %6976 = vmatmul.mubr.bf16.gmra.mxu0 %v6490
    %v6977 = vpop.f32.mrf.mxu0
    %v6978 = vadd.f32 %v6938, %v6977
    %v6979 = vpop.f32.mrf.mxu0
    %v6980 = vpop.f32.mrf.mxu0
    %v6981 = vpop.f32.mrf.mxu0
    %6982 = vdwg.mxu0
    %6983 = vmatprep.subr.bf16.mxu0 0
    %6984 = vmatpush1.bf16.msra.mxu0 %v6838
    %6985 = vmatprep.subr.bf16.mxu0 0
    %6986 = vmatpush1.bf16.msra.mxu0 %v6837
    %6987 = vmatprep.subr.bf16.mxu0 0
    %6988 = vmatpush1.bf16.msra.mxu0 %v6836
    %6989 = vmatprep.subr.bf16.mxu0 0
    %6990 = vmatpush1.bf16.msra.mxu0 %v6835
    %6991 = vmatprep.subr.bf16.mxu0 0
    %6992 = vmatpush1.bf16.msra.mxu0 %v6834
    %6993 = vmatprep.subr.bf16.mxu0 0
    %6994 = vmatpush1.bf16.msra.mxu0 %v6833
    %6995 = vmatprep.subr.bf16.mxu0 0
    %6996 = vmatpush1.bf16.msra.mxu0 %v6832
    %6997 = vmatprep.subr.bf16.mxu0 0
    %6998 = vmatpush1.bf16.msra.mxu0 %v6831
    %6999 = vmatprep.subr.bf16.mxu0 0
    %7000 = vmatpush2.bf16.msra.mxu0 %v6846
    %7001 = vmatprep.subr.bf16.mxu0 0
    %7002 = vmatpush2.bf16.msra.mxu0 %v6845
    %7003 = vmatprep.subr.bf16.mxu0 0
    %7004 = vmatpush2.bf16.msra.mxu0 %v6844
    %7005 = vmatprep.subr.bf16.mxu0 0
    %7006 = vmatpush2.bf16.msra.mxu0 %v6843
    %7007 = vmatprep.subr.bf16.mxu0 0
    %7008 = vmatpush2.bf16.msra.mxu0 %v6842
    %7009 = vmatprep.subr.bf16.mxu0 0
    %7010 = vmatpush2.bf16.msra.mxu0 %v6841
    %7011 = vmatprep.subr.bf16.mxu0 0
    %7012 = vmatpush2.bf16.msra.mxu0 %v6840
    %7013 = vmatprep.subr.bf16.mxu0 0
    %7014 = vmatpush2.bf16.msra.mxu0 %v6839
    %7015 = vmatprep.mubr.bf16.mxu0 %v6493
    %7016 = vmatmul.mubr.bf16.gmra.mxu0 %v6492
    %v7017 = vpop.f32.mrf.mxu0
    %v7018 = vadd.f32 %v6978, %v7017
    %v7019 = vpop.f32.mrf.mxu0
    %v7020 = vpop.f32.mrf.mxu0
    %v7021 = vpop.f32.mrf.mxu0
    %7022 = vdwg.mxu0
    %7023 = vmatprep.subr.bf16.mxu0 0
    %7024 = vmatpush1.bf16.msra.mxu0 0
    %7025 = vmatprep.subr.bf16.mxu0 0
    %7026 = vmatpush1.bf16.msra.mxu0 0
    %7027 = vmatprep.subr.bf16.mxu0 0
    %7028 = vmatpush1.bf16.msra.mxu0 0
    %7029 = vmatprep.subr.bf16.mxu0 0
    %7030 = vmatpush1.bf16.msra.mxu0 0
    %7031 = vmatprep.subr.bf16.mxu0 0
    %7032 = vmatpush1.bf16.msra.mxu0 0
    %7033 = vmatprep.subr.bf16.mxu0 0
    %7034 = vmatpush1.bf16.msra.mxu0 0
    %7035 = vmatprep.subr.bf16.mxu0 0
    %7036 = vmatpush1.bf16.msra.mxu0 %v6848
    %7037 = vmatprep.subr.bf16.mxu0 0
    %7038 = vmatpush1.bf16.msra.mxu0 %v6847
    %7039 = vmatprep.subr.bf16.mxu0 0
    %7040 = vmatpush2.bf16.msra.mxu0 0
    %7041 = vmatprep.subr.bf16.mxu0 0
    %7042 = vmatpush2.bf16.msra.mxu0 0
    %7043 = vmatprep.subr.bf16.mxu0 0
    %7044 = vmatpush2.bf16.msra.mxu0 0
    %7045 = vmatprep.subr.bf16.mxu0 0
    %7046 = vmatpush2.bf16.msra.mxu0 0
    %7047 = vmatprep.subr.bf16.mxu0 0
    %7048 = vmatpush2.bf16.msra.mxu0 0
    %7049 = vmatprep.subr.bf16.mxu0 0
    %7050 = vmatpush2.bf16.msra.mxu0 0
    %7051 = vmatprep.subr.bf16.mxu0 0
    %7052 = vmatpush2.bf16.msra.mxu0 0
    %7053 = vmatprep.subr.bf16.mxu0 0
    %7054 = vmatpush2.bf16.msra.mxu0 0
    %7055 = vmatprep.mubr.bf16.mxu0 0
    %7056 = vmatmul.mubr.bf16.gmra.mxu0 %v6901
    %v7057 = vpop.f32.mrf.mxu0
    %v7058 = vadd.f32 %v7018, %v7057
    %v7059 = vpop.f32.mrf.mxu0
    %v7060 = vpop.f32.mrf.mxu0
    %v7061 = vpop.f32.mrf.mxu0
    %7062 = vdwg.mxu0
    %vm7063 = vcmask 523264
    %v7064 = vsel %vm7063, %v7058, 0.0
    %7065 = vadd.xlane.f32.xlu0 %v7064
    %v7066 = vpop.xlane.xlu0 %7065
    %v7067 = vrcp.pop 64.0
    %v7068 = vmul.f32 %v7066, %v7067
    %v7069 = vsub.f32 %v7058, %v7068
    %v7070 = vmul.f32 %v7069, %v7069
    %v7071 = vsel %vm7063, %v7070, 0.0
    %7072 = vadd.xlane.f32.xlu0 %v7071
    %v7073 = vpop.xlane.xlu0 %7072
    %v7074 = vmul.f32 %v7073, %v7067
    %v7075 = vadd.f32 %v7074, 1e-05
    %v7076 = vrsqrt.pop %v7075
    %v7077 = vmul.f32 %v7069, %v7076
    %v7078 = vlaneseq
    %v7079 = vshrl.u32 %v7078, 7
    %v7080 = vsub.s32 1, %v7079
    %v7081 = vrot.slane %v6487, %v7080
    %v7082 = vmul.f32 %v7077, %v7081
    %v7083 = vlaneseq
    %v7084 = vshrl.u32 %v7083, 7
    %v7085 = vsub.s32 2, %v7084
    %v7086 = vrot.slane %v6487, %v7085
    %v7087 = vadd.f32 %v7082, %v7086
    %v7088 = vmax.f32 %v7087, 0.0
    %v7089 = vpack.c.bf16 %v7088, %v7088
    %v7090 = vld [vmem:[#allocation7] sm:$0xf]
    %v7091 = vld [vmem:[#allocation7 + $0x4] sm:$0xf]
    %v7092 = vld [vmem:[#allocation7 + $0x8] sm:$0xf]
    %v7093 = vld [vmem:[#allocation7 + $0xc] sm:$0xf]
    %v7094 = vld [vmem:[#allocation7 + $0x10] sm:$0xf]
    %v7095 = vld [vmem:[#allocation7 + $0x14] sm:$0xf]
    %v7096 = vld [vmem:[#allocation7 + $0x18] sm:$0xf]
    %v7097 = vld [vmem:[#allocation7 + $0x1c] sm:$0xf]
    %v7098 = vlaneseq
    %v7099 = vshrl.u32 %v7098, 7
    %v7100 = vsub.s32 3, %v7099
    %v7101 = vrot.slane %v6487, %v7100
    %v7110 = vunpack.c.l.b16 %v7090
    %v7111 = vunpack.c.l.b16 %v7091
    %v7112 = vunpack.c.l.b16 %v7092
    %v7113 = vunpack.c.l.b16 %v7093
    %v7114 = vunpack.c.l.b16 %v7094
    %v7115 = vunpack.c.l.b16 %v7095
    %v7116 = vunpack.c.l.b16 %v7096
    %v7117 = vunpack.c.l.b16 %v7097
    %v7118 = vpack.c.b16 %v7111, %v7110
    %v7119 = vpack.c.b16 %v7113, %v7112
    %v7120 = vpack.c.b16 %v7115, %v7114
    %v7121 = vpack.c.b16 %v7117, %v7116
    %v7127 = vsel %vm7063, %v7089, 0
    %7129 = vmatprep.subr.bf16.mxu0 0
    %7130 = vmatpush1.bf16.msra.mxu0 0
    %7131 = vmatprep.subr.bf16.mxu0 0
    %7132 = vmatpush1.bf16.msra.mxu0 0
    %7133 = vmatprep.subr.bf16.mxu0 0
    %7134 = vmatpush1.bf16.msra.mxu0 0
    %7135 = vmatprep.subr.bf16.mxu0 0
    %7136 = vmatpush1.bf16.msra.mxu0 0
    %7137 = vmatprep.subr.bf16.mxu0 0
    %7138 = vmatpush1.bf16.msra.mxu0 %v7121
    %7139 = vmatprep.subr.bf16.mxu0 0
    %7140 = vmatpush1.bf16.msra.mxu0 %v7120
    %7141 = vmatprep.subr.bf16.mxu0 0
    %7142 = vmatpush1.bf16.msra.mxu0 %v7119
    %7143 = vmatprep.subr.bf16.mxu0 0
    %7144 = vmatpush1.bf16.msra.mxu0 %v7118
    %7145 = vmatprep.subr.bf16.mxu0 0
    %7146 = vmatpush2.bf16.msra.mxu0 0
    %7147 = vmatprep.subr.bf16.mxu0 0
    %7148 = vmatpush2.bf16.msra.mxu0 0
    %7149 = vmatprep.subr.bf16.mxu0 0
    %7150 = vmatpush2.bf16.msra.mxu0 0
    %7151 = vmatprep.subr.bf16.mxu0 0
    %7152 = vmatpush2.bf16.msra.mxu0 0
    %7153 = vmatprep.subr.bf16.mxu0 0
    %7154 = vmatpush2.bf16.msra.mxu0 0
    %7155 = vmatprep.subr.bf16.mxu0 0
    %7156 = vmatpush2.bf16.msra.mxu0 0
    %7157 = vmatprep.subr.bf16.mxu0 0
    %7158 = vmatpush2.bf16.msra.mxu0 0
    %7159 = vmatprep.subr.bf16.mxu0 0
    %7160 = vmatpush2.bf16.msra.mxu0 0
    %7161 = vmatprep.mubr.bf16.mxu0 0
    %7162 = vmatmul.mubr.bf16.gmra.mxu0 %v7127
    %v7163 = vpop.f32.mrf.mxu0
    %v7164 = vadd.f32 %v7101, %v7163
    %v7165 = vpop.f32.mrf.mxu0
    %v7166 = vpop.f32.mrf.mxu0
    %v7167 = vpop.f32.mrf.mxu0
    %7168 = vdwg.mxu0
    %v7169 = vsel %vm7063, %v7164, 0.0
    %7170 = vadd.xlane.f32.xlu0 %v7169
    %v7171 = vpop.xlane.xlu0 %7170
    %v7172 = vmul.f32 %v7171, %v7067
    %v7173 = vsub.f32 %v7164, %v7172
    %v7174 = vmul.f32 %v7173, %v7173
    %v7175 = vsel %vm7063, %v7174, 0.0
    %7176 = vadd.xlane.f32.xlu0 %v7175
    %v7177 = vpop.xlane.xlu0 %7176
    %v7178 = vmul.f32 %v7177, %v7067
    %v7179 = vadd.f32 %v7178, 1e-05
    %v7180 = vrsqrt.pop %v7179
    %v7181 = vmul.f32 %v7173, %v7180
    %v7182 = vlaneseq
    %v7183 = vshrl.u32 %v7182, 7
    %v7184 = vsub.s32 4, %v7183
    %v7185 = vrot.slane %v6487, %v7184
    %v7186 = vmul.f32 %v7181, %v7185
    %v7187 = vlaneseq
    %v7188 = vshrl.u32 %v7187, 7
    %v7189 = vsub.s32 5, %v7188
    %v7190 = vrot.slane %v6487, %v7189
    %v7191 = vadd.f32 %v7186, %v7190
    %v7192 = vtanh.pop %v7191
    %v7193 = vlaneseq
    %v7194 = vshrl.u32 %v7193, 7
    %v7195 = vsub.s32 6, %v7194
    %v7196 = vrot.slane %v6487, %v7195
    %v7197 = vmul.f32 %v7192, %v7196
    %v7198 = vsel %vm7063, %v7197, 0.0
    %7199 = vadd.xlane.f32.xlu0 %v7198
    %v7200 = vpop.xlane.xlu0 %7199
    %v7201 = vlaneseq
    %v7202 = vshrl.u32 %v7201, 7
    %v7203 = vsub.s32 7, %v7202
    %v7204 = vrot.slane %v6487, %v7203
    %v7205 = vadd.f32 %v7200, %v7204
    %vm7206 = vcmask 7168
    %7207 = vst.msk [vmem:[%s8] sm:$0xff] %vm7206, %v7205
    // Predicated region
    $region54: #{value_forward.1} parent=1 // pred_check
      _
    $region55: #{value_forward.1} parent=1 // pred_check_branch
      %7209 = sbr.rel (0) target = $region57
    $region56: #{value_forward.1} parent=1 // pred_region
      _
    $region57: #{value_forward.1} parent=1 // pred_fallthru
      _
    // Predicated region
    $region58: #{value_forward.1} parent=1 // pred_check
      _
    $region59: #{value_forward.1} parent=1 // pred_check_branch
      %7211 = sbr.rel (0) target = $region61
    $region60: #{value_forward.1} parent=1 // pred_region
      _
    $region61: #{value_forward.1} parent=1 // pred_fallthru
      _
    %7212 = vsyncpa [#allocation3], 1
    %7213 = vsyncpa [#allocation5], 1
    %7214 = vsyncpa [#allocation8], 1

</llo_original>
